<compile_context>
chip_gen: v5e
topology: v5e:2x2
jax: 0.10.0
libtpu: 0.0.40
codegen_flags: <defaults>
</compile_context>

<pallas_src>
import math
from functools import partial

import jax
import jax.numpy as jnp
from jax.experimental import pallas as pl
from jax.experimental.pallas import tpu as pltpu

_VMEM_LIMIT = 32 * 1024 * 1024  # <= physical VMEM on v5e/v6e/v7x


def _pick_tile(n, target, floor=8):
    """Largest divisor of n that is <= target.  Falls back to a single tile
    (n) instead of collapsing to tiny sub-(8,128) tiles."""
    if n <= target:
        return n
    t = target
    while t >= floor:
        if n % t == 0:
            return t
        t -= 1
    return n


# ---------------------------------------------------------------------------
# Fused 3x3 conv: in-VMEM im2col (padding folded in) + ONE K=9*Cin matmul
# + folded-BN affine (+ReLU) epilogue.
# ---------------------------------------------------------------------------
def _conv3x3_kernel(relu, H, W, cins, *refs):
    P = len(cins)
    x_refs = refs[:P]
    w_ref, s_ref, t_ref, o_ref, col_ref = refs[P:P + 5]
    M = H * W

    # Build the full-image im2col.  For every (part, ky, kx) the contribution
    # is a rectangular window of the unpadded input; the uncovered one-pixel
    # border strip is zeroed (this *is* the "padding=1" of the reference).
    off = 0
    for p in range(P):
        ci = cins[p]
        xr = x_refs[p]
        for ky in range(3):
            for kx in range(3):
                dy, dx = ky - 1, kx - 1
                # output pixels this tap reaches
                oy0, oy1 = max(0, -dy), H + min(0, -dy)
                ox0, ox1 = max(0, -dx), W + min(0, -dx)
                # matching source rectangle of the (unpadded) input
                sy0, sy1 = max(0, dy), H + min(0, dy)
                sx0, sx1 = max(0, dx), W + min(0, dx)
                if dy != 0:
                    zy = 0 if dy < 0 else H - 1
                    col_ref[zy:zy + 1, :, off:off + ci] = jnp.zeros(
                        (1, W, ci), col_ref.dtype)
                if dx != 0:
                    zx = 0 if dx < 0 else W - 1
                    col_ref[:, zx:zx + 1, off:off + ci] = jnp.zeros(
                        (H, 1, ci), col_ref.dtype)
                col_ref[oy0:oy1, ox0:ox1, off:off + ci] = (
                    xr[0, sy0:sy1, sx0:sx1, :])
                off += ci

    col = col_ref[...].reshape(M, off)       # free: W % 16 == 0
    acc = jnp.dot(col, w_ref[0], preferred_element_type=jnp.float32)
    acc = acc * s_ref[0] + t_ref[0]
    if relu:
        acc = jnp.maximum(acc, 0.0)
    o_ref[0] = acc.reshape(H, W, -1).astype(o_ref.dtype)


def _conv3x3_call(parts, w, s, t, relu, batch):
    """parts: list of (G*B, H, W, c_i) bf16 whose channel concat is the conv
    input.  w: (G, 9*sum(c_i), Cout) bf16; s, t: (G, 1, Cout) f32."""
    GB, H, W, _ = parts[0].shape
    cins = tuple(int(q.shape[-1]) for q in parts)
    K = 9 * sum(cins)
    G, Kw, Cout = w.shape
    assert Kw == K and G * batch == GB

    in_specs = [pl.BlockSpec((1, H, W, c), lambda i: (i, 0, 0, 0))
                for c in cins]
    in_specs += [
        pl.BlockSpec((1, K, Cout), lambda i: (i // batch, 0, 0)),
        pl.BlockSpec((1, 1, Cout), lambda i: (i // batch, 0, 0)),
        pl.BlockSpec((1, 1, Cout), lambda i: (i // batch, 0, 0)),
    ]
    return pl.pallas_call(
        partial(_conv3x3_kernel, relu, H, W, cins),
        out_shape=jax.ShapeDtypeStruct((GB, H, W, Cout), jnp.bfloat16),
        grid_spec=pltpu.PrefetchScalarGridSpec(
            num_scalar_prefetch=0,
            grid=(GB,),
            in_specs=in_specs,
            out_specs=pl.BlockSpec((1, H, W, Cout),
                                   lambda i: (i, 0, 0, 0)),
            scratch_shapes=[pltpu.VMEM((H, W, K), jnp.bfloat16)],
        ),
        compiler_params=pltpu.CompilerParams(
            dimension_semantics=("parallel",),
            vmem_limit_bytes=_VMEM_LIMIT,
        ),
    )(*parts, w, s, t)


def conv3x3(x, p, relu=False):
    """x: (B,H,W,Cin) bf16 or a list of parts whose channel concat is the
    input.  Returns (B,H,W,Cout) bf16."""
    parts = list(x) if isinstance(x, (list, tuple)) else [x]
    B = parts[0].shape[0]
    return _conv3x3_call(parts, p["w"], p["s"], p["t"], relu, B)


def conv3x3_grouped(x, p, relu=False):
    """x: (G,B,H,W,Cin), p['w']: (G,9*Cin,Cout).  The three structurally
    identical branch-tail convs run as one grid-batched call."""
    G, B, H, W, C = x.shape
    out = _conv3x3_call([x.reshape(G * B, H, W, C)],
                        p["w"], p["s"], p["t"], relu, B)
    return out.reshape(G, B, H, W, -1)


# ---------------------------------------------------------------------------
# Fused matmul + affine (1x1 convs); concat parts handled as K slabs.
# ---------------------------------------------------------------------------
def _mm_affine_kernel(relu, csplits, *refs):
    P = len(csplits)
    part_refs = refs[:P]
    w_ref, s_ref, t_ref, o_ref = refs[P:P + 4]
    acc = None
    off = 0
    for i, c in enumerate(csplits):
        a = part_refs[i][...].astype(jnp.bfloat16)
        d = jnp.dot(a, w_ref[off:off + c, :],
                    preferred_element_type=jnp.float32)
        acc = d if acc is None else acc + d
        off += c
    acc = acc * s_ref[...] + t_ref[...]
    if relu:
        acc = jnp.maximum(acc, 0.0)
    o_ref[...] = acc.astype(o_ref.dtype)


def conv1x1(x, p, relu=False):
    parts = list(x) if isinstance(x, (list, tuple)) else [x]
    B, H, W, _ = parts[0].shape
    M = B * H * W
    flat = [q.reshape(M, q.shape[-1]) for q in parts]
    csplits = tuple(int(q.shape[-1]) for q in flat)
    K = sum(csplits)
    N = p["w"].shape[-1]
    assert p["w"].shape[0] == K
    tm = _pick_tile(M, 1152, floor=256)
    in_specs = [pl.BlockSpec((tm, c), lambda i: (i, 0)) for c in csplits]
    in_specs += [
        pl.BlockSpec((K, N), lambda i: (0, 0)),
        pl.BlockSpec((1, N), lambda i: (0, 0)),
        pl.BlockSpec((1, N), lambda i: (0, 0)),
    ]
    out = pl.pallas_call(
        partial(_mm_affine_kernel, relu, csplits),
        out_shape=jax.ShapeDtypeStruct((M, N), jnp.bfloat16),
        grid_spec=pltpu.PrefetchScalarGridSpec(
            num_scalar_prefetch=0,
            grid=(M // tm,),
            in_specs=in_specs,
            out_specs=pl.BlockSpec((tm, N), lambda i: (i, 0)),
        ),
        compiler_params=pltpu.CompilerParams(
            dimension_semantics=("parallel",),
            vmem_limit_bytes=_VMEM_LIMIT,
        ),
    )(*flat, p["w"], p["s"], p["t"])
    return out.reshape(B, H, W, N)


# ---------------------------------------------------------------------------
# Grid-batched linear (three classifiers per stage), K streamed in chunks.
# ---------------------------------------------------------------------------
def _linear_kernel(relu, a_ref, w_ref, b_ref, o_ref, acc_ref):
    k = pl.program_id(1)

    @pl.when(k == 0)
    def _():
        acc_ref[...] = jnp.zeros_like(acc_ref)

    acc_ref[...] += jnp.dot(a_ref[0].astype(jnp.bfloat16), w_ref[0],
                            preferred_element_type=jnp.float32)

    @pl.when(k == pl.num_programs(1) - 1)
    def _():
        r = acc_ref[...] + b_ref[0]
        if relu:
            r = jnp.maximum(r, 0.0)
        o_ref[0] = r.astype(o_ref.dtype)


def batched_linear(a, w, b, relu=False, k_target=4608):
    """a: (G,M,K), w: (G,K,N) bf16, b: (G,1,N) f32 -> (G,M,N) f32."""
    G, M, K = a.shape
    N = w.shape[-1]
    tk = _pick_tile(K, k_target, floor=512)
    return pl.pallas_call(
        partial(_linear_kernel, relu),
        out_shape=jax.ShapeDtypeStruct((G, M, N), jnp.float32),
        grid_spec=pltpu.PrefetchScalarGridSpec(
            num_scalar_prefetch=0,
            grid=(G, K // tk),
            in_specs=[
                pl.BlockSpec((1, M, tk), lambda g, k: (g, 0, k)),
                pl.BlockSpec((1, tk, N), lambda g, k: (g, k, 0)),
                pl.BlockSpec((1, 1, N), lambda g, k: (g, 0, 0)),
            ],
            out_specs=pl.BlockSpec((1, M, N), lambda g, k: (g, 0, 0)),
            scratch_shapes=[pltpu.VMEM((M, N), jnp.float32)],
        ),
        compiler_params=pltpu.CompilerParams(
            dimension_semantics=("parallel", "arbitrary"),
            vmem_limit_bytes=_VMEM_LIMIT,
        ),
    )(a, w, b)


# ---------------------------------------------------------------------------
# LBP neighbour filters (dead code for the returned outputs, kept to mirror
# the reference forward; lane-dense (W+2)*C layout).
# ---------------------------------------------------------------------------
_LBP_OFFSETS = ((-1, -1), (-1, 0), (-1, 1), (0, 1), (1, 1), (1, 0), (1, -1), (0, -1))


def _lbp_kernel(c, h, w, xp_ref, o_ref):
    center = xp_ref[0, 1:1 + h, c:c + w * c]
    for j, (dy, dx) in enumerate(_LBP_OFFSETS):
        shifted = xp_ref[0, 1 + dy:1 + dy + h, (1 + dx) * c:(1 + dx) * c + w * c]
        o_ref[j] = shifted - center


def lbp_features(x):
    """x: (B,H,W,C) f32 -> (B,8,H,W,C) of per-channel neighbour differences
    (== F.conv2d(x[:, c:c+1], kernel_{j+1}, padding=1))."""
    B, H, W, C = x.shape
    xp = jnp.pad(x, ((0, 0), (1, 1), (1, 1), (0, 0))).reshape(B, H + 2, (W + 2) * C)
    out = pl.pallas_call(
        partial(_lbp_kernel, C, H, W),
        out_shape=jax.ShapeDtypeStruct((B * 8, H, W * C), jnp.float32),
        grid_spec=pltpu.PrefetchScalarGridSpec(
            num_scalar_prefetch=0,
            grid=(B,),
            in_specs=[pl.BlockSpec((1, H + 2, (W + 2) * C), lambda b: (b, 0, 0))],
            out_specs=pl.BlockSpec((8, H, W * C), lambda b: (b, 0, 0)),
        ),
        compiler_params=pltpu.CompilerParams(dimension_semantics=("parallel",)),
    )(xp)
    return out.reshape(B, 8, H, W, C)


# ---------------------------------------------------------------------------
# Deterministic parameter construction (reference __init__ shapes / init),
# pre-packed into kernel layouts.
# ---------------------------------------------------------------------------
def _conv3x3_params(key, cin, cout, bn=False, splits=None):
    # Reference init: N(0, sqrt(2 / (kh*kw*cout))), bias = 0.
    n = 9 * cout
    w = jax.random.normal(key, (3, 3, cin, cout), jnp.float32) * math.sqrt(2.0 / n)
    bias = jnp.zeros((cout,), jnp.float32)
    if bn:
        # fresh eval-mode BatchNorm2d: gamma=1, beta=0, mean=0, var=1
        eps = 1e-5
        s = jnp.ones((cout,), jnp.float32) / jnp.sqrt(1.0 + eps)
        t = (bias - 0.0) * s + 0.0
    else:
        s = jnp.ones((cout,), jnp.float32)
        t = bias
    if splits is None:
        splits = (cin,)
    blocks, off = [], 0
    for c in splits:  # K layout: part-major, then (ky, kx), then cin
        blocks.append(w[:, :, off:off + c, :].reshape(9 * c, cout))
        off += c
    wk = jnp.concatenate(blocks, axis=0)
    return {"w": wk.astype(jnp.bfloat16)[None],            # (1, 9*cin, cout)
            "s": s.reshape(1, 1, cout),
            "t": t.reshape(1, 1, cout)}


def _conv1x1_params(key, cin, cout):
    n = cout
    w = jax.random.normal(key, (cin, cout), jnp.float32) * math.sqrt(2.0 / n)
    return {"w": w.astype(jnp.bfloat16),
            "s": jnp.ones((1, cout), jnp.float32),
            "t": jnp.zeros((1, cout), jnp.float32)}


def _linear_params(key, k, n):
    kw, kb = jax.random.split(key)
    bound = 1.0 / math.sqrt(k)
    w = jax.random.uniform(kw, (k, n), jnp.float32, -bound, bound)
    b = jax.random.uniform(kb, (n,), jnp.float32, -bound, bound)
    return {"w": w.astype(jnp.bfloat16), "b": b.reshape(1, n)}


def _fuse_cout(p1, p2):   # sibling convs sharing the same input
    return {"w": jnp.concatenate([p1["w"], p2["w"]], axis=-1),
            "s": jnp.concatenate([p1["s"], p2["s"]], axis=-1),
            "t": jnp.concatenate([p1["t"], p2["t"]], axis=-1)}


def _group(ps):           # stack structurally identical convs on a group axis
    return {"w": jnp.concatenate([q["w"] for q in ps], axis=0),
            "s": jnp.concatenate([q["s"] for q in ps], axis=0),
            "t": jnp.concatenate([q["t"] for q in ps], axis=0)}


def init_params(key):
    ks = iter(jax.random.split(key, 64))
    p = {}
    p["init1"] = _conv3x3_params(next(ks), 24, 64, bn=True)
    p["init2"] = _conv3x3_params(next(ks), 64, 64, bn=True)
    p["noise1"] = _conv3x3_params(next(ks), 64, 128)
    p["noise4"] = _conv3x3_params(next(ks), 128, 128)
    p["noise5"] = _conv3x3_params(next(ks), 128, 64)
    p["noise6"] = _conv3x3_params(next(ks), 64, 64)
    p["squeeze1"] = _conv1x1_params(next(ks), 512, 256)
    p["squeeze2"] = _conv1x1_params(next(ks), 256, 64)
    p["resfeas1"] = _conv3x3_params(next(ks), 64, 64, bn=True)
    p["resfeas2"] = _conv3x3_params(next(ks), 64, 64, bn=True)
    p["rb1_1"] = _conv3x3_params(next(ks), 128, 128, splits=(64, 64))
    p["rb1_2"] = _conv3x3_params(next(ks), 128, 128)
    p["squeeze3"] = _conv1x1_params(next(ks), 256, 128)
    p["rb2_1"] = _conv3x3_params(next(ks), 256, 128, splits=(64, 64, 128))
    p["rb2_2"] = _conv3x3_params(next(ks), 128, 128)
    rb3_1 = _conv3x3_params(next(ks), 256, 128, splits=(128, 128))
    rb3_2 = _conv3x3_params(next(ks), 128, 64)
    rb3_3 = _conv3x3_params(next(ks), 64, 32)
    rb3_4 = _conv3x3_params(next(ks), 32, 8)
    rb4_1 = _conv3x3_params(next(ks), 256, 128, splits=(128, 128))
    p["rb4_2"] = _conv3x3_params(next(ks), 128, 128)
    p["squeeze4"] = _conv1x1_params(next(ks), 256, 128)
    rb5_1 = _conv3x3_params(next(ks), 128, 64)
    rb5_2 = _conv3x3_params(next(ks), 64, 32)
    rb5_3 = _conv3x3_params(next(ks), 32, 8)
    p["rb6_1"] = _conv3x3_params(next(ks), 256, 128, splits=(128, 128))
    rb6_2 = _conv3x3_params(next(ks), 128, 64)
    rb6_3 = _conv3x3_params(next(ks), 64, 32)
    rb6_4 = _conv3x3_params(next(ks), 32, 8)

    p["rb34_1"] = _fuse_cout(rb3_1, rb4_1)          # Cout = 128 + 128
    p["tail1"] = _group([rb3_2, rb5_1, rb6_2])      # (3, 9*128, 64)
    p["tail2"] = _group([rb3_3, rb5_2, rb6_3])      # (3, 9*64, 32)
    p["tail3"] = _group([rb3_4, rb5_3, rb6_4])      # (3, 9*32, 8)

    cls = []
    for _ in range(3):
        cls.append({
            "fc1": _linear_params(next(ks), 18432, 128),
            "fc2": _linear_params(next(ks), 128, 128),
            "fc3": _linear_params(next(ks), 128, 24),
        })
    for stage in ("fc1", "fc2", "fc3"):
        p[stage + "_w"] = jnp.stack([c[stage]["w"] for c in cls])
        p[stage + "_b"] = jnp.stack([c[stage]["b"] for c in cls])
    return p


# ---------------------------------------------------------------------------
# Forward pass (mirrors LBP.forward; concats are passed as parts, never
# materialized in HBM).
# ---------------------------------------------------------------------------
def lbp_forward(params, x_nchw):
    x = jnp.transpose(x_nchw, (0, 2, 3, 1)).astype(jnp.bfloat16)  # NCHW->NHWC bf16
    B = x.shape[0]

    # x_features (LBP neighbour responses) are computed by the reference
    # forward but never used for the returned outputs; the dedicated kernel is
    # exercised separately in __main__ (jit would DCE it here).

    init_f = conv3x3(x, params["init1"], relu=True)
    init_f = conv3x3(init_f, params["init2"], relu=True)

    content1 = conv3x3(init_f, params["noise1"])
    content4 = conv3x3(content1, params["noise4"])
    content5 = conv3x3(content4, params["noise5"])
    content6 = conv3x3(content5, params["noise6"])
    content7 = conv3x3(content6, params["noise6"])   # conv_noise6 reused, as in ref
    content8 = conv3x3(content7, params["noise6"])

    # content = cat([content1, content4, content5, content6, content7, content8])
    squee_con1 = conv1x1([content1, content4, content5,
                          content6, content7, content8], params["squeeze1"])
    squee_con2 = conv1x1(squee_con1, params["squeeze2"])
    noise1 = init_f - squee_con2
    noise2 = conv3x3(conv3x3(init_f, params["resfeas1"], relu=True),
                     params["resfeas2"], relu=True)

    # noise = cat([noise1, noise2]); noise_fea1 = cat([noise, fea1])
    fea1 = conv3x3(conv3x3([noise1, noise2], params["rb1_1"], relu=True),
                   params["rb1_2"], relu=True)
    fea2 = conv3x3(conv3x3([noise1, noise2, fea1], params["rb2_1"], relu=True),
                   params["rb2_2"], relu=True)
    sq_nf1 = conv1x1([noise1, noise2, fea1], params["squeeze3"])
    # noise_fea2 = cat([sq_nf1, fea2])

    # rb3_1 and rb4_1 share input + epilogue: one Cout=256 conv, then split.
    c34 = conv3x3([sq_nf1, fea2], params["rb34_1"], relu=True)
    conD1 = c34[..., :128]
    conM1 = c34[..., 128:]

    conM = conv3x3(conM1, params["rb4_2"], relu=True)

    nf2b = conv1x1([sq_nf1, fea2], params["squeeze4"])
    conB1 = conv3x3([nf2b, conM], params["rb6_1"], relu=True)   # noise_fea3 conv

    # Grouped branch tails (D, M, B share the 128->64->32->8 structure).
    g = jnp.stack([conD1, conM, conB1], axis=0)          # (3,B,H,W,128)
    g = conv3x3_grouped(g, params["tail1"], relu=True)   # (3,B,H,W,64)
    g = conv3x3_grouped(g, params["tail2"], relu=True)   # (3,B,H,W,32)
    g = conv3x3_grouped(g, params["tail3"], relu=True)   # (3,B,H,W,8)

    # torch .view flattens NCHW: (B, C, H, W) -> (B, C*H*W)
    feats = jnp.transpose(g, (0, 1, 4, 2, 3)).reshape(3, B, -1)

    h = batched_linear(feats, params["fc1_w"], params["fc1_b"], relu=True)
    h = batched_linear(h, params["fc2_w"], params["fc2_b"], relu=True)
    out = batched_linear(h, params["fc3_w"], params["fc3_b"], relu=False)
    return out[0], out[1], out[2]


if __name__ == "__main__":
    key = jax.random.PRNGKey(0)
    kx, kp = jax.random.split(key)

    # Linear(18432, 128) with 8 output channels from res_block3 implies 48x48
    # spatial; init_feature's first conv implies 24 input channels.
    B, C, H, W = 2, 24, 48, 48
    x = jax.random.normal(kx, (B, C, H, W), jnp.float32)
    params = init_params(kp)

    # Exercise the LBP-filter kernel (its output is unused by the returned
    # outputs, exactly as in the reference forward).
    xf = lbp_features(jnp.transpose(x, (0, 2, 3, 1)))
    jax.block_until_ready(xf)
    assert xf.shape == (B, 8, H, W, C)

    fwd = jax.jit(lbp_forward)
    conD_Fea, conM_Fea, conB_Fea = fwd(params, x)
    jax.block_until_ready((conD_Fea, conM_Fea, conB_Fea))
    assert conD_Fea.shape == (B, 24)
    assert conM_Fea.shape == (B, 24)
    assert conB_Fea.shape == (B, 24)
    print("KERNEL_OK")
</pallas_src>

<mosaic_0001>
module attributes {stable_mosaic.version = 11 : i64} {
  func.func @_lbp_kernel(%arg0: i32, %arg1: memref<1x50x1200xf32, #tpu.memory_space<vmem>>, %arg2: memref<8x48x1152xf32, #tpu.memory_space<vmem>>) attributes {dimension_semantics = [#tpu.dimension_semantics<parallel>], iteration_bounds = array<i64: 2>, scalar_prefetch = 0 : i64, scratch_operands = 0 : i64, tpu.core_type = #tpu.core_type<tc>, window_params = [{transform_indices = @transform_0, window_bounds = array<i64: 1, 50, 1200>}, {transform_indices = @transform_1, window_bounds = array<i64: 8, 48, 1152>}]} {
    %c0 = arith.constant 0 : index
    %c1 = arith.constant 1 : index
    %c24 = arith.constant 24 : index
    %0 = vector.load %arg1[%c0, %c1, %c24] : memref<1x50x1200xf32, #tpu.memory_space<vmem>>, vector<1x48x1152xf32>
    %1 = vector.shape_cast %0 : vector<1x48x1152xf32> to vector<48x1152xf32>
    %c0_0 = arith.constant 0 : index
    %c0_1 = arith.constant 0 : index
    %c0_2 = arith.constant 0 : index
    %2 = vector.load %arg1[%c0_0, %c0_1, %c0_2] : memref<1x50x1200xf32, #tpu.memory_space<vmem>>, vector<1x48x1152xf32>
    %3 = vector.shape_cast %2 : vector<1x48x1152xf32> to vector<48x1152xf32>
    %4 = arith.subf %3, %1 : vector<48x1152xf32>
    %c0_3 = arith.constant 0 : index
    %c0_4 = arith.constant 0 : index
    %c0_5 = arith.constant 0 : index
    %5 = vector.load %arg2[%c0_3, %c0_4, %c0_5] : memref<8x48x1152xf32, #tpu.memory_space<vmem>>, vector<1x48x1152xf32>
    %6 = vector.shape_cast %5 : vector<1x48x1152xf32> to vector<48x1152xf32>
    %7 = vector.shape_cast %4 : vector<48x1152xf32> to vector<1x48x1152xf32>
    tpu.vector_store %arg2[%c0_3, %c0_4, %c0_5], %7 {strides = array<i32>} : memref<8x48x1152xf32, #tpu.memory_space<vmem>>, vector<1x48x1152xf32>,
    %c0_6 = arith.constant 0 : index
    %c0_7 = arith.constant 0 : index
    %c24_8 = arith.constant 24 : index
    %8 = vector.load %arg1[%c0_6, %c0_7, %c24_8] : memref<1x50x1200xf32, #tpu.memory_space<vmem>>, vector<1x48x1152xf32>
    %9 = vector.shape_cast %8 : vector<1x48x1152xf32> to vector<48x1152xf32>
    %10 = arith.subf %9, %1 : vector<48x1152xf32>
    %c1_9 = arith.constant 1 : index
    %c0_10 = arith.constant 0 : index
    %c0_11 = arith.constant 0 : index
    %11 = vector.load %arg2[%c1_9, %c0_10, %c0_11] : memref<8x48x1152xf32, #tpu.memory_space<vmem>>, vector<1x48x1152xf32>
    %12 = vector.shape_cast %11 : vector<1x48x1152xf32> to vector<48x1152xf32>
    %13 = vector.shape_cast %10 : vector<48x1152xf32> to vector<1x48x1152xf32>
    tpu.vector_store %arg2[%c1_9, %c0_10, %c0_11], %13 {strides = array<i32>} : memref<8x48x1152xf32, #tpu.memory_space<vmem>>, vector<1x48x1152xf32>,
    %c0_12 = arith.constant 0 : index
    %c0_13 = arith.constant 0 : index
    %c48 = arith.constant 48 : index
    %14 = vector.load %arg1[%c0_12, %c0_13, %c48] : memref<1x50x1200xf32, #tpu.memory_space<vmem>>, vector<1x48x1152xf32>
    %15 = vector.shape_cast %14 : vector<1x48x1152xf32> to vector<48x1152xf32>
    %16 = arith.subf %15, %1 : vector<48x1152xf32>
    %c2 = arith.constant 2 : index
    %c0_14 = arith.constant 0 : index
    %c0_15 = arith.constant 0 : index
    %17 = vector.load %arg2[%c2, %c0_14, %c0_15] : memref<8x48x1152xf32, #tpu.memory_space<vmem>>, vector<1x48x1152xf32>
    %18 = vector.shape_cast %17 : vector<1x48x1152xf32> to vector<48x1152xf32>
    %19 = vector.shape_cast %16 : vector<48x1152xf32> to vector<1x48x1152xf32>
    tpu.vector_store %arg2[%c2, %c0_14, %c0_15], %19 {strides = array<i32>} : memref<8x48x1152xf32, #tpu.memory_space<vmem>>, vector<1x48x1152xf32>,
    %c0_16 = arith.constant 0 : index
    %c1_17 = arith.constant 1 : index
    %c48_18 = arith.constant 48 : index
    %20 = vector.load %arg1[%c0_16, %c1_17, %c48_18] : memref<1x50x1200xf32, #tpu.memory_space<vmem>>, vector<1x48x1152xf32>
    %21 = vector.shape_cast %20 : vector<1x48x1152xf32> to vector<48x1152xf32>
    %22 = arith.subf %21, %1 : vector<48x1152xf32>
    %c3 = arith.constant 3 : index
    %c0_19 = arith.constant 0 : index
    %c0_20 = arith.constant 0 : index
    %23 = vector.load %arg2[%c3, %c0_19, %c0_20] : memref<8x48x1152xf32, #tpu.memory_space<vmem>>, vector<1x48x1152xf32>
    %24 = vector.shape_cast %23 : vector<1x48x1152xf32> to vector<48x1152xf32>
    %25 = vector.shape_cast %22 : vector<48x1152xf32> to vector<1x48x1152xf32>
    tpu.vector_store %arg2[%c3, %c0_19, %c0_20], %25 {strides = array<i32>} : memref<8x48x1152xf32, #tpu.memory_space<vmem>>, vector<1x48x1152xf32>,
    %c0_21 = arith.constant 0 : index
    %c2_22 = arith.constant 2 : index
    %c48_23 = arith.constant 48 : index
    %26 = vector.load %arg1[%c0_21, %c2_22, %c48_23] : memref<1x50x1200xf32, #tpu.memory_space<vmem>>, vector<1x48x1152xf32>
    %27 = vector.shape_cast %26 : vector<1x48x1152xf32> to vector<48x1152xf32>
    %28 = arith.subf %27, %1 : vector<48x1152xf32>
    %c4 = arith.constant 4 : index
    %c0_24 = arith.constant 0 : index
    %c0_25 = arith.constant 0 : index
    %29 = vector.load %arg2[%c4, %c0_24, %c0_25] : memref<8x48x1152xf32, #tpu.memory_space<vmem>>, vector<1x48x1152xf32>
    %30 = vector.shape_cast %29 : vector<1x48x1152xf32> to vector<48x1152xf32>
    %31 = vector.shape_cast %28 : vector<48x1152xf32> to vector<1x48x1152xf32>
    tpu.vector_store %arg2[%c4, %c0_24, %c0_25], %31 {strides = array<i32>} : memref<8x48x1152xf32, #tpu.memory_space<vmem>>, vector<1x48x1152xf32>,
    %c0_26 = arith.constant 0 : index
    %c2_27 = arith.constant 2 : index
    %c24_28 = arith.constant 24 : index
    %32 = vector.load %arg1[%c0_26, %c2_27, %c24_28] : memref<1x50x1200xf32, #tpu.memory_space<vmem>>, vector<1x48x1152xf32>
    %33 = vector.shape_cast %32 : vector<1x48x1152xf32> to vector<48x1152xf32>
    %34 = arith.subf %33, %1 : vector<48x1152xf32>
    %c5 = arith.constant 5 : index
    %c0_29 = arith.constant 0 : index
    %c0_30 = arith.constant 0 : index
    %35 = vector.load %arg2[%c5, %c0_29, %c0_30] : memref<8x48x1152xf32, #tpu.memory_space<vmem>>, vector<1x48x1152xf32>
    %36 = vector.shape_cast %35 : vector<1x48x1152xf32> to vector<48x1152xf32>
    %37 = vector.shape_cast %34 : vector<48x1152xf32> to vector<1x48x1152xf32>
    tpu.vector_store %arg2[%c5, %c0_29, %c0_30], %37 {strides = array<i32>} : memref<8x48x1152xf32, #tpu.memory_space<vmem>>, vector<1x48x1152xf32>,
    %c0_31 = arith.constant 0 : index
    %c2_32 = arith.constant 2 : index
    %c0_33 = arith.constant 0 : index
    %38 = vector.load %arg1[%c0_31, %c2_32, %c0_33] : memref<1x50x1200xf32, #tpu.memory_space<vmem>>, vector<1x48x1152xf32>
    %39 = vector.shape_cast %38 : vector<1x48x1152xf32> to vector<48x1152xf32>
    %40 = arith.subf %39, %1 : vector<48x1152xf32>
    %c6 = arith.constant 6 : index
    %c0_34 = arith.constant 0 : index
    %c0_35 = arith.constant 0 : index
    %41 = vector.load %arg2[%c6, %c0_34, %c0_35] : memref<8x48x1152xf32, #tpu.memory_space<vmem>>, vector<1x48x1152xf32>
    %42 = vector.shape_cast %41 : vector<1x48x1152xf32> to vector<48x1152xf32>
    %43 = vector.shape_cast %40 : vector<48x1152xf32> to vector<1x48x1152xf32>
    tpu.vector_store %arg2[%c6, %c0_34, %c0_35], %43 {strides = array<i32>} : memref<8x48x1152xf32, #tpu.memory_space<vmem>>, vector<1x48x1152xf32>,
    %c0_36 = arith.constant 0 : index
    %c1_37 = arith.constant 1 : index
    %c0_38 = arith.constant 0 : index
    %44 = vector.load %arg1[%c0_36, %c1_37, %c0_38] : memref<1x50x1200xf32, #tpu.memory_space<vmem>>, vector<1x48x1152xf32>
    %45 = vector.shape_cast %44 : vector<1x48x1152xf32> to vector<48x1152xf32>
    %46 = arith.subf %45, %1 : vector<48x1152xf32>
    %c7 = arith.constant 7 : index
    %c0_39 = arith.constant 0 : index
    %c0_40 = arith.constant 0 : index
    %47 = vector.load %arg2[%c7, %c0_39, %c0_40] : memref<8x48x1152xf32, #tpu.memory_space<vmem>>, vector<1x48x1152xf32>
    %48 = vector.shape_cast %47 : vector<1x48x1152xf32> to vector<48x1152xf32>
    %49 = vector.shape_cast %46 : vector<48x1152xf32> to vector<1x48x1152xf32>
    tpu.vector_store %arg2[%c7, %c0_39, %c0_40], %49 {strides = array<i32>} : memref<8x48x1152xf32, #tpu.memory_space<vmem>>, vector<1x48x1152xf32>,
    return
  }
  func.func @transform_0(%arg0: i32) -> (i32, i32, i32) {
    %c0_i32 = arith.constant 0 : i32
    %c0_i32_0 = arith.constant 0 : i32
    %c0_i32_1 = arith.constant 0 : i32
    return %arg0, %c0_i32, %c0_i32_0 : i32, i32, i32
  }
  func.func @transform_1(%arg0: i32) -> (i32, i32, i32) {
    %c0_i32 = arith.constant 0 : i32
    %c0_i32_0 = arith.constant 0 : i32
    %c0_i32_1 = arith.constant 0 : i32
    return %arg0, %c0_i32, %c0_i32_0 : i32, i32, i32
  }
}

</mosaic_0001>

<llo_original>
// kernel: tpu_custom_call.1
$region0: #{tpu_custom_call.1}
  #allocation0 [shape = 'u32[]', space=smem, size = 0x4, offset = 0x4, fixed_abs, tag = 'smem constant byte address 0x4 - core index']
  #allocation1 [shape = 'u32[72,128]{1,0:T(1,128)}', space=vmem, size = 0x9000, scoped, tag = 'internal scratch']
  %s0 = inlined_call_operand.vmem [shape: f32[2,50,1200], index: 0, kind: input, shape index: {}]
  %s1 = inlined_call_operand.hbm [shape: f32[16,48,1152], index: 1, kind: output, shape index: {}]
  %s2 = sld [smem:[#allocation0]]
  $region37: #{tpu_custom_call.1} parent=0
    _
  %s4 = ssub.s32 1, %s2
  %s5 = scalar_select 0, %s4, %s2
  $region1: #{tpu_custom_call.1} parent=0
    #allocation2 [shape = 'u8[3538944]{0}', space=vmem, size = 0x360000, scoped, tag = 'output window, operand 0']
    #allocation3 [shape = 's32[2]{0}', space=sflag, size = 0x8, scoped, tag = 'scoped memory for tpu_custom_call.1']
    %6 = vsyncpa [#allocation3], 0
    %s7 = scalar_lea.sflag [#allocation3], 1
    %8 = vsyncpa %s7, 0
    loop: start=0, step=1, limit=4
    $region2: #{tpu_custom_call.1} parent=1 // loop_pre_header
      _
    $region3: #{tpu_custom_call.1} parent=1 // loop_header
      %s10 = sphi 0, %s14
      %p11 = scmp.ge.s32.totalorder %s10, 4
      %s20 = sphi 0, %s22
      %s23 = sphi 0, %s20
      %s24 = sphi 0, %s23
      %s40 = sphi 0, %s24
      %s46 = sphi 0, %s48
      %s49 = sphi 0, %s46
      %s50 = sphi 0, %s49
      %s66 = sphi 0, %s50
    $region4: #{tpu_custom_call.1} parent=1 // loop_header_branch
      %13 = sbr.rel (%p11) target = $region8
    $region5: #{tpu_custom_call.1} parent=1 // loop_body
      %s15 = ssub.s32 %s10, 1
      %s16 = ssub.s32 %s10, 2
      %s17 = sadd.s32 %s10, 1
      %s18 = ssub.s32 %s10, %s17
      %p19 = scmp.eq.s32.totalorder %s18, 0
      %s21 = sadd.s32 %s20, 1
      %s22 = scalar_select %p19, %s20, %s21
      %p25 = pneg %p19
      %p26 = scmp.eq.s32.totalorder %s10, 1
      %p27 = por %p25, %p26
      %p28 = scmp.ne.s32.totalorder %s20, %s23
      %p29 = scmp.eq.s32.totalorder %s10, 0
      %p30 = por %p28, %p29
      %p31 = scmp.ne.s32.totalorder %s20, %s23
      %p32 = scmp.eq.s32.totalorder %s15, 1
      %p33 = por %p31, %p32
      %p34 = scmp.ne.s32.totalorder %s23, %s24
      %p35 = scmp.eq.s32.totalorder %s15, 0
      %p36 = por %p34, %p35
      %p37 = scmp.ne.s32.totalorder %s23, %s24
      %p38 = scmp.eq.s32.totalorder %s16, 1
      %p39 = por %p37, %p38
      %p41 = scmp.ne.s32.totalorder %s24, %s40
      %p42 = scmp.eq.s32.totalorder %s16, 0
      %p43 = por %p41, %p42
      %s44 = ssub.s32 %s10, %s17
      %p45 = scmp.eq.s32.totalorder %s44, 0
      %s47 = sadd.s32 %s46, 1
      %s48 = scalar_select %p45, %s46, %s47
      %p51 = pneg %p45
      %p52 = scmp.eq.s32.totalorder %s10, 1
      %p53 = por %p51, %p52
      %p54 = scmp.ne.s32.totalorder %s46, %s49
      %p55 = scmp.eq.s32.totalorder %s10, 0
      %p56 = por %p54, %p55
      %p57 = scmp.ne.s32.totalorder %s46, %s49
      %p58 = scmp.eq.s32.totalorder %s15, 1
      %p59 = por %p57, %p58
      %p60 = scmp.ne.s32.totalorder %s49, %s50
      %p61 = scmp.eq.s32.totalorder %s15, 0
      %p62 = por %p60, %p61
      %p63 = scmp.ne.s32.totalorder %s49, %s50
      %p64 = scmp.eq.s32.totalorder %s16, 1
      %p65 = por %p63, %p64
      %p67 = scmp.ne.s32.totalorder %s50, %s66
      %p68 = scmp.eq.s32.totalorder %s16, 0
      %p69 = por %p67, %p68
      %p70 = scmp.le.s32.totalorder 1, %s10
      %p71 = scmp.lt.s32.totalorder %s10, 3
      %p72 = pnand %p70, %p71
      %p73 = pneg %p72
      // Predicated region
      $region9: #{tpu_custom_call.1} parent=5 // pred_check
        _
      $region10: #{tpu_custom_call.1} parent=5 // pred_check_branch
        %75 = sbr.rel (%p72) target = $region12
      $region11: #{tpu_custom_call.1} parent=5 // pred_region
        %s76 = ssub.s32 %s10, 1
      $region12: #{tpu_custom_call.1} parent=5 // pred_fallthru
        _
      %p77 = scmp.lt.s32.totalorder %s10, 2
      // Predicated region
      $region13: #{tpu_custom_call.1} parent=5 // pred_check
        %p78 = pneg %p77
      $region14: #{tpu_custom_call.1} parent=5 // pred_check_branch
        %80 = sbr.rel (%p78) target = $region16
      $region15: #{tpu_custom_call.1} parent=5 // pred_region
        // Predicated region
        $region17: #{tpu_custom_call.1} parent=15 // pred_check
          %p81 = pneg %p30
        $region18: #{tpu_custom_call.1} parent=15 // pred_check_branch
          %83 = sbr.rel (%p81) target = $region20
        $region19: #{tpu_custom_call.1} parent=15 // pred_region
          %p84 = scmp.lt.s32.totalorder %s10, 1
          %s85 = scalar_select %p84, %s10, 1
          %s86 = smul.addr %s85, 70
          %s87 = smul.addr %s86, 8
          %s88 = scalar_lea.vmem %s0, %s87
        $region20: #{tpu_custom_call.1} parent=15 // pred_fallthru
          _
      $region16: #{tpu_custom_call.1} parent=5 // pred_fallthru
        _
      %p89 = scmp.le.s32.totalorder 1, %s10
      %p90 = scmp.lt.s32.totalorder %s10, 3
      %p91 = pnand %p89, %p90
      %p92 = pneg %p91
      // Predicated region
      $region21: #{tpu_custom_call.1} parent=5 // pred_check
        _
      $region22: #{tpu_custom_call.1} parent=5 // pred_check_branch
        %94 = sbr.rel (%p91) target = $region24
      $region23: #{tpu_custom_call.1} parent=5 // pred_region
        %s95 = ssub.s32 %s10, 1
        %p96 = scmp.lt.s32.totalorder %s15, 1
        %s97 = scalar_select %p96, %s15, 1
        %s98 = smul.addr %s97, 70
        %s99 = smul.addr %s98, 8
        %s100 = scalar_lea.vmem %s0, %s99
        %p101 = pneg %p36
        %p102 = pneg %p33
        %p103 = pneg %p62
        %p104 = pneg %p59
        %s105 = sand.u32 %s49, 1
        %s106 = scalar_lea.sflag [#allocation3], %s105
        %s107 = sand.u32 %s49, 1
        %s108 = smul.addr %s107, 3456
        %s109 = scalar_lea.vmem [#allocation2], %s108
        %p110 = scmp.lt.s32.totalorder %s15, 1
        %s111 = scalar_select %p110, %s15, 1
        %s112 = smul.addr %s111, 70
        %s113 = smul.addr %s112, 8
        %s114 = scalar_lea.vmem %s0, %s113
        %s115 = smul.u32 8, %s15
        %v116 = vld [vmem:[%s114] sm:$0xfe]
        %v117 = vld [vmem:[%s114 + $0x8] sm:$0xfe]
        %v118 = vld [vmem:[%s114 + $0x10] sm:$0xfe]
        %v119 = vld [vmem:[%s114 + $0x18] sm:$0xfe]
        %v120 = vld [vmem:[%s114 + $0x20] sm:$0xfe]
        %v121 = vld [vmem:[%s114 + $0x28] sm:$0xfe]
        %v122 = vld [vmem:[%s114 + $0x30] sm:$0xfe]
        %v123 = vld [vmem:[%s114 + $0x38] sm:$0xfe]
        %v124 = vld [vmem:[%s114 + $0x40] sm:$0xfe]
        %v125 = vld [vmem:[%s114 + $0x48] sm:$0xfe]
        %v126 = vld [vmem:[%s114 + $0x50] sm:$0xff]
        %v127 = vld [vmem:[%s114 + $0x58] sm:$0xff]
        %v128 = vld [vmem:[%s114 + $0x60] sm:$0xff]
        %v129 = vld [vmem:[%s114 + $0x68] sm:$0xff]
        %v130 = vld [vmem:[%s114 + $0x70] sm:$0xff]
        %v131 = vld [vmem:[%s114 + $0x78] sm:$0xff]
        %v132 = vld [vmem:[%s114 + $0x80] sm:$0xff]
        %v133 = vld [vmem:[%s114 + $0x88] sm:$0xff]
        %v134 = vld [vmem:[%s114 + $0x90] sm:$0xff]
        %v135 = vld [vmem:[%s114 + $0x98] sm:$0xff]
        %v136 = vld [vmem:[%s114 + $0xa0] sm:$0xff]
        %v137 = vld [vmem:[%s114 + $0xa8] sm:$0xff]
        %v138 = vld [vmem:[%s114 + $0xb0] sm:$0xff]
        %v139 = vld [vmem:[%s114 + $0xb8] sm:$0xff]
        %v140 = vld [vmem:[%s114 + $0xc0] sm:$0xff]
        %v141 = vld [vmem:[%s114 + $0xc8] sm:$0xff]
        %v142 = vld [vmem:[%s114 + $0xd0] sm:$0xff]
        %v143 = vld [vmem:[%s114 + $0xd8] sm:$0xff]
        %v144 = vld [vmem:[%s114 + $0xe0] sm:$0xff]
        %v145 = vld [vmem:[%s114 + $0xe8] sm:$0xff]
        %v146 = vld [vmem:[%s114 + $0xf0] sm:$0xff]
        %v147 = vld [vmem:[%s114 + $0xf8] sm:$0xff]
        %v148 = vld [vmem:[%s114 + $0x100] sm:$0xff]
        %v149 = vld [vmem:[%s114 + $0x108] sm:$0xff]
        %v150 = vld [vmem:[%s114 + $0x110] sm:$0xff]
        %v151 = vld [vmem:[%s114 + $0x118] sm:$0xff]
        %v152 = vld [vmem:[%s114 + $0x120] sm:$0xff]
        %v153 = vld [vmem:[%s114 + $0x128] sm:$0xff]
        %v154 = vld [vmem:[%s114 + $0x130] sm:$0xff]
        %v155 = vld [vmem:[%s114 + $0x138] sm:$0xff]
        %v156 = vld [vmem:[%s114 + $0x140] sm:$0xff]
        %v157 = vld [vmem:[%s114 + $0x148] sm:$0xff]
        %v158 = vld [vmem:[%s114 + $0x150] sm:$0xff]
        %v159 = vld [vmem:[%s114 + $0x158] sm:$0xff]
        %v160 = vld [vmem:[%s114 + $0x160] sm:$0xff]
        %v161 = vld [vmem:[%s114 + $0x168] sm:$0xff]
        %v162 = vld [vmem:[%s114 + $0x170] sm:$0xff]
        %v163 = vld [vmem:[%s114 + $0x178] sm:$0xff]
        %v164 = vld [vmem:[%s114 + $0x180] sm:$0xff]
        %v165 = vld [vmem:[%s114 + $0x188] sm:$0xff]
        %v166 = vld [vmem:[%s114 + $0x190] sm:$0xff]
        %v167 = vld [vmem:[%s114 + $0x198] sm:$0xff]
        %v168 = vld [vmem:[%s114 + $0x1a0] sm:$0xff]
        %v169 = vld [vmem:[%s114 + $0x1a8] sm:$0xff]
        %v170 = vld [vmem:[%s114 + $0x1b0] sm:$0xff]
        %v171 = vld [vmem:[%s114 + $0x1b8] sm:$0xff]
        %v172 = vld [vmem:[%s114 + $0x1c0] sm:$0xff]
        %v173 = vld [vmem:[%s114 + $0x1c8] sm:$0xff]
        %v174 = vld [vmem:[%s114 + $0x1d0] sm:$0xff]
        %v175 = vld [vmem:[%s114 + $0x1d8] sm:$0xff]
        %v176 = vld [vmem:[%s114 + $0x1e0] sm:$0x1]
        %v177 = vld [vmem:[%s114 + $0x1e8] sm:$0x1]
        %v178 = vld [vmem:[%s114 + $0x1f0] sm:$0x1]
        %v179 = vld [vmem:[%s114 + $0x1f8] sm:$0x1]
        %v180 = vld [vmem:[%s114 + $0x200] sm:$0x1]
        %v181 = vld [vmem:[%s114 + $0x208] sm:$0x1]
        %v182 = vld [vmem:[%s114 + $0x210] sm:$0x1]
        %v183 = vld [vmem:[%s114 + $0x218] sm:$0x1]
        %v184 = vld [vmem:[%s114 + $0x220] sm:$0x1]
        %v185 = vld [vmem:[%s114 + $0x228] sm:$0x1]
        %v186 = vld [vmem:[%s114] sm:$0xff]
        %v187 = vld [vmem:[%s114 + $0x8] sm:$0xff]
        %v188 = vld [vmem:[%s114 + $0x10] sm:$0xff]
        %v189 = vld [vmem:[%s114 + $0x18] sm:$0xff]
        %v190 = vld [vmem:[%s114 + $0x20] sm:$0xff]
        %v191 = vld [vmem:[%s114 + $0x28] sm:$0xff]
        %v192 = vld [vmem:[%s114 + $0x30] sm:$0xff]
        %v193 = vld [vmem:[%s114 + $0x38] sm:$0xff]
        %v194 = vld [vmem:[%s114 + $0x40] sm:$0xff]
        %vm265 = vcmask 1046528
        %v266 = vrot.slane %v116, 1
        %v267 = vrot.slane %v126, 1
        %v268 = vsel %vm265, %v266, %v267
        %v269 = vrot.slane %v117, 1
        %v270 = vrot.slane %v127, 1
        %v271 = vsel %vm265, %v269, %v270
        %v272 = vrot.slane %v118, 1
        %v273 = vrot.slane %v128, 1
        %v274 = vsel %vm265, %v272, %v273
        %v275 = vrot.slane %v119, 1
        %v276 = vrot.slane %v129, 1
        %v277 = vsel %vm265, %v275, %v276
        %v278 = vrot.slane %v120, 1
        %v279 = vrot.slane %v130, 1
        %v280 = vsel %vm265, %v278, %v279
        %v281 = vrot.slane %v121, 1
        %v282 = vrot.slane %v131, 1
        %v283 = vsel %vm265, %v281, %v282
        %v284 = vrot.slane %v122, 1
        %v285 = vrot.slane %v132, 1
        %v286 = vsel %vm265, %v284, %v285
        %v287 = vrot.slane %v123, 1
        %v288 = vrot.slane %v133, 1
        %v289 = vsel %vm265, %v287, %v288
        %v290 = vrot.slane %v124, 1
        %v291 = vrot.slane %v134, 1
        %v292 = vsel %vm265, %v290, %v291
        %v293 = vrot.slane %v125, 1
        %v294 = vrot.slane %v135, 1
        %v295 = vsel %vm265, %v293, %v294
        %v296 = vrot.slane %v136, 1
        %v297 = vsel %vm265, %v267, %v296
        %v298 = vrot.slane %v137, 1
        %v299 = vsel %vm265, %v270, %v298
        %v300 = vrot.slane %v138, 1
        %v301 = vsel %vm265, %v273, %v300
        %v302 = vrot.slane %v139, 1
        %v303 = vsel %vm265, %v276, %v302
        %v304 = vrot.slane %v140, 1
        %v305 = vsel %vm265, %v279, %v304
        %v306 = vrot.slane %v141, 1
        %v307 = vsel %vm265, %v282, %v306
        %v308 = vrot.slane %v142, 1
        %v309 = vsel %vm265, %v285, %v308
        %v310 = vrot.slane %v143, 1
        %v311 = vsel %vm265, %v288, %v310
        %v312 = vrot.slane %v144, 1
        %v313 = vsel %vm265, %v291, %v312
        %v314 = vrot.slane %v145, 1
        %v315 = vsel %vm265, %v294, %v314
        %v316 = vrot.slane %v146, 1
        %v317 = vsel %vm265, %v296, %v316
        %v318 = vrot.slane %v147, 1
        %v319 = vsel %vm265, %v298, %v318
        %v320 = vrot.slane %v148, 1
        %v321 = vsel %vm265, %v300, %v320
        %v322 = vrot.slane %v149, 1
        %v323 = vsel %vm265, %v302, %v322
        %v324 = vrot.slane %v150, 1
        %v325 = vsel %vm265, %v304, %v324
        %v326 = vrot.slane %v151, 1
        %v327 = vsel %vm265, %v306, %v326
        %v328 = vrot.slane %v152, 1
        %v329 = vsel %vm265, %v308, %v328
        %v330 = vrot.slane %v153, 1
        %v331 = vsel %vm265, %v310, %v330
        %v332 = vrot.slane %v154, 1
        %v333 = vsel %vm265, %v312, %v332
        %v334 = vrot.slane %v155, 1
        %v335 = vsel %vm265, %v314, %v334
        %v336 = vrot.slane %v156, 1
        %v337 = vsel %vm265, %v316, %v336
        %v338 = vrot.slane %v157, 1
        %v339 = vsel %vm265, %v318, %v338
        %v340 = vrot.slane %v158, 1
        %v341 = vsel %vm265, %v320, %v340
        %v342 = vrot.slane %v159, 1
        %v343 = vsel %vm265, %v322, %v342
        %v344 = vrot.slane %v160, 1
        %v345 = vsel %vm265, %v324, %v344
        %v346 = vrot.slane %v161, 1
        %v347 = vsel %vm265, %v326, %v346
        %v348 = vrot.slane %v162, 1
        %v349 = vsel %vm265, %v328, %v348
        %v350 = vrot.slane %v163, 1
        %v351 = vsel %vm265, %v330, %v350
        %v352 = vrot.slane %v164, 1
        %v353 = vsel %vm265, %v332, %v352
        %v354 = vrot.slane %v165, 1
        %v355 = vsel %vm265, %v334, %v354
        %v356 = vrot.slane %v166, 1
        %v357 = vsel %vm265, %v336, %v356
        %v358 = vrot.slane %v167, 1
        %v359 = vsel %vm265, %v338, %v358
        %v360 = vrot.slane %v168, 1
        %v361 = vsel %vm265, %v340, %v360
        %v362 = vrot.slane %v169, 1
        %v363 = vsel %vm265, %v342, %v362
        %v364 = vrot.slane %v170, 1
        %v365 = vsel %vm265, %v344, %v364
        %v366 = vrot.slane %v171, 1
        %v367 = vsel %vm265, %v346, %v366
        %v368 = vrot.slane %v172, 1
        %v369 = vsel %vm265, %v348, %v368
        %v370 = vrot.slane %v173, 1
        %v371 = vsel %vm265, %v350, %v370
        %v372 = vrot.slane %v174, 1
        %v373 = vsel %vm265, %v352, %v372
        %v374 = vrot.slane %v175, 1
        %v375 = vsel %vm265, %v354, %v374
        %v376 = vrot.slane %v176, 1
        %v377 = vsel %vm265, %v356, %v376
        %v378 = vrot.slane %v177, 1
        %v379 = vsel %vm265, %v358, %v378
        %v380 = vrot.slane %v178, 1
        %v381 = vsel %vm265, %v360, %v380
        %v382 = vrot.slane %v179, 1
        %v383 = vsel %vm265, %v362, %v382
        %v384 = vrot.slane %v180, 1
        %v385 = vsel %vm265, %v364, %v384
        %v386 = vrot.slane %v181, 1
        %v387 = vsel %vm265, %v366, %v386
        %v388 = vrot.slane %v182, 1
        %v389 = vsel %vm265, %v368, %v388
        %v390 = vrot.slane %v183, 1
        %v391 = vsel %vm265, %v370, %v390
        %v392 = vrot.slane %v184, 1
        %v393 = vsel %vm265, %v372, %v392
        %v394 = vrot.slane %v185, 1
        %v395 = vsel %vm265, %v374, %v394
        %396 = vrot.lane.b32.xlu0 %v268, 104
        %v397 = vpop.permute.xlu0 %396
        %398 = vrot.lane.b32.xlu0 %v271, 104
        %v399 = vpop.permute.xlu0 %398
        %400 = vrot.lane.b32.xlu0 %v274, 104
        %v401 = vpop.permute.xlu0 %400
        %402 = vrot.lane.b32.xlu0 %v277, 104
        %v403 = vpop.permute.xlu0 %402
        %404 = vrot.lane.b32.xlu0 %v280, 104
        %v405 = vpop.permute.xlu0 %404
        %406 = vrot.lane.b32.xlu0 %v283, 104
        %v407 = vpop.permute.xlu0 %406
        %408 = vrot.lane.b32.xlu0 %v286, 104
        %v409 = vpop.permute.xlu0 %408
        %410 = vrot.lane.b32.xlu0 %v289, 104
        %v411 = vpop.permute.xlu0 %410
        %412 = vrot.lane.b32.xlu0 %v292, 104
        %v413 = vpop.permute.xlu0 %412
        %414 = vrot.lane.b32.xlu0 %v295, 104
        %v415 = vpop.permute.xlu0 %414
        %416 = vrot.lane.b32.xlu0 %v297, 104
        %v417 = vpop.permute.xlu0 %416
        %418 = vrot.lane.b32.xlu0 %v299, 104
        %v419 = vpop.permute.xlu0 %418
        %420 = vrot.lane.b32.xlu0 %v301, 104
        %v421 = vpop.permute.xlu0 %420
        %422 = vrot.lane.b32.xlu0 %v303, 104
        %v423 = vpop.permute.xlu0 %422
        %424 = vrot.lane.b32.xlu0 %v305, 104
        %v425 = vpop.permute.xlu0 %424
        %426 = vrot.lane.b32.xlu0 %v307, 104
        %v427 = vpop.permute.xlu0 %426
        %428 = vrot.lane.b32.xlu0 %v309, 104
        %v429 = vpop.permute.xlu0 %428
        %430 = vrot.lane.b32.xlu0 %v311, 104
        %v431 = vpop.permute.xlu0 %430
        %432 = vrot.lane.b32.xlu0 %v313, 104
        %v433 = vpop.permute.xlu0 %432
        %434 = vrot.lane.b32.xlu0 %v315, 104
        %v435 = vpop.permute.xlu0 %434
        %436 = vrot.lane.b32.xlu0 %v317, 104
        %v437 = vpop.permute.xlu0 %436
        %438 = vrot.lane.b32.xlu0 %v319, 104
        %v439 = vpop.permute.xlu0 %438
        %440 = vrot.lane.b32.xlu0 %v321, 104
        %v441 = vpop.permute.xlu0 %440
        %442 = vrot.lane.b32.xlu0 %v323, 104
        %v443 = vpop.permute.xlu0 %442
        %444 = vrot.lane.b32.xlu0 %v325, 104
        %v445 = vpop.permute.xlu0 %444
        %446 = vrot.lane.b32.xlu0 %v327, 104
        %v447 = vpop.permute.xlu0 %446
        %448 = vrot.lane.b32.xlu0 %v329, 104
        %v449 = vpop.permute.xlu0 %448
        %450 = vrot.lane.b32.xlu0 %v331, 104
        %v451 = vpop.permute.xlu0 %450
        %452 = vrot.lane.b32.xlu0 %v333, 104
        %v453 = vpop.permute.xlu0 %452
        %454 = vrot.lane.b32.xlu0 %v335, 104
        %v455 = vpop.permute.xlu0 %454
        %456 = vrot.lane.b32.xlu0 %v337, 104
        %v457 = vpop.permute.xlu0 %456
        %458 = vrot.lane.b32.xlu0 %v339, 104
        %v459 = vpop.permute.xlu0 %458
        %460 = vrot.lane.b32.xlu0 %v341, 104
        %v461 = vpop.permute.xlu0 %460
        %462 = vrot.lane.b32.xlu0 %v343, 104
        %v463 = vpop.permute.xlu0 %462
        %464 = vrot.lane.b32.xlu0 %v345, 104
        %v465 = vpop.permute.xlu0 %464
        %466 = vrot.lane.b32.xlu0 %v347, 104
        %v467 = vpop.permute.xlu0 %466
        %468 = vrot.lane.b32.xlu0 %v349, 104
        %v469 = vpop.permute.xlu0 %468
        %470 = vrot.lane.b32.xlu0 %v351, 104
        %v471 = vpop.permute.xlu0 %470
        %472 = vrot.lane.b32.xlu0 %v353, 104
        %v473 = vpop.permute.xlu0 %472
        %474 = vrot.lane.b32.xlu0 %v355, 104
        %v475 = vpop.permute.xlu0 %474
        %476 = vrot.lane.b32.xlu0 %v357, 104
        %v477 = vpop.permute.xlu0 %476
        %478 = vrot.lane.b32.xlu0 %v359, 104
        %v479 = vpop.permute.xlu0 %478
        %480 = vrot.lane.b32.xlu0 %v361, 104
        %v481 = vpop.permute.xlu0 %480
        %482 = vrot.lane.b32.xlu0 %v363, 104
        %v483 = vpop.permute.xlu0 %482
        %484 = vrot.lane.b32.xlu0 %v365, 104
        %v485 = vpop.permute.xlu0 %484
        %486 = vrot.lane.b32.xlu0 %v367, 104
        %v487 = vpop.permute.xlu0 %486
        %488 = vrot.lane.b32.xlu0 %v369, 104
        %v489 = vpop.permute.xlu0 %488
        %490 = vrot.lane.b32.xlu0 %v371, 104
        %v491 = vpop.permute.xlu0 %490
        %492 = vrot.lane.b32.xlu0 %v373, 104
        %v493 = vpop.permute.xlu0 %492
        %494 = vrot.lane.b32.xlu0 %v375, 104
        %v495 = vpop.permute.xlu0 %494
        %496 = vrot.lane.b32.xlu0 %v377, 104
        %v497 = vpop.permute.xlu0 %496
        %498 = vrot.lane.b32.xlu0 %v379, 104
        %v499 = vpop.permute.xlu0 %498
        %500 = vrot.lane.b32.xlu0 %v381, 104
        %v501 = vpop.permute.xlu0 %500
        %502 = vrot.lane.b32.xlu0 %v383, 104
        %v503 = vpop.permute.xlu0 %502
        %504 = vrot.lane.b32.xlu0 %v385, 104
        %v505 = vpop.permute.xlu0 %504
        %506 = vrot.lane.b32.xlu0 %v387, 104
        %v507 = vpop.permute.xlu0 %506
        %508 = vrot.lane.b32.xlu0 %v389, 104
        %v509 = vpop.permute.xlu0 %508
        %510 = vrot.lane.b32.xlu0 %v391, 104
        %v511 = vpop.permute.xlu0 %510
        %512 = vrot.lane.b32.xlu0 %v393, 104
        %v513 = vpop.permute.xlu0 %512
        %514 = vrot.lane.b32.xlu0 %v395, 104
        %v515 = vpop.permute.xlu0 %514
        %vm516 = vcmask 850944
        %v517 = vsel %vm516, %v397, %v399
        %v518 = vsel %vm516, %v399, %v401
        %v519 = vsel %vm516, %v401, %v403
        %v520 = vsel %vm516, %v403, %v405
        %v521 = vsel %vm516, %v405, %v407
        %v522 = vsel %vm516, %v407, %v409
        %v523 = vsel %vm516, %v409, %v411
        %v524 = vsel %vm516, %v411, %v413
        %v525 = vsel %vm516, %v413, %v415
        %v526 = vsel %vm516, %v417, %v419
        %v527 = vsel %vm516, %v419, %v421
        %v528 = vsel %vm516, %v421, %v423
        %v529 = vsel %vm516, %v423, %v425
        %v530 = vsel %vm516, %v425, %v427
        %v531 = vsel %vm516, %v427, %v429
        %v532 = vsel %vm516, %v429, %v431
        %v533 = vsel %vm516, %v431, %v433
        %v534 = vsel %vm516, %v433, %v435
        %v535 = vsel %vm516, %v437, %v439
        %v536 = vsel %vm516, %v439, %v441
        %v537 = vsel %vm516, %v441, %v443
        %v538 = vsel %vm516, %v443, %v445
        %v539 = vsel %vm516, %v445, %v447
        %v540 = vsel %vm516, %v447, %v449
        %v541 = vsel %vm516, %v449, %v451
        %v542 = vsel %vm516, %v451, %v453
        %v543 = vsel %vm516, %v453, %v455
        %v544 = vsel %vm516, %v457, %v459
        %v545 = vsel %vm516, %v459, %v461
        %v546 = vsel %vm516, %v461, %v463
        %v547 = vsel %vm516, %v463, %v465
        %v548 = vsel %vm516, %v465, %v467
        %v549 = vsel %vm516, %v467, %v469
        %v550 = vsel %vm516, %v469, %v471
        %v551 = vsel %vm516, %v471, %v473
        %v552 = vsel %vm516, %v473, %v475
        %v553 = vsel %vm516, %v477, %v479
        %v554 = vsel %vm516, %v479, %v481
        %v555 = vsel %vm516, %v481, %v483
        %v556 = vsel %vm516, %v483, %v485
        %v557 = vsel %vm516, %v485, %v487
        %v558 = vsel %vm516, %v487, %v489
        %v559 = vsel %vm516, %v489, %v491
        %v560 = vsel %vm516, %v491, %v493
        %v561 = vsel %vm516, %v493, %v495
        %v562 = vsel %vm516, %v497, %v499
        %v563 = vsel %vm516, %v499, %v501
        %v564 = vsel %vm516, %v501, %v503
        %v565 = vsel %vm516, %v503, %v505
        %v566 = vsel %vm516, %v505, %v507
        %v567 = vsel %vm516, %v507, %v509
        %v568 = vsel %vm516, %v509, %v511
        %v569 = vsel %vm516, %v511, %v513
        %v570 = vsel %vm516, %v513, %v515
        %v625 = vsub.f32 %v186, %v517
        %v626 = vsub.f32 %v187, %v518
        %v627 = vsub.f32 %v188, %v519
        %v628 = vsub.f32 %v189, %v520
        %v629 = vsub.f32 %v190, %v521
        %v630 = vsub.f32 %v191, %v522
        %v631 = vsub.f32 %v192, %v523
        %v632 = vsub.f32 %v193, %v524
        %v633 = vsub.f32 %v194, %v525
        %v634 = vsub.f32 %v126, %v526
        %v635 = vsub.f32 %v127, %v527
        %v636 = vsub.f32 %v128, %v528
        %v637 = vsub.f32 %v129, %v529
        %v638 = vsub.f32 %v130, %v530
        %v639 = vsub.f32 %v131, %v531
        %v640 = vsub.f32 %v132, %v532
        %v641 = vsub.f32 %v133, %v533
        %v642 = vsub.f32 %v134, %v534
        %v643 = vsub.f32 %v136, %v535
        %v644 = vsub.f32 %v137, %v536
        %v645 = vsub.f32 %v138, %v537
        %v646 = vsub.f32 %v139, %v538
        %v647 = vsub.f32 %v140, %v539
        %v648 = vsub.f32 %v141, %v540
        %v649 = vsub.f32 %v142, %v541
        %v650 = vsub.f32 %v143, %v542
        %v651 = vsub.f32 %v144, %v543
        %v652 = vsub.f32 %v146, %v544
        %v653 = vsub.f32 %v147, %v545
        %v654 = vsub.f32 %v148, %v546
        %v655 = vsub.f32 %v149, %v547
        %v656 = vsub.f32 %v150, %v548
        %v657 = vsub.f32 %v151, %v549
        %v658 = vsub.f32 %v152, %v550
        %v659 = vsub.f32 %v153, %v551
        %v660 = vsub.f32 %v154, %v552
        %v661 = vsub.f32 %v156, %v553
        %v662 = vsub.f32 %v157, %v554
        %v663 = vsub.f32 %v158, %v555
        %v664 = vsub.f32 %v159, %v556
        %v665 = vsub.f32 %v160, %v557
        %v666 = vsub.f32 %v161, %v558
        %v667 = vsub.f32 %v162, %v559
        %v668 = vsub.f32 %v163, %v560
        %v669 = vsub.f32 %v164, %v561
        %v670 = vsub.f32 %v166, %v562
        %v671 = vsub.f32 %v167, %v563
        %v672 = vsub.f32 %v168, %v564
        %v673 = vsub.f32 %v169, %v565
        %v674 = vsub.f32 %v170, %v566
        %v675 = vsub.f32 %v171, %v567
        %v676 = vsub.f32 %v172, %v568
        %v677 = vsub.f32 %v173, %v569
        %v678 = vsub.f32 %v174, %v570
        %679 = vst [vmem:[%s109] sm:$0xff] %v625
        %680 = vst [vmem:[%s109 + $0x8] sm:$0xff] %v626
        %681 = vst [vmem:[%s109 + $0x10] sm:$0xff] %v627
        %682 = vst [vmem:[%s109 + $0x18] sm:$0xff] %v628
        %683 = vst [vmem:[%s109 + $0x20] sm:$0xff] %v629
        %684 = vst [vmem:[%s109 + $0x28] sm:$0xff] %v630
        %685 = vst [vmem:[%s109 + $0x30] sm:$0xff] %v631
        %686 = vst [vmem:[%s109 + $0x38] sm:$0xff] %v632
        %687 = vst [vmem:[%s109 + $0x40] sm:$0xff] %v633
        %688 = vst [vmem:[%s109 + $0x48] sm:$0xff] %v634
        %689 = vst [vmem:[%s109 + $0x50] sm:$0xff] %v635
        %690 = vst [vmem:[%s109 + $0x58] sm:$0xff] %v636
        %691 = vst [vmem:[%s109 + $0x60] sm:$0xff] %v637
        %692 = vst [vmem:[%s109 + $0x68] sm:$0xff] %v638
        %693 = vst [vmem:[%s109 + $0x70] sm:$0xff] %v639
        %694 = vst [vmem:[%s109 + $0x78] sm:$0xff] %v640
        %695 = vst [vmem:[%s109 + $0x80] sm:$0xff] %v641
        %696 = vst [vmem:[%s109 + $0x88] sm:$0xff] %v642
        %697 = vst [vmem:[%s109 + $0x90] sm:$0xff] %v643
        %698 = vst [vmem:[%s109 + $0x98] sm:$0xff] %v644
        %699 = vst [vmem:[%s109 + $0xa0] sm:$0xff] %v645
        %700 = vst [vmem:[%s109 + $0xa8] sm:$0xff] %v646
        %701 = vst [vmem:[%s109 + $0xb0] sm:$0xff] %v647
        %702 = vst [vmem:[%s109 + $0xb8] sm:$0xff] %v648
        %703 = vst [vmem:[%s109 + $0xc0] sm:$0xff] %v649
        %704 = vst [vmem:[%s109 + $0xc8] sm:$0xff] %v650
        %705 = vst [vmem:[%s109 + $0xd0] sm:$0xff] %v651
        %706 = vst [vmem:[%s109 + $0xd8] sm:$0xff] %v652
        %707 = vst [vmem:[%s109 + $0xe0] sm:$0xff] %v653
        %708 = vst [vmem:[%s109 + $0xe8] sm:$0xff] %v654
        %709 = vst [vmem:[%s109 + $0xf0] sm:$0xff] %v655
        %710 = vst [vmem:[%s109 + $0xf8] sm:$0xff] %v656
        %711 = vst [vmem:[%s109 + $0x100] sm:$0xff] %v657
        %712 = vst [vmem:[%s109 + $0x108] sm:$0xff] %v658
        %713 = vst [vmem:[%s109 + $0x110] sm:$0xff] %v659
        %714 = vst [vmem:[%s109 + $0x118] sm:$0xff] %v660
        %715 = vst [vmem:[%s109 + $0x120] sm:$0xff] %v661
        %716 = vst [vmem:[%s109 + $0x128] sm:$0xff] %v662
        %717 = vst [vmem:[%s109 + $0x130] sm:$0xff] %v663
        %718 = vst [vmem:[%s109 + $0x138] sm:$0xff] %v664
        %719 = vst [vmem:[%s109 + $0x140] sm:$0xff] %v665
        %720 = vst [vmem:[%s109 + $0x148] sm:$0xff] %v666
        %721 = vst [vmem:[%s109 + $0x150] sm:$0xff] %v667
        %722 = vst [vmem:[%s109 + $0x158] sm:$0xff] %v668
        %723 = vst [vmem:[%s109 + $0x160] sm:$0xff] %v669
        %724 = vst [vmem:[%s109 + $0x168] sm:$0xff] %v670
        %725 = vst [vmem:[%s109 + $0x170] sm:$0xff] %v671
        %726 = vst [vmem:[%s109 + $0x178] sm:$0xff] %v672
        %727 = vst [vmem:[%s109 + $0x180] sm:$0xff] %v673
        %728 = vst [vmem:[%s109 + $0x188] sm:$0xff] %v674
        %729 = vst [vmem:[%s109 + $0x190] sm:$0xff] %v675
        %730 = vst [vmem:[%s109 + $0x198] sm:$0xff] %v676
        %731 = vst [vmem:[%s109 + $0x1a0] sm:$0xff] %v677
        %732 = vst [vmem:[%s109 + $0x1a8] sm:$0xff] %v678
        %v733 = vld [vmem:[%s114] sm:$0xff]
        %v734 = vld [vmem:[%s114 + $0x8] sm:$0xff]
        %v735 = vld [vmem:[%s114 + $0x10] sm:$0xff]
        %v736 = vld [vmem:[%s114 + $0x18] sm:$0xff]
        %v737 = vld [vmem:[%s114 + $0x20] sm:$0xff]
        %v738 = vld [vmem:[%s114 + $0x28] sm:$0xff]
        %v739 = vld [vmem:[%s114 + $0x30] sm:$0xff]
        %v740 = vld [vmem:[%s114 + $0x38] sm:$0xff]
        %v741 = vld [vmem:[%s114 + $0x40] sm:$0xff]
        %v742 = vld [vmem:[%s114 + $0x48] sm:$0xff]
        %v743 = vld [vmem:[%s114 + $0x50] sm:$0xff]
        %v744 = vld [vmem:[%s114 + $0x58] sm:$0xff]
        %v745 = vld [vmem:[%s114 + $0x60] sm:$0xff]
        %v746 = vld [vmem:[%s114 + $0x68] sm:$0xff]
        %v747 = vld [vmem:[%s114 + $0x70] sm:$0xff]
        %v748 = vld [vmem:[%s114 + $0x78] sm:$0xff]
        %v749 = vld [vmem:[%s114 + $0x80] sm:$0xff]
        %v750 = vld [vmem:[%s114 + $0x88] sm:$0xff]
        %v751 = vld [vmem:[%s114 + $0x90] sm:$0xff]
        %v752 = vld [vmem:[%s114 + $0x98] sm:$0xff]
        %v753 = vld [vmem:[%s114 + $0xa0] sm:$0xff]
        %v754 = vld [vmem:[%s114 + $0xa8] sm:$0xff]
        %v755 = vld [vmem:[%s114 + $0xb0] sm:$0xff]
        %v756 = vld [vmem:[%s114 + $0xb8] sm:$0xff]
        %v757 = vld [vmem:[%s114 + $0xc0] sm:$0xff]
        %v758 = vld [vmem:[%s114 + $0xc8] sm:$0xff]
        %v759 = vld [vmem:[%s114 + $0xd0] sm:$0xff]
        %v760 = vld [vmem:[%s114 + $0xd8] sm:$0xff]
        %v761 = vld [vmem:[%s114 + $0xe0] sm:$0xff]
        %v762 = vld [vmem:[%s114 + $0xe8] sm:$0xff]
        %v763 = vld [vmem:[%s114 + $0xf0] sm:$0xff]
        %v764 = vld [vmem:[%s114 + $0xf8] sm:$0xff]
        %v765 = vld [vmem:[%s114 + $0x100] sm:$0xff]
        %v766 = vld [vmem:[%s114 + $0x108] sm:$0xff]
        %v767 = vld [vmem:[%s114 + $0x110] sm:$0xff]
        %v768 = vld [vmem:[%s114 + $0x118] sm:$0xff]
        %v769 = vld [vmem:[%s114 + $0x120] sm:$0xff]
        %v770 = vld [vmem:[%s114 + $0x128] sm:$0xff]
        %v771 = vld [vmem:[%s114 + $0x130] sm:$0xff]
        %v772 = vld [vmem:[%s114 + $0x138] sm:$0xff]
        %v773 = vld [vmem:[%s114 + $0x140] sm:$0xff]
        %v774 = vld [vmem:[%s114 + $0x148] sm:$0xff]
        %v775 = vld [vmem:[%s114 + $0x150] sm:$0xff]
        %v776 = vld [vmem:[%s114 + $0x158] sm:$0xff]
        %v777 = vld [vmem:[%s114 + $0x160] sm:$0xff]
        %v778 = vld [vmem:[%s114 + $0x168] sm:$0xff]
        %v779 = vld [vmem:[%s114 + $0x170] sm:$0xff]
        %v780 = vld [vmem:[%s114 + $0x178] sm:$0xff]
        %v781 = vld [vmem:[%s114 + $0x180] sm:$0xff]
        %v782 = vld [vmem:[%s114 + $0x188] sm:$0xff]
        %v783 = vld [vmem:[%s114 + $0x190] sm:$0xff]
        %v784 = vld [vmem:[%s114 + $0x198] sm:$0xff]
        %v785 = vld [vmem:[%s114 + $0x1a0] sm:$0xff]
        %v786 = vld [vmem:[%s114 + $0x1a8] sm:$0xff]
        %v787 = vld [vmem:[%s114 + $0x1b0] sm:$0xff]
        %v788 = vld [vmem:[%s114 + $0x1b8] sm:$0xff]
        %v789 = vld [vmem:[%s114 + $0x1c0] sm:$0xff]
        %v790 = vld [vmem:[%s114 + $0x1c8] sm:$0xff]
        %v791 = vld [vmem:[%s114 + $0x1d0] sm:$0xff]
        %v792 = vld [vmem:[%s114 + $0x1d8] sm:$0xff]
        %v853 = vsub.f32 %v733, %v268
        %v854 = vsub.f32 %v734, %v271
        %v855 = vsub.f32 %v735, %v274
        %v856 = vsub.f32 %v736, %v277
        %v857 = vsub.f32 %v737, %v280
        %v858 = vsub.f32 %v738, %v283
        %v859 = vsub.f32 %v739, %v286
        %v860 = vsub.f32 %v740, %v289
        %v861 = vsub.f32 %v741, %v292
        %v862 = vsub.f32 %v742, %v295
        %v863 = vsub.f32 %v743, %v297
        %v864 = vsub.f32 %v744, %v299
        %v865 = vsub.f32 %v745, %v301
        %v866 = vsub.f32 %v746, %v303
        %v867 = vsub.f32 %v747, %v305
        %v868 = vsub.f32 %v748, %v307
        %v869 = vsub.f32 %v749, %v309
        %v870 = vsub.f32 %v750, %v311
        %v871 = vsub.f32 %v751, %v313
        %v872 = vsub.f32 %v752, %v315
        %v873 = vsub.f32 %v753, %v317
        %v874 = vsub.f32 %v754, %v319
        %v875 = vsub.f32 %v755, %v321
        %v876 = vsub.f32 %v756, %v323
        %v877 = vsub.f32 %v757, %v325
        %v878 = vsub.f32 %v758, %v327
        %v879 = vsub.f32 %v759, %v329
        %v880 = vsub.f32 %v760, %v331
        %v881 = vsub.f32 %v761, %v333
        %v882 = vsub.f32 %v762, %v335
        %v883 = vsub.f32 %v763, %v337
        %v884 = vsub.f32 %v764, %v339
        %v885 = vsub.f32 %v765, %v341
        %v886 = vsub.f32 %v766, %v343
        %v887 = vsub.f32 %v767, %v345
        %v888 = vsub.f32 %v768, %v347
        %v889 = vsub.f32 %v769, %v349
        %v890 = vsub.f32 %v770, %v351
        %v891 = vsub.f32 %v771, %v353
        %v892 = vsub.f32 %v772, %v355
        %v893 = vsub.f32 %v773, %v357
        %v894 = vsub.f32 %v774, %v359
        %v895 = vsub.f32 %v775, %v361
        %v896 = vsub.f32 %v776, %v363
        %v897 = vsub.f32 %v777, %v365
        %v898 = vsub.f32 %v778, %v367
        %v899 = vsub.f32 %v779, %v369
        %v900 = vsub.f32 %v780, %v371
        %v901 = vsub.f32 %v781, %v373
        %v902 = vsub.f32 %v782, %v375
        %v903 = vsub.f32 %v783, %v377
        %v904 = vsub.f32 %v784, %v379
        %v905 = vsub.f32 %v785, %v381
        %v906 = vsub.f32 %v786, %v383
        %v907 = vsub.f32 %v787, %v385
        %v908 = vsub.f32 %v788, %v387
        %v909 = vsub.f32 %v789, %v389
        %v910 = vsub.f32 %v790, %v391
        %v911 = vsub.f32 %v791, %v393
        %v912 = vsub.f32 %v792, %v395
        %973 = vrot.lane.b32.xlu0 %v853, 104
        %v974 = vpop.permute.xlu0 %973
        %975 = vrot.lane.b32.xlu0 %v854, 104
        %v976 = vpop.permute.xlu0 %975
        %977 = vrot.lane.b32.xlu0 %v855, 104
        %v978 = vpop.permute.xlu0 %977
        %979 = vrot.lane.b32.xlu0 %v856, 104
        %v980 = vpop.permute.xlu0 %979
        %981 = vrot.lane.b32.xlu0 %v857, 104
        %v982 = vpop.permute.xlu0 %981
        %983 = vrot.lane.b32.xlu0 %v858, 104
        %v984 = vpop.permute.xlu0 %983
        %985 = vrot.lane.b32.xlu0 %v859, 104
        %v986 = vpop.permute.xlu0 %985
        %987 = vrot.lane.b32.xlu0 %v860, 104
        %v988 = vpop.permute.xlu0 %987
        %989 = vrot.lane.b32.xlu0 %v861, 104
        %v990 = vpop.permute.xlu0 %989
        %991 = vrot.lane.b32.xlu0 %v862, 104
        %v992 = vpop.permute.xlu0 %991
        %993 = vrot.lane.b32.xlu0 %v863, 104
        %v994 = vpop.permute.xlu0 %993
        %995 = vrot.lane.b32.xlu0 %v864, 104
        %v996 = vpop.permute.xlu0 %995
        %997 = vrot.lane.b32.xlu0 %v865, 104
        %v998 = vpop.permute.xlu0 %997
        %999 = vrot.lane.b32.xlu0 %v866, 104
        %v1000 = vpop.permute.xlu0 %999
        %1001 = vrot.lane.b32.xlu0 %v867, 104
        %v1002 = vpop.permute.xlu0 %1001
        %1003 = vrot.lane.b32.xlu0 %v868, 104
        %v1004 = vpop.permute.xlu0 %1003
        %1005 = vrot.lane.b32.xlu0 %v869, 104
        %v1006 = vpop.permute.xlu0 %1005
        %1007 = vrot.lane.b32.xlu0 %v870, 104
        %v1008 = vpop.permute.xlu0 %1007
        %1009 = vrot.lane.b32.xlu0 %v871, 104
        %v1010 = vpop.permute.xlu0 %1009
        %1011 = vrot.lane.b32.xlu0 %v872, 104
        %v1012 = vpop.permute.xlu0 %1011
        %1013 = vrot.lane.b32.xlu0 %v873, 104
        %v1014 = vpop.permute.xlu0 %1013
        %1015 = vrot.lane.b32.xlu0 %v874, 104
        %v1016 = vpop.permute.xlu0 %1015
        %1017 = vrot.lane.b32.xlu0 %v875, 104
        %v1018 = vpop.permute.xlu0 %1017
        %1019 = vrot.lane.b32.xlu0 %v876, 104
        %v1020 = vpop.permute.xlu0 %1019
        %1021 = vrot.lane.b32.xlu0 %v877, 104
        %v1022 = vpop.permute.xlu0 %1021
        %1023 = vrot.lane.b32.xlu0 %v878, 104
        %v1024 = vpop.permute.xlu0 %1023
        %1025 = vrot.lane.b32.xlu0 %v879, 104
        %v1026 = vpop.permute.xlu0 %1025
        %1027 = vrot.lane.b32.xlu0 %v880, 104
        %v1028 = vpop.permute.xlu0 %1027
        %1029 = vrot.lane.b32.xlu0 %v881, 104
        %v1030 = vpop.permute.xlu0 %1029
        %1031 = vrot.lane.b32.xlu0 %v882, 104
        %v1032 = vpop.permute.xlu0 %1031
        %1033 = vrot.lane.b32.xlu0 %v883, 104
        %v1034 = vpop.permute.xlu0 %1033
        %1035 = vrot.lane.b32.xlu0 %v884, 104
        %v1036 = vpop.permute.xlu0 %1035
        %1037 = vrot.lane.b32.xlu0 %v885, 104
        %v1038 = vpop.permute.xlu0 %1037
        %1039 = vrot.lane.b32.xlu0 %v886, 104
        %v1040 = vpop.permute.xlu0 %1039
        %1041 = vrot.lane.b32.xlu0 %v887, 104
        %v1042 = vpop.permute.xlu0 %1041
        %1043 = vrot.lane.b32.xlu0 %v888, 104
        %v1044 = vpop.permute.xlu0 %1043
        %1045 = vrot.lane.b32.xlu0 %v889, 104
        %v1046 = vpop.permute.xlu0 %1045
        %1047 = vrot.lane.b32.xlu0 %v890, 104
        %v1048 = vpop.permute.xlu0 %1047
        %1049 = vrot.lane.b32.xlu0 %v891, 104
        %v1050 = vpop.permute.xlu0 %1049
        %1051 = vrot.lane.b32.xlu0 %v892, 104
        %v1052 = vpop.permute.xlu0 %1051
        %1053 = vrot.lane.b32.xlu0 %v893, 104
        %v1054 = vpop.permute.xlu0 %1053
        %1055 = vrot.lane.b32.xlu0 %v894, 104
        %v1056 = vpop.permute.xlu0 %1055
        %1057 = vrot.lane.b32.xlu0 %v895, 104
        %v1058 = vpop.permute.xlu0 %1057
        %1059 = vrot.lane.b32.xlu0 %v896, 104
        %v1060 = vpop.permute.xlu0 %1059
        %1061 = vrot.lane.b32.xlu0 %v897, 104
        %v1062 = vpop.permute.xlu0 %1061
        %1063 = vrot.lane.b32.xlu0 %v898, 104
        %v1064 = vpop.permute.xlu0 %1063
        %1065 = vrot.lane.b32.xlu0 %v899, 104
        %v1066 = vpop.permute.xlu0 %1065
        %1067 = vrot.lane.b32.xlu0 %v900, 104
        %v1068 = vpop.permute.xlu0 %1067
        %1069 = vrot.lane.b32.xlu0 %v901, 104
        %v1070 = vpop.permute.xlu0 %1069
        %1071 = vrot.lane.b32.xlu0 %v902, 104
        %v1072 = vpop.permute.xlu0 %1071
        %1073 = vrot.lane.b32.xlu0 %v903, 104
        %v1074 = vpop.permute.xlu0 %1073
        %1075 = vrot.lane.b32.xlu0 %v904, 104
        %v1076 = vpop.permute.xlu0 %1075
        %1077 = vrot.lane.b32.xlu0 %v905, 104
        %v1078 = vpop.permute.xlu0 %1077
        %1079 = vrot.lane.b32.xlu0 %v906, 104
        %v1080 = vpop.permute.xlu0 %1079
        %1081 = vrot.lane.b32.xlu0 %v907, 104
        %v1082 = vpop.permute.xlu0 %1081
        %1083 = vrot.lane.b32.xlu0 %v908, 104
        %v1084 = vpop.permute.xlu0 %1083
        %1085 = vrot.lane.b32.xlu0 %v909, 104
        %v1086 = vpop.permute.xlu0 %1085
        %1087 = vrot.lane.b32.xlu0 %v910, 104
        %v1088 = vpop.permute.xlu0 %1087
        %1089 = vrot.lane.b32.xlu0 %v911, 104
        %v1090 = vpop.permute.xlu0 %1089
        %1091 = vrot.lane.b32.xlu0 %v912, 104
        %v1092 = vpop.permute.xlu0 %1091
        %v1093 = vsel %vm516, %v974, %v976
        %v1094 = vsel %vm516, %v976, %v978
        %v1095 = vsel %vm516, %v978, %v980
        %v1096 = vsel %vm516, %v980, %v982
        %v1097 = vsel %vm516, %v982, %v984
        %v1098 = vsel %vm516, %v984, %v986
        %v1099 = vsel %vm516, %v986, %v988
        %v1100 = vsel %vm516, %v988, %v990
        %v1101 = vsel %vm516, %v990, %v992
        %v1102 = vsel %vm516, %v994, %v996
        %v1103 = vsel %vm516, %v996, %v998
        %v1104 = vsel %vm516, %v998, %v1000
        %v1105 = vsel %vm516, %v1000, %v1002
        %v1106 = vsel %vm516, %v1002, %v1004
        %v1107 = vsel %vm516, %v1004, %v1006
        %v1108 = vsel %vm516, %v1006, %v1008
        %v1109 = vsel %vm516, %v1008, %v1010
        %v1110 = vsel %vm516, %v1010, %v1012
        %v1111 = vsel %vm516, %v1014, %v1016
        %v1112 = vsel %vm516, %v1016, %v1018
        %v1113 = vsel %vm516, %v1018, %v1020
        %v1114 = vsel %vm516, %v1020, %v1022
        %v1115 = vsel %vm516, %v1022, %v1024
        %v1116 = vsel %vm516, %v1024, %v1026
        %v1117 = vsel %vm516, %v1026, %v1028
        %v1118 = vsel %vm516, %v1028, %v1030
        %v1119 = vsel %vm516, %v1030, %v1032
        %v1120 = vsel %vm516, %v1034, %v1036
        %v1121 = vsel %vm516, %v1036, %v1038
        %v1122 = vsel %vm516, %v1038, %v1040
        %v1123 = vsel %vm516, %v1040, %v1042
        %v1124 = vsel %vm516, %v1042, %v1044
        %v1125 = vsel %vm516, %v1044, %v1046
        %v1126 = vsel %vm516, %v1046, %v1048
        %v1127 = vsel %vm516, %v1048, %v1050
        %v1128 = vsel %vm516, %v1050, %v1052
        %v1129 = vsel %vm516, %v1054, %v1056
        %v1130 = vsel %vm516, %v1056, %v1058
        %v1131 = vsel %vm516, %v1058, %v1060
        %v1132 = vsel %vm516, %v1060, %v1062
        %v1133 = vsel %vm516, %v1062, %v1064
        %v1134 = vsel %vm516, %v1064, %v1066
        %v1135 = vsel %vm516, %v1066, %v1068
        %v1136 = vsel %vm516, %v1068, %v1070
        %v1137 = vsel %vm516, %v1070, %v1072
        %v1138 = vsel %vm516, %v1074, %v1076
        %v1139 = vsel %vm516, %v1076, %v1078
        %v1140 = vsel %vm516, %v1078, %v1080
        %v1141 = vsel %vm516, %v1080, %v1082
        %v1142 = vsel %vm516, %v1082, %v1084
        %v1143 = vsel %vm516, %v1084, %v1086
        %v1144 = vsel %vm516, %v1086, %v1088
        %v1145 = vsel %vm516, %v1088, %v1090
        %v1146 = vsel %vm516, %v1090, %v1092
        %s1201 = scalar_lea.vmem %s109, 432 [#allocation2]
        %1202 = vst [vmem:[%s1201] sm:$0xff] %v1093
        %1203 = vst [vmem:[%s1201 + $0x8] sm:$0xff] %v1094
        %1204 = vst [vmem:[%s1201 + $0x10] sm:$0xff] %v1095
        %1205 = vst [vmem:[%s1201 + $0x18] sm:$0xff] %v1096
        %1206 = vst [vmem:[%s1201 + $0x20] sm:$0xff] %v1097
        %1207 = vst [vmem:[%s1201 + $0x28] sm:$0xff] %v1098
        %1208 = vst [vmem:[%s1201 + $0x30] sm:$0xff] %v1099
        %1209 = vst [vmem:[%s1201 + $0x38] sm:$0xff] %v1100
        %1210 = vst [vmem:[%s1201 + $0x40] sm:$0xff] %v1101
        %1211 = vst [vmem:[%s1201 + $0x48] sm:$0xff] %v1102
        %1212 = vst [vmem:[%s1201 + $0x50] sm:$0xff] %v1103
        %1213 = vst [vmem:[%s1201 + $0x58] sm:$0xff] %v1104
        %1214 = vst [vmem:[%s1201 + $0x60] sm:$0xff] %v1105
        %1215 = vst [vmem:[%s1201 + $0x68] sm:$0xff] %v1106
        %1216 = vst [vmem:[%s1201 + $0x70] sm:$0xff] %v1107
        %1217 = vst [vmem:[%s1201 + $0x78] sm:$0xff] %v1108
        %1218 = vst [vmem:[%s1201 + $0x80] sm:$0xff] %v1109
        %1219 = vst [vmem:[%s1201 + $0x88] sm:$0xff] %v1110
        %1220 = vst [vmem:[%s1201 + $0x90] sm:$0xff] %v1111
        %1221 = vst [vmem:[%s1201 + $0x98] sm:$0xff] %v1112
        %1222 = vst [vmem:[%s1201 + $0xa0] sm:$0xff] %v1113
        %1223 = vst [vmem:[%s1201 + $0xa8] sm:$0xff] %v1114
        %1224 = vst [vmem:[%s1201 + $0xb0] sm:$0xff] %v1115
        %1225 = vst [vmem:[%s1201 + $0xb8] sm:$0xff] %v1116
        %1226 = vst [vmem:[%s1201 + $0xc0] sm:$0xff] %v1117
        %1227 = vst [vmem:[%s1201 + $0xc8] sm:$0xff] %v1118
        %1228 = vst [vmem:[%s1201 + $0xd0] sm:$0xff] %v1119
        %1229 = vst [vmem:[%s1201 + $0xd8] sm:$0xff] %v1120
        %1230 = vst [vmem:[%s1201 + $0xe0] sm:$0xff] %v1121
        %1231 = vst [vmem:[%s1201 + $0xe8] sm:$0xff] %v1122
        %1232 = vst [vmem:[%s1201 + $0xf0] sm:$0xff] %v1123
        %1233 = vst [vmem:[%s1201 + $0xf8] sm:$0xff] %v1124
        %1234 = vst [vmem:[%s1201 + $0x100] sm:$0xff] %v1125
        %1235 = vst [vmem:[%s1201 + $0x108] sm:$0xff] %v1126
        %1236 = vst [vmem:[%s1201 + $0x110] sm:$0xff] %v1127
        %1237 = vst [vmem:[%s1201 + $0x118] sm:$0xff] %v1128
        %1238 = vst [vmem:[%s1201 + $0x120] sm:$0xff] %v1129
        %1239 = vst [vmem:[%s1201 + $0x128] sm:$0xff] %v1130
        %1240 = vst [vmem:[%s1201 + $0x130] sm:$0xff] %v1131
        %1241 = vst [vmem:[%s1201 + $0x138] sm:$0xff] %v1132
        %1242 = vst [vmem:[%s1201 + $0x140] sm:$0xff] %v1133
        %1243 = vst [vmem:[%s1201 + $0x148] sm:$0xff] %v1134
        %1244 = vst [vmem:[%s1201 + $0x150] sm:$0xff] %v1135
        %1245 = vst [vmem:[%s1201 + $0x158] sm:$0xff] %v1136
        %1246 = vst [vmem:[%s1201 + $0x160] sm:$0xff] %v1137
        %1247 = vst [vmem:[%s1201 + $0x168] sm:$0xff] %v1138
        %1248 = vst [vmem:[%s1201 + $0x170] sm:$0xff] %v1139
        %1249 = vst [vmem:[%s1201 + $0x178] sm:$0xff] %v1140
        %1250 = vst [vmem:[%s1201 + $0x180] sm:$0xff] %v1141
        %1251 = vst [vmem:[%s1201 + $0x188] sm:$0xff] %v1142
        %1252 = vst [vmem:[%s1201 + $0x190] sm:$0xff] %v1143
        %1253 = vst [vmem:[%s1201 + $0x198] sm:$0xff] %v1144
        %1254 = vst [vmem:[%s1201 + $0x1a0] sm:$0xff] %v1145
        %1255 = vst [vmem:[%s1201 + $0x1a8] sm:$0xff] %v1146
        %v1256 = vld [vmem:[%s114] sm:$0xff]
        %v1257 = vld [vmem:[%s114 + $0x8] sm:$0xff]
        %v1258 = vld [vmem:[%s114 + $0x10] sm:$0xff]
        %v1259 = vld [vmem:[%s114 + $0x18] sm:$0xff]
        %v1260 = vld [vmem:[%s114 + $0x20] sm:$0xff]
        %v1261 = vld [vmem:[%s114 + $0x28] sm:$0xff]
        %v1262 = vld [vmem:[%s114 + $0x30] sm:$0xff]
        %v1263 = vld [vmem:[%s114 + $0x38] sm:$0xff]
        %v1264 = vld [vmem:[%s114 + $0x40] sm:$0xff]
        %v1265 = vld [vmem:[%s114 + $0x48] sm:$0xff]
        %v1266 = vld [vmem:[%s114 + $0x50] sm:$0xff]
        %v1267 = vld [vmem:[%s114 + $0x58] sm:$0xff]
        %v1268 = vld [vmem:[%s114 + $0x60] sm:$0xff]
        %v1269 = vld [vmem:[%s114 + $0x68] sm:$0xff]
        %v1270 = vld [vmem:[%s114 + $0x70] sm:$0xff]
        %v1271 = vld [vmem:[%s114 + $0x78] sm:$0xff]
        %v1272 = vld [vmem:[%s114 + $0x80] sm:$0xff]
        %v1273 = vld [vmem:[%s114 + $0x88] sm:$0xff]
        %v1274 = vld [vmem:[%s114 + $0x90] sm:$0xff]
        %v1275 = vld [vmem:[%s114 + $0x98] sm:$0xff]
        %v1276 = vld [vmem:[%s114 + $0xa0] sm:$0xff]
        %v1277 = vld [vmem:[%s114 + $0xa8] sm:$0xff]
        %v1278 = vld [vmem:[%s114 + $0xb0] sm:$0xff]
        %v1279 = vld [vmem:[%s114 + $0xb8] sm:$0xff]
        %v1280 = vld [vmem:[%s114 + $0xc0] sm:$0xff]
        %v1281 = vld [vmem:[%s114 + $0xc8] sm:$0xff]
        %v1282 = vld [vmem:[%s114 + $0xd0] sm:$0xff]
        %v1283 = vld [vmem:[%s114 + $0xd8] sm:$0xff]
        %v1284 = vld [vmem:[%s114 + $0xe0] sm:$0xff]
        %v1285 = vld [vmem:[%s114 + $0xe8] sm:$0xff]
        %v1286 = vld [vmem:[%s114 + $0xf0] sm:$0xff]
        %v1287 = vld [vmem:[%s114 + $0xf8] sm:$0xff]
        %v1288 = vld [vmem:[%s114 + $0x100] sm:$0xff]
        %v1289 = vld [vmem:[%s114 + $0x108] sm:$0xff]
        %v1290 = vld [vmem:[%s114 + $0x110] sm:$0xff]
        %v1291 = vld [vmem:[%s114 + $0x118] sm:$0xff]
        %v1292 = vld [vmem:[%s114 + $0x120] sm:$0xff]
        %v1293 = vld [vmem:[%s114 + $0x128] sm:$0xff]
        %v1294 = vld [vmem:[%s114 + $0x130] sm:$0xff]
        %v1295 = vld [vmem:[%s114 + $0x138] sm:$0xff]
        %v1296 = vld [vmem:[%s114 + $0x140] sm:$0xff]
        %v1297 = vld [vmem:[%s114 + $0x148] sm:$0xff]
        %v1298 = vld [vmem:[%s114 + $0x150] sm:$0xff]
        %v1299 = vld [vmem:[%s114 + $0x158] sm:$0xff]
        %v1300 = vld [vmem:[%s114 + $0x160] sm:$0xff]
        %v1301 = vld [vmem:[%s114 + $0x168] sm:$0xff]
        %v1302 = vld [vmem:[%s114 + $0x170] sm:$0xff]
        %v1303 = vld [vmem:[%s114 + $0x178] sm:$0xff]
        %v1304 = vld [vmem:[%s114 + $0x180] sm:$0xff]
        %v1305 = vld [vmem:[%s114 + $0x188] sm:$0xff]
        %v1306 = vld [vmem:[%s114 + $0x190] sm:$0xff]
        %v1307 = vld [vmem:[%s114 + $0x198] sm:$0xff]
        %v1308 = vld [vmem:[%s114 + $0x1a0] sm:$0xff]
        %v1309 = vld [vmem:[%s114 + $0x1a8] sm:$0xff]
        %v1310 = vld [vmem:[%s114 + $0x1b0] sm:$0xff]
        %v1311 = vld [vmem:[%s114 + $0x1b8] sm:$0xff]
        %v1312 = vld [vmem:[%s114 + $0x1c0] sm:$0xff]
        %v1313 = vld [vmem:[%s114 + $0x1c8] sm:$0xff]
        %v1314 = vld [vmem:[%s114 + $0x1d0] sm:$0xff]
        %v1315 = vld [vmem:[%s114 + $0x1d8] sm:$0xff]
        %1316 = vrot.lane.b32.xlu0 %v268, 24
        %v1317 = vpop.permute.xlu0 %1316
        %1318 = vrot.lane.b32.xlu0 %v271, 24
        %v1319 = vpop.permute.xlu0 %1318
        %1320 = vrot.lane.b32.xlu0 %v274, 24
        %v1321 = vpop.permute.xlu0 %1320
        %1322 = vrot.lane.b32.xlu0 %v277, 24
        %v1323 = vpop.permute.xlu0 %1322
        %1324 = vrot.lane.b32.xlu0 %v280, 24
        %v1325 = vpop.permute.xlu0 %1324
        %1326 = vrot.lane.b32.xlu0 %v283, 24
        %v1327 = vpop.permute.xlu0 %1326
        %1328 = vrot.lane.b32.xlu0 %v286, 24
        %v1329 = vpop.permute.xlu0 %1328
        %1330 = vrot.lane.b32.xlu0 %v289, 24
        %v1331 = vpop.permute.xlu0 %1330
        %1332 = vrot.lane.b32.xlu0 %v292, 24
        %v1333 = vpop.permute.xlu0 %1332
        %1334 = vrot.lane.b32.xlu0 %v295, 24
        %v1335 = vpop.permute.xlu0 %1334
        %1336 = vrot.lane.b32.xlu0 %v297, 24
        %v1337 = vpop.permute.xlu0 %1336
        %1338 = vrot.lane.b32.xlu0 %v299, 24
        %v1339 = vpop.permute.xlu0 %1338
        %1340 = vrot.lane.b32.xlu0 %v301, 24
        %v1341 = vpop.permute.xlu0 %1340
        %1342 = vrot.lane.b32.xlu0 %v303, 24
        %v1343 = vpop.permute.xlu0 %1342
        %1344 = vrot.lane.b32.xlu0 %v305, 24
        %v1345 = vpop.permute.xlu0 %1344
        %1346 = vrot.lane.b32.xlu0 %v307, 24
        %v1347 = vpop.permute.xlu0 %1346
        %1348 = vrot.lane.b32.xlu0 %v309, 24
        %v1349 = vpop.permute.xlu0 %1348
        %1350 = vrot.lane.b32.xlu0 %v311, 24
        %v1351 = vpop.permute.xlu0 %1350
        %1352 = vrot.lane.b32.xlu0 %v313, 24
        %v1353 = vpop.permute.xlu0 %1352
        %1354 = vrot.lane.b32.xlu0 %v315, 24
        %v1355 = vpop.permute.xlu0 %1354
        %1356 = vrot.lane.b32.xlu0 %v317, 24
        %v1357 = vpop.permute.xlu0 %1356
        %1358 = vrot.lane.b32.xlu0 %v319, 24
        %v1359 = vpop.permute.xlu0 %1358
        %1360 = vrot.lane.b32.xlu0 %v321, 24
        %v1361 = vpop.permute.xlu0 %1360
        %1362 = vrot.lane.b32.xlu0 %v323, 24
        %v1363 = vpop.permute.xlu0 %1362
        %1364 = vrot.lane.b32.xlu0 %v325, 24
        %v1365 = vpop.permute.xlu0 %1364
        %1366 = vrot.lane.b32.xlu0 %v327, 24
        %v1367 = vpop.permute.xlu0 %1366
        %1368 = vrot.lane.b32.xlu0 %v329, 24
        %v1369 = vpop.permute.xlu0 %1368
        %1370 = vrot.lane.b32.xlu0 %v331, 24
        %v1371 = vpop.permute.xlu0 %1370
        %1372 = vrot.lane.b32.xlu0 %v333, 24
        %v1373 = vpop.permute.xlu0 %1372
        %1374 = vrot.lane.b32.xlu0 %v335, 24
        %v1375 = vpop.permute.xlu0 %1374
        %1376 = vrot.lane.b32.xlu0 %v337, 24
        %v1377 = vpop.permute.xlu0 %1376
        %1378 = vrot.lane.b32.xlu0 %v339, 24
        %v1379 = vpop.permute.xlu0 %1378
        %1380 = vrot.lane.b32.xlu0 %v341, 24
        %v1381 = vpop.permute.xlu0 %1380
        %1382 = vrot.lane.b32.xlu0 %v343, 24
        %v1383 = vpop.permute.xlu0 %1382
        %1384 = vrot.lane.b32.xlu0 %v345, 24
        %v1385 = vpop.permute.xlu0 %1384
        %1386 = vrot.lane.b32.xlu0 %v347, 24
        %v1387 = vpop.permute.xlu0 %1386
        %1388 = vrot.lane.b32.xlu0 %v349, 24
        %v1389 = vpop.permute.xlu0 %1388
        %1390 = vrot.lane.b32.xlu0 %v351, 24
        %v1391 = vpop.permute.xlu0 %1390
        %1392 = vrot.lane.b32.xlu0 %v353, 24
        %v1393 = vpop.permute.xlu0 %1392
        %1394 = vrot.lane.b32.xlu0 %v355, 24
        %v1395 = vpop.permute.xlu0 %1394
        %1396 = vrot.lane.b32.xlu0 %v357, 24
        %v1397 = vpop.permute.xlu0 %1396
        %1398 = vrot.lane.b32.xlu0 %v359, 24
        %v1399 = vpop.permute.xlu0 %1398
        %1400 = vrot.lane.b32.xlu0 %v361, 24
        %v1401 = vpop.permute.xlu0 %1400
        %1402 = vrot.lane.b32.xlu0 %v363, 24
        %v1403 = vpop.permute.xlu0 %1402
        %1404 = vrot.lane.b32.xlu0 %v365, 24
        %v1405 = vpop.permute.xlu0 %1404
        %1406 = vrot.lane.b32.xlu0 %v367, 24
        %v1407 = vpop.permute.xlu0 %1406
        %1408 = vrot.lane.b32.xlu0 %v369, 24
        %v1409 = vpop.permute.xlu0 %1408
        %1410 = vrot.lane.b32.xlu0 %v371, 24
        %v1411 = vpop.permute.xlu0 %1410
        %1412 = vrot.lane.b32.xlu0 %v373, 24
        %v1413 = vpop.permute.xlu0 %1412
        %1414 = vrot.lane.b32.xlu0 %v375, 24
        %v1415 = vpop.permute.xlu0 %1414
        %1416 = vrot.lane.b32.xlu0 %v377, 24
        %v1417 = vpop.permute.xlu0 %1416
        %1418 = vrot.lane.b32.xlu0 %v379, 24
        %v1419 = vpop.permute.xlu0 %1418
        %1420 = vrot.lane.b32.xlu0 %v381, 24
        %v1421 = vpop.permute.xlu0 %1420
        %1422 = vrot.lane.b32.xlu0 %v383, 24
        %v1423 = vpop.permute.xlu0 %1422
        %1424 = vrot.lane.b32.xlu0 %v385, 24
        %v1425 = vpop.permute.xlu0 %1424
        %1426 = vrot.lane.b32.xlu0 %v387, 24
        %v1427 = vpop.permute.xlu0 %1426
        %1428 = vrot.lane.b32.xlu0 %v389, 24
        %v1429 = vpop.permute.xlu0 %1428
        %1430 = vrot.lane.b32.xlu0 %v391, 24
        %v1431 = vpop.permute.xlu0 %1430
        %1432 = vrot.lane.b32.xlu0 %v393, 24
        %v1433 = vpop.permute.xlu0 %1432
        %1434 = vrot.lane.b32.xlu0 %v395, 24
        %v1435 = vpop.permute.xlu0 %1434
        %vm1436 = vcmask 195584
        %v1437 = vsel %vm1436, %v1317, %v1319
        %v1438 = vsel %vm1436, %v1319, %v1321
        %v1439 = vsel %vm1436, %v1321, %v1323
        %v1440 = vsel %vm1436, %v1323, %v1325
        %v1441 = vsel %vm1436, %v1325, %v1327
        %v1442 = vsel %vm1436, %v1327, %v1329
        %v1443 = vsel %vm1436, %v1329, %v1331
        %v1444 = vsel %vm1436, %v1331, %v1333
        %v1445 = vsel %vm1436, %v1333, %v1335
        %v1446 = vsel %vm1436, %v1337, %v1339
        %v1447 = vsel %vm1436, %v1339, %v1341
        %v1448 = vsel %vm1436, %v1341, %v1343
        %v1449 = vsel %vm1436, %v1343, %v1345
        %v1450 = vsel %vm1436, %v1345, %v1347
        %v1451 = vsel %vm1436, %v1347, %v1349
        %v1452 = vsel %vm1436, %v1349, %v1351
        %v1453 = vsel %vm1436, %v1351, %v1353
        %v1454 = vsel %vm1436, %v1353, %v1355
        %v1455 = vsel %vm1436, %v1357, %v1359
        %v1456 = vsel %vm1436, %v1359, %v1361
        %v1457 = vsel %vm1436, %v1361, %v1363
        %v1458 = vsel %vm1436, %v1363, %v1365
        %v1459 = vsel %vm1436, %v1365, %v1367
        %v1460 = vsel %vm1436, %v1367, %v1369
        %v1461 = vsel %vm1436, %v1369, %v1371
        %v1462 = vsel %vm1436, %v1371, %v1373
        %v1463 = vsel %vm1436, %v1373, %v1375
        %v1464 = vsel %vm1436, %v1377, %v1379
        %v1465 = vsel %vm1436, %v1379, %v1381
        %v1466 = vsel %vm1436, %v1381, %v1383
        %v1467 = vsel %vm1436, %v1383, %v1385
        %v1468 = vsel %vm1436, %v1385, %v1387
        %v1469 = vsel %vm1436, %v1387, %v1389
        %v1470 = vsel %vm1436, %v1389, %v1391
        %v1471 = vsel %vm1436, %v1391, %v1393
        %v1472 = vsel %vm1436, %v1393, %v1395
        %v1473 = vsel %vm1436, %v1397, %v1399
        %v1474 = vsel %vm1436, %v1399, %v1401
        %v1475 = vsel %vm1436, %v1401, %v1403
        %v1476 = vsel %vm1436, %v1403, %v1405
        %v1477 = vsel %vm1436, %v1405, %v1407
        %v1478 = vsel %vm1436, %v1407, %v1409
        %v1479 = vsel %vm1436, %v1409, %v1411
        %v1480 = vsel %vm1436, %v1411, %v1413
        %v1481 = vsel %vm1436, %v1413, %v1415
        %v1482 = vsel %vm1436, %v1417, %v1419
        %v1483 = vsel %vm1436, %v1419, %v1421
        %v1484 = vsel %vm1436, %v1421, %v1423
        %v1485 = vsel %vm1436, %v1423, %v1425
        %v1486 = vsel %vm1436, %v1425, %v1427
        %v1487 = vsel %vm1436, %v1427, %v1429
        %v1488 = vsel %vm1436, %v1429, %v1431
        %v1489 = vsel %vm1436, %v1431, %v1433
        %v1490 = vsel %vm1436, %v1433, %v1435
        %v1551 = vsub.f32 %v1256, %v1317
        %v1552 = vsub.f32 %v1257, %v1437
        %v1553 = vsub.f32 %v1258, %v1438
        %v1554 = vsub.f32 %v1259, %v1439
        %v1555 = vsub.f32 %v1260, %v1440
        %v1556 = vsub.f32 %v1261, %v1441
        %v1557 = vsub.f32 %v1262, %v1442
        %v1558 = vsub.f32 %v1263, %v1443
        %v1559 = vsub.f32 %v1264, %v1444
        %v1560 = vsub.f32 %v1265, %v1445
        %v1561 = vsub.f32 %v1266, %v1337
        %v1562 = vsub.f32 %v1267, %v1446
        %v1563 = vsub.f32 %v1268, %v1447
        %v1564 = vsub.f32 %v1269, %v1448
        %v1565 = vsub.f32 %v1270, %v1449
        %v1566 = vsub.f32 %v1271, %v1450
        %v1567 = vsub.f32 %v1272, %v1451
        %v1568 = vsub.f32 %v1273, %v1452
        %v1569 = vsub.f32 %v1274, %v1453
        %v1570 = vsub.f32 %v1275, %v1454
        %v1571 = vsub.f32 %v1276, %v1357
        %v1572 = vsub.f32 %v1277, %v1455
        %v1573 = vsub.f32 %v1278, %v1456
        %v1574 = vsub.f32 %v1279, %v1457
        %v1575 = vsub.f32 %v1280, %v1458
        %v1576 = vsub.f32 %v1281, %v1459
        %v1577 = vsub.f32 %v1282, %v1460
        %v1578 = vsub.f32 %v1283, %v1461
        %v1579 = vsub.f32 %v1284, %v1462
        %v1580 = vsub.f32 %v1285, %v1463
        %v1581 = vsub.f32 %v1286, %v1377
        %v1582 = vsub.f32 %v1287, %v1464
        %v1583 = vsub.f32 %v1288, %v1465
        %v1584 = vsub.f32 %v1289, %v1466
        %v1585 = vsub.f32 %v1290, %v1467
        %v1586 = vsub.f32 %v1291, %v1468
        %v1587 = vsub.f32 %v1292, %v1469
        %v1588 = vsub.f32 %v1293, %v1470
        %v1589 = vsub.f32 %v1294, %v1471
        %v1590 = vsub.f32 %v1295, %v1472
        %v1591 = vsub.f32 %v1296, %v1397
        %v1592 = vsub.f32 %v1297, %v1473
        %v1593 = vsub.f32 %v1298, %v1474
        %v1594 = vsub.f32 %v1299, %v1475
        %v1595 = vsub.f32 %v1300, %v1476
        %v1596 = vsub.f32 %v1301, %v1477
        %v1597 = vsub.f32 %v1302, %v1478
        %v1598 = vsub.f32 %v1303, %v1479
        %v1599 = vsub.f32 %v1304, %v1480
        %v1600 = vsub.f32 %v1305, %v1481
        %v1601 = vsub.f32 %v1306, %v1417
        %v1602 = vsub.f32 %v1307, %v1482
        %v1603 = vsub.f32 %v1308, %v1483
        %v1604 = vsub.f32 %v1309, %v1484
        %v1605 = vsub.f32 %v1310, %v1485
        %v1606 = vsub.f32 %v1311, %v1486
        %v1607 = vsub.f32 %v1312, %v1487
        %v1608 = vsub.f32 %v1313, %v1488
        %v1609 = vsub.f32 %v1314, %v1489
        %v1610 = vsub.f32 %v1315, %v1490
        %1671 = vrot.lane.b32.xlu0 %v1551, 80
        %v1672 = vpop.permute.xlu0 %1671
        %1673 = vrot.lane.b32.xlu0 %v1552, 80
        %v1674 = vpop.permute.xlu0 %1673
        %1675 = vrot.lane.b32.xlu0 %v1553, 80
        %v1676 = vpop.permute.xlu0 %1675
        %1677 = vrot.lane.b32.xlu0 %v1554, 80
        %v1678 = vpop.permute.xlu0 %1677
        %1679 = vrot.lane.b32.xlu0 %v1555, 80
        %v1680 = vpop.permute.xlu0 %1679
        %1681 = vrot.lane.b32.xlu0 %v1556, 80
        %v1682 = vpop.permute.xlu0 %1681
        %1683 = vrot.lane.b32.xlu0 %v1557, 80
        %v1684 = vpop.permute.xlu0 %1683
        %1685 = vrot.lane.b32.xlu0 %v1558, 80
        %v1686 = vpop.permute.xlu0 %1685
        %1687 = vrot.lane.b32.xlu0 %v1559, 80
        %v1688 = vpop.permute.xlu0 %1687
        %1689 = vrot.lane.b32.xlu0 %v1560, 80
        %v1690 = vpop.permute.xlu0 %1689
        %1691 = vrot.lane.b32.xlu0 %v1561, 80
        %v1692 = vpop.permute.xlu0 %1691
        %1693 = vrot.lane.b32.xlu0 %v1562, 80
        %v1694 = vpop.permute.xlu0 %1693
        %1695 = vrot.lane.b32.xlu0 %v1563, 80
        %v1696 = vpop.permute.xlu0 %1695
        %1697 = vrot.lane.b32.xlu0 %v1564, 80
        %v1698 = vpop.permute.xlu0 %1697
        %1699 = vrot.lane.b32.xlu0 %v1565, 80
        %v1700 = vpop.permute.xlu0 %1699
        %1701 = vrot.lane.b32.xlu0 %v1566, 80
        %v1702 = vpop.permute.xlu0 %1701
        %1703 = vrot.lane.b32.xlu0 %v1567, 80
        %v1704 = vpop.permute.xlu0 %1703
        %1705 = vrot.lane.b32.xlu0 %v1568, 80
        %v1706 = vpop.permute.xlu0 %1705
        %1707 = vrot.lane.b32.xlu0 %v1569, 80
        %v1708 = vpop.permute.xlu0 %1707
        %1709 = vrot.lane.b32.xlu0 %v1570, 80
        %v1710 = vpop.permute.xlu0 %1709
        %1711 = vrot.lane.b32.xlu0 %v1571, 80
        %v1712 = vpop.permute.xlu0 %1711
        %1713 = vrot.lane.b32.xlu0 %v1572, 80
        %v1714 = vpop.permute.xlu0 %1713
        %1715 = vrot.lane.b32.xlu0 %v1573, 80
        %v1716 = vpop.permute.xlu0 %1715
        %1717 = vrot.lane.b32.xlu0 %v1574, 80
        %v1718 = vpop.permute.xlu0 %1717
        %1719 = vrot.lane.b32.xlu0 %v1575, 80
        %v1720 = vpop.permute.xlu0 %1719
        %1721 = vrot.lane.b32.xlu0 %v1576, 80
        %v1722 = vpop.permute.xlu0 %1721
        %1723 = vrot.lane.b32.xlu0 %v1577, 80
        %v1724 = vpop.permute.xlu0 %1723
        %1725 = vrot.lane.b32.xlu0 %v1578, 80
        %v1726 = vpop.permute.xlu0 %1725
        %1727 = vrot.lane.b32.xlu0 %v1579, 80
        %v1728 = vpop.permute.xlu0 %1727
        %1729 = vrot.lane.b32.xlu0 %v1580, 80
        %v1730 = vpop.permute.xlu0 %1729
        %1731 = vrot.lane.b32.xlu0 %v1581, 80
        %v1732 = vpop.permute.xlu0 %1731
        %1733 = vrot.lane.b32.xlu0 %v1582, 80
        %v1734 = vpop.permute.xlu0 %1733
        %1735 = vrot.lane.b32.xlu0 %v1583, 80
        %v1736 = vpop.permute.xlu0 %1735
        %1737 = vrot.lane.b32.xlu0 %v1584, 80
        %v1738 = vpop.permute.xlu0 %1737
        %1739 = vrot.lane.b32.xlu0 %v1585, 80
        %v1740 = vpop.permute.xlu0 %1739
        %1741 = vrot.lane.b32.xlu0 %v1586, 80
        %v1742 = vpop.permute.xlu0 %1741
        %1743 = vrot.lane.b32.xlu0 %v1587, 80
        %v1744 = vpop.permute.xlu0 %1743
        %1745 = vrot.lane.b32.xlu0 %v1588, 80
        %v1746 = vpop.permute.xlu0 %1745
        %1747 = vrot.lane.b32.xlu0 %v1589, 80
        %v1748 = vpop.permute.xlu0 %1747
        %1749 = vrot.lane.b32.xlu0 %v1590, 80
        %v1750 = vpop.permute.xlu0 %1749
        %1751 = vrot.lane.b32.xlu0 %v1591, 80
        %v1752 = vpop.permute.xlu0 %1751
        %1753 = vrot.lane.b32.xlu0 %v1592, 80
        %v1754 = vpop.permute.xlu0 %1753
        %1755 = vrot.lane.b32.xlu0 %v1593, 80
        %v1756 = vpop.permute.xlu0 %1755
        %1757 = vrot.lane.b32.xlu0 %v1594, 80
        %v1758 = vpop.permute.xlu0 %1757
        %1759 = vrot.lane.b32.xlu0 %v1595, 80
        %v1760 = vpop.permute.xlu0 %1759
        %1761 = vrot.lane.b32.xlu0 %v1596, 80
        %v1762 = vpop.permute.xlu0 %1761
        %1763 = vrot.lane.b32.xlu0 %v1597, 80
        %v1764 = vpop.permute.xlu0 %1763
        %1765 = vrot.lane.b32.xlu0 %v1598, 80
        %v1766 = vpop.permute.xlu0 %1765
        %1767 = vrot.lane.b32.xlu0 %v1599, 80
        %v1768 = vpop.permute.xlu0 %1767
        %1769 = vrot.lane.b32.xlu0 %v1600, 80
        %v1770 = vpop.permute.xlu0 %1769
        %1771 = vrot.lane.b32.xlu0 %v1601, 80
        %v1772 = vpop.permute.xlu0 %1771
        %1773 = vrot.lane.b32.xlu0 %v1602, 80
        %v1774 = vpop.permute.xlu0 %1773
        %1775 = vrot.lane.b32.xlu0 %v1603, 80
        %v1776 = vpop.permute.xlu0 %1775
        %1777 = vrot.lane.b32.xlu0 %v1604, 80
        %v1778 = vpop.permute.xlu0 %1777
        %1779 = vrot.lane.b32.xlu0 %v1605, 80
        %v1780 = vpop.permute.xlu0 %1779
        %1781 = vrot.lane.b32.xlu0 %v1606, 80
        %v1782 = vpop.permute.xlu0 %1781
        %1783 = vrot.lane.b32.xlu0 %v1607, 80
        %v1784 = vpop.permute.xlu0 %1783
        %1785 = vrot.lane.b32.xlu0 %v1608, 80
        %v1786 = vpop.permute.xlu0 %1785
        %1787 = vrot.lane.b32.xlu0 %v1609, 80
        %v1788 = vpop.permute.xlu0 %1787
        %1789 = vrot.lane.b32.xlu0 %v1610, 80
        %v1790 = vpop.permute.xlu0 %1789
        %vm1791 = vcmask 654336
        %v1792 = vsel %vm1791, %v1672, %v1674
        %v1793 = vsel %vm1791, %v1674, %v1676
        %v1794 = vsel %vm1791, %v1676, %v1678
        %v1795 = vsel %vm1791, %v1678, %v1680
        %v1796 = vsel %vm1791, %v1680, %v1682
        %v1797 = vsel %vm1791, %v1682, %v1684
        %v1798 = vsel %vm1791, %v1684, %v1686
        %v1799 = vsel %vm1791, %v1686, %v1688
        %v1800 = vsel %vm1791, %v1688, %v1690
        %v1801 = vsel %vm1791, %v1692, %v1694
        %v1802 = vsel %vm1791, %v1694, %v1696
        %v1803 = vsel %vm1791, %v1696, %v1698
        %v1804 = vsel %vm1791, %v1698, %v1700
        %v1805 = vsel %vm1791, %v1700, %v1702
        %v1806 = vsel %vm1791, %v1702, %v1704
        %v1807 = vsel %vm1791, %v1704, %v1706
        %v1808 = vsel %vm1791, %v1706, %v1708
        %v1809 = vsel %vm1791, %v1708, %v1710
        %v1810 = vsel %vm1791, %v1712, %v1714
        %v1811 = vsel %vm1791, %v1714, %v1716
        %v1812 = vsel %vm1791, %v1716, %v1718
        %v1813 = vsel %vm1791, %v1718, %v1720
        %v1814 = vsel %vm1791, %v1720, %v1722
        %v1815 = vsel %vm1791, %v1722, %v1724
        %v1816 = vsel %vm1791, %v1724, %v1726
        %v1817 = vsel %vm1791, %v1726, %v1728
        %v1818 = vsel %vm1791, %v1728, %v1730
        %v1819 = vsel %vm1791, %v1732, %v1734
        %v1820 = vsel %vm1791, %v1734, %v1736
        %v1821 = vsel %vm1791, %v1736, %v1738
        %v1822 = vsel %vm1791, %v1738, %v1740
        %v1823 = vsel %vm1791, %v1740, %v1742
        %v1824 = vsel %vm1791, %v1742, %v1744
        %v1825 = vsel %vm1791, %v1744, %v1746
        %v1826 = vsel %vm1791, %v1746, %v1748
        %v1827 = vsel %vm1791, %v1748, %v1750
        %v1828 = vsel %vm1791, %v1752, %v1754
        %v1829 = vsel %vm1791, %v1754, %v1756
        %v1830 = vsel %vm1791, %v1756, %v1758
        %v1831 = vsel %vm1791, %v1758, %v1760
        %v1832 = vsel %vm1791, %v1760, %v1762
        %v1833 = vsel %vm1791, %v1762, %v1764
        %v1834 = vsel %vm1791, %v1764, %v1766
        %v1835 = vsel %vm1791, %v1766, %v1768
        %v1836 = vsel %vm1791, %v1768, %v1770
        %v1837 = vsel %vm1791, %v1772, %v1774
        %v1838 = vsel %vm1791, %v1774, %v1776
        %v1839 = vsel %vm1791, %v1776, %v1778
        %v1840 = vsel %vm1791, %v1778, %v1780
        %v1841 = vsel %vm1791, %v1780, %v1782
        %v1842 = vsel %vm1791, %v1782, %v1784
        %v1843 = vsel %vm1791, %v1784, %v1786
        %v1844 = vsel %vm1791, %v1786, %v1788
        %v1845 = vsel %vm1791, %v1788, %v1790
        %s1900 = scalar_lea.vmem %s109, 864 [#allocation2]
        %1901 = vst [vmem:[%s1900] sm:$0xff] %v1792
        %1902 = vst [vmem:[%s1900 + $0x8] sm:$0xff] %v1793
        %1903 = vst [vmem:[%s1900 + $0x10] sm:$0xff] %v1794
        %1904 = vst [vmem:[%s1900 + $0x18] sm:$0xff] %v1795
        %1905 = vst [vmem:[%s1900 + $0x20] sm:$0xff] %v1796
        %1906 = vst [vmem:[%s1900 + $0x28] sm:$0xff] %v1797
        %1907 = vst [vmem:[%s1900 + $0x30] sm:$0xff] %v1798
        %1908 = vst [vmem:[%s1900 + $0x38] sm:$0xff] %v1799
        %1909 = vst [vmem:[%s1900 + $0x40] sm:$0xff] %v1800
        %1910 = vst [vmem:[%s1900 + $0x48] sm:$0xff] %v1801
        %1911 = vst [vmem:[%s1900 + $0x50] sm:$0xff] %v1802
        %1912 = vst [vmem:[%s1900 + $0x58] sm:$0xff] %v1803
        %1913 = vst [vmem:[%s1900 + $0x60] sm:$0xff] %v1804
        %1914 = vst [vmem:[%s1900 + $0x68] sm:$0xff] %v1805
        %1915 = vst [vmem:[%s1900 + $0x70] sm:$0xff] %v1806
        %1916 = vst [vmem:[%s1900 + $0x78] sm:$0xff] %v1807
        %1917 = vst [vmem:[%s1900 + $0x80] sm:$0xff] %v1808
        %1918 = vst [vmem:[%s1900 + $0x88] sm:$0xff] %v1809
        %1919 = vst [vmem:[%s1900 + $0x90] sm:$0xff] %v1810
        %1920 = vst [vmem:[%s1900 + $0x98] sm:$0xff] %v1811
        %1921 = vst [vmem:[%s1900 + $0xa0] sm:$0xff] %v1812
        %1922 = vst [vmem:[%s1900 + $0xa8] sm:$0xff] %v1813
        %1923 = vst [vmem:[%s1900 + $0xb0] sm:$0xff] %v1814
        %1924 = vst [vmem:[%s1900 + $0xb8] sm:$0xff] %v1815
        %1925 = vst [vmem:[%s1900 + $0xc0] sm:$0xff] %v1816
        %1926 = vst [vmem:[%s1900 + $0xc8] sm:$0xff] %v1817
        %1927 = vst [vmem:[%s1900 + $0xd0] sm:$0xff] %v1818
        %1928 = vst [vmem:[%s1900 + $0xd8] sm:$0xff] %v1819
        %1929 = vst [vmem:[%s1900 + $0xe0] sm:$0xff] %v1820
        %1930 = vst [vmem:[%s1900 + $0xe8] sm:$0xff] %v1821
        %1931 = vst [vmem:[%s1900 + $0xf0] sm:$0xff] %v1822
        %1932 = vst [vmem:[%s1900 + $0xf8] sm:$0xff] %v1823
        %1933 = vst [vmem:[%s1900 + $0x100] sm:$0xff] %v1824
        %1934 = vst [vmem:[%s1900 + $0x108] sm:$0xff] %v1825
        %1935 = vst [vmem:[%s1900 + $0x110] sm:$0xff] %v1826
        %1936 = vst [vmem:[%s1900 + $0x118] sm:$0xff] %v1827
        %1937 = vst [vmem:[%s1900 + $0x120] sm:$0xff] %v1828
        %1938 = vst [vmem:[%s1900 + $0x128] sm:$0xff] %v1829
        %1939 = vst [vmem:[%s1900 + $0x130] sm:$0xff] %v1830
        %1940 = vst [vmem:[%s1900 + $0x138] sm:$0xff] %v1831
        %1941 = vst [vmem:[%s1900 + $0x140] sm:$0xff] %v1832
        %1942 = vst [vmem:[%s1900 + $0x148] sm:$0xff] %v1833
        %1943 = vst [vmem:[%s1900 + $0x150] sm:$0xff] %v1834
        %1944 = vst [vmem:[%s1900 + $0x158] sm:$0xff] %v1835
        %1945 = vst [vmem:[%s1900 + $0x160] sm:$0xff] %v1836
        %1946 = vst [vmem:[%s1900 + $0x168] sm:$0xff] %v1837
        %1947 = vst [vmem:[%s1900 + $0x170] sm:$0xff] %v1838
        %1948 = vst [vmem:[%s1900 + $0x178] sm:$0xff] %v1839
        %1949 = vst [vmem:[%s1900 + $0x180] sm:$0xff] %v1840
        %1950 = vst [vmem:[%s1900 + $0x188] sm:$0xff] %v1841
        %1951 = vst [vmem:[%s1900 + $0x190] sm:$0xff] %v1842
        %1952 = vst [vmem:[%s1900 + $0x198] sm:$0xff] %v1843
        %1953 = vst [vmem:[%s1900 + $0x1a0] sm:$0xff] %v1844
        %1954 = vst [vmem:[%s1900 + $0x1a8] sm:$0xff] %v1845
        %v1955 = vld [vmem:[%s114] sm:$0xfe]
        %v1956 = vld [vmem:[%s114 + $0x8] sm:$0xfe]
        %v1957 = vld [vmem:[%s114 + $0x10] sm:$0xfe]
        %v1958 = vld [vmem:[%s114 + $0x18] sm:$0xfe]
        %v1959 = vld [vmem:[%s114 + $0x20] sm:$0xfe]
        %v1960 = vld [vmem:[%s114 + $0x28] sm:$0xfe]
        %v1961 = vld [vmem:[%s114 + $0x30] sm:$0xfe]
        %v1962 = vld [vmem:[%s114 + $0x38] sm:$0xfe]
        %v1963 = vld [vmem:[%s114 + $0x40] sm:$0xfe]
        %v1964 = vld [vmem:[%s114 + $0x48] sm:$0xfe]
        %v1965 = vld [vmem:[%s114 + $0x50] sm:$0xff]
        %v1966 = vld [vmem:[%s114 + $0x58] sm:$0xff]
        %v1967 = vld [vmem:[%s114 + $0x60] sm:$0xff]
        %v1968 = vld [vmem:[%s114 + $0x68] sm:$0xff]
        %v1969 = vld [vmem:[%s114 + $0x70] sm:$0xff]
        %v1970 = vld [vmem:[%s114 + $0x78] sm:$0xff]
        %v1971 = vld [vmem:[%s114 + $0x80] sm:$0xff]
        %v1972 = vld [vmem:[%s114 + $0x88] sm:$0xff]
        %v1973 = vld [vmem:[%s114 + $0x90] sm:$0xff]
        %v1974 = vld [vmem:[%s114 + $0x98] sm:$0xff]
        %v1975 = vld [vmem:[%s114 + $0xa0] sm:$0xff]
        %v1976 = vld [vmem:[%s114 + $0xa8] sm:$0xff]
        %v1977 = vld [vmem:[%s114 + $0xb0] sm:$0xff]
        %v1978 = vld [vmem:[%s114 + $0xb8] sm:$0xff]
        %v1979 = vld [vmem:[%s114 + $0xc0] sm:$0xff]
        %v1980 = vld [vmem:[%s114 + $0xc8] sm:$0xff]
        %v1981 = vld [vmem:[%s114 + $0xd0] sm:$0xff]
        %v1982 = vld [vmem:[%s114 + $0xd8] sm:$0xff]
        %v1983 = vld [vmem:[%s114 + $0xe0] sm:$0xff]
        %v1984 = vld [vmem:[%s114 + $0xe8] sm:$0xff]
        %v1985 = vld [vmem:[%s114 + $0xf0] sm:$0xff]
        %v1986 = vld [vmem:[%s114 + $0xf8] sm:$0xff]
        %v1987 = vld [vmem:[%s114 + $0x100] sm:$0xff]
        %v1988 = vld [vmem:[%s114 + $0x108] sm:$0xff]
        %v1989 = vld [vmem:[%s114 + $0x110] sm:$0xff]
        %v1990 = vld [vmem:[%s114 + $0x118] sm:$0xff]
        %v1991 = vld [vmem:[%s114 + $0x120] sm:$0xff]
        %v1992 = vld [vmem:[%s114 + $0x128] sm:$0xff]
        %v1993 = vld [vmem:[%s114 + $0x130] sm:$0xff]
        %v1994 = vld [vmem:[%s114 + $0x138] sm:$0xff]
        %v1995 = vld [vmem:[%s114 + $0x140] sm:$0xff]
        %v1996 = vld [vmem:[%s114 + $0x148] sm:$0xff]
        %v1997 = vld [vmem:[%s114 + $0x150] sm:$0xff]
        %v1998 = vld [vmem:[%s114 + $0x158] sm:$0xff]
        %v1999 = vld [vmem:[%s114 + $0x160] sm:$0xff]
        %v2000 = vld [vmem:[%s114 + $0x168] sm:$0xff]
        %v2001 = vld [vmem:[%s114 + $0x170] sm:$0xff]
        %v2002 = vld [vmem:[%s114 + $0x178] sm:$0xff]
        %v2003 = vld [vmem:[%s114 + $0x180] sm:$0xff]
        %v2004 = vld [vmem:[%s114 + $0x188] sm:$0xff]
        %v2005 = vld [vmem:[%s114 + $0x190] sm:$0xff]
        %v2006 = vld [vmem:[%s114 + $0x198] sm:$0xff]
        %v2007 = vld [vmem:[%s114 + $0x1a0] sm:$0xff]
        %v2008 = vld [vmem:[%s114 + $0x1a8] sm:$0xff]
        %v2009 = vld [vmem:[%s114 + $0x1b0] sm:$0xff]
        %v2010 = vld [vmem:[%s114 + $0x1b8] sm:$0xff]
        %v2011 = vld [vmem:[%s114 + $0x1c0] sm:$0xff]
        %v2012 = vld [vmem:[%s114 + $0x1c8] sm:$0xff]
        %v2013 = vld [vmem:[%s114 + $0x1d0] sm:$0xff]
        %v2014 = vld [vmem:[%s114 + $0x1d8] sm:$0xff]
        %v2015 = vld [vmem:[%s114 + $0x1e0] sm:$0x1]
        %v2016 = vld [vmem:[%s114 + $0x1e8] sm:$0x1]
        %v2017 = vld [vmem:[%s114 + $0x1f0] sm:$0x1]
        %v2018 = vld [vmem:[%s114 + $0x1f8] sm:$0x1]
        %v2019 = vld [vmem:[%s114 + $0x200] sm:$0x1]
        %v2020 = vld [vmem:[%s114 + $0x208] sm:$0x1]
        %v2021 = vld [vmem:[%s114 + $0x210] sm:$0x1]
        %v2022 = vld [vmem:[%s114 + $0x218] sm:$0x1]
        %v2023 = vld [vmem:[%s114 + $0x220] sm:$0x1]
        %v2024 = vld [vmem:[%s114 + $0x228] sm:$0x1]
        %2025 = vrot.lane.b32.xlu0 %v116, 24
        %v2026 = vpop.permute.xlu0 %2025
        %2027 = vrot.lane.b32.xlu0 %v117, 24
        %v2028 = vpop.permute.xlu0 %2027
        %2029 = vrot.lane.b32.xlu0 %v118, 24
        %v2030 = vpop.permute.xlu0 %2029
        %2031 = vrot.lane.b32.xlu0 %v119, 24
        %v2032 = vpop.permute.xlu0 %2031
        %2033 = vrot.lane.b32.xlu0 %v120, 24
        %v2034 = vpop.permute.xlu0 %2033
        %2035 = vrot.lane.b32.xlu0 %v121, 24
        %v2036 = vpop.permute.xlu0 %2035
        %2037 = vrot.lane.b32.xlu0 %v122, 24
        %v2038 = vpop.permute.xlu0 %2037
        %2039 = vrot.lane.b32.xlu0 %v123, 24
        %v2040 = vpop.permute.xlu0 %2039
        %2041 = vrot.lane.b32.xlu0 %v124, 24
        %v2042 = vpop.permute.xlu0 %2041
        %2043 = vrot.lane.b32.xlu0 %v125, 24
        %v2044 = vpop.permute.xlu0 %2043
        %2045 = vrot.lane.b32.xlu0 %v126, 24
        %v2046 = vpop.permute.xlu0 %2045
        %2047 = vrot.lane.b32.xlu0 %v127, 24
        %v2048 = vpop.permute.xlu0 %2047
        %2049 = vrot.lane.b32.xlu0 %v128, 24
        %v2050 = vpop.permute.xlu0 %2049
        %2051 = vrot.lane.b32.xlu0 %v129, 24
        %v2052 = vpop.permute.xlu0 %2051
        %2053 = vrot.lane.b32.xlu0 %v130, 24
        %v2054 = vpop.permute.xlu0 %2053
        %2055 = vrot.lane.b32.xlu0 %v131, 24
        %v2056 = vpop.permute.xlu0 %2055
        %2057 = vrot.lane.b32.xlu0 %v132, 24
        %v2058 = vpop.permute.xlu0 %2057
        %2059 = vrot.lane.b32.xlu0 %v133, 24
        %v2060 = vpop.permute.xlu0 %2059
        %2061 = vrot.lane.b32.xlu0 %v134, 24
        %v2062 = vpop.permute.xlu0 %2061
        %2063 = vrot.lane.b32.xlu0 %v135, 24
        %v2064 = vpop.permute.xlu0 %2063
        %2065 = vrot.lane.b32.xlu0 %v136, 24
        %v2066 = vpop.permute.xlu0 %2065
        %2067 = vrot.lane.b32.xlu0 %v137, 24
        %v2068 = vpop.permute.xlu0 %2067
        %2069 = vrot.lane.b32.xlu0 %v138, 24
        %v2070 = vpop.permute.xlu0 %2069
        %2071 = vrot.lane.b32.xlu0 %v139, 24
        %v2072 = vpop.permute.xlu0 %2071
        %2073 = vrot.lane.b32.xlu0 %v140, 24
        %v2074 = vpop.permute.xlu0 %2073
        %2075 = vrot.lane.b32.xlu0 %v141, 24
        %v2076 = vpop.permute.xlu0 %2075
        %2077 = vrot.lane.b32.xlu0 %v142, 24
        %v2078 = vpop.permute.xlu0 %2077
        %2079 = vrot.lane.b32.xlu0 %v143, 24
        %v2080 = vpop.permute.xlu0 %2079
        %2081 = vrot.lane.b32.xlu0 %v144, 24
        %v2082 = vpop.permute.xlu0 %2081
        %2083 = vrot.lane.b32.xlu0 %v145, 24
        %v2084 = vpop.permute.xlu0 %2083
        %2085 = vrot.lane.b32.xlu0 %v146, 24
        %v2086 = vpop.permute.xlu0 %2085
        %2087 = vrot.lane.b32.xlu0 %v147, 24
        %v2088 = vpop.permute.xlu0 %2087
        %2089 = vrot.lane.b32.xlu0 %v148, 24
        %v2090 = vpop.permute.xlu0 %2089
        %2091 = vrot.lane.b32.xlu0 %v149, 24
        %v2092 = vpop.permute.xlu0 %2091
        %2093 = vrot.lane.b32.xlu0 %v150, 24
        %v2094 = vpop.permute.xlu0 %2093
        %2095 = vrot.lane.b32.xlu0 %v151, 24
        %v2096 = vpop.permute.xlu0 %2095
        %2097 = vrot.lane.b32.xlu0 %v152, 24
        %v2098 = vpop.permute.xlu0 %2097
        %2099 = vrot.lane.b32.xlu0 %v153, 24
        %v2100 = vpop.permute.xlu0 %2099
        %2101 = vrot.lane.b32.xlu0 %v154, 24
        %v2102 = vpop.permute.xlu0 %2101
        %2103 = vrot.lane.b32.xlu0 %v155, 24
        %v2104 = vpop.permute.xlu0 %2103
        %2105 = vrot.lane.b32.xlu0 %v156, 24
        %v2106 = vpop.permute.xlu0 %2105
        %2107 = vrot.lane.b32.xlu0 %v157, 24
        %v2108 = vpop.permute.xlu0 %2107
        %2109 = vrot.lane.b32.xlu0 %v158, 24
        %v2110 = vpop.permute.xlu0 %2109
        %2111 = vrot.lane.b32.xlu0 %v159, 24
        %v2112 = vpop.permute.xlu0 %2111
        %2113 = vrot.lane.b32.xlu0 %v160, 24
        %v2114 = vpop.permute.xlu0 %2113
        %2115 = vrot.lane.b32.xlu0 %v161, 24
        %v2116 = vpop.permute.xlu0 %2115
        %2117 = vrot.lane.b32.xlu0 %v162, 24
        %v2118 = vpop.permute.xlu0 %2117
        %2119 = vrot.lane.b32.xlu0 %v163, 24
        %v2120 = vpop.permute.xlu0 %2119
        %2121 = vrot.lane.b32.xlu0 %v164, 24
        %v2122 = vpop.permute.xlu0 %2121
        %2123 = vrot.lane.b32.xlu0 %v165, 24
        %v2124 = vpop.permute.xlu0 %2123
        %2125 = vrot.lane.b32.xlu0 %v166, 24
        %v2126 = vpop.permute.xlu0 %2125
        %2127 = vrot.lane.b32.xlu0 %v167, 24
        %v2128 = vpop.permute.xlu0 %2127
        %2129 = vrot.lane.b32.xlu0 %v168, 24
        %v2130 = vpop.permute.xlu0 %2129
        %2131 = vrot.lane.b32.xlu0 %v169, 24
        %v2132 = vpop.permute.xlu0 %2131
        %2133 = vrot.lane.b32.xlu0 %v170, 24
        %v2134 = vpop.permute.xlu0 %2133
        %2135 = vrot.lane.b32.xlu0 %v171, 24
        %v2136 = vpop.permute.xlu0 %2135
        %2137 = vrot.lane.b32.xlu0 %v172, 24
        %v2138 = vpop.permute.xlu0 %2137
        %2139 = vrot.lane.b32.xlu0 %v173, 24
        %v2140 = vpop.permute.xlu0 %2139
        %2141 = vrot.lane.b32.xlu0 %v174, 24
        %v2142 = vpop.permute.xlu0 %2141
        %2143 = vrot.lane.b32.xlu0 %v175, 24
        %v2144 = vpop.permute.xlu0 %2143
        %2145 = vrot.lane.b32.xlu0 %v176, 24
        %v2146 = vpop.permute.xlu0 %2145
        %2147 = vrot.lane.b32.xlu0 %v177, 24
        %v2148 = vpop.permute.xlu0 %2147
        %2149 = vrot.lane.b32.xlu0 %v178, 24
        %v2150 = vpop.permute.xlu0 %2149
        %2151 = vrot.lane.b32.xlu0 %v179, 24
        %v2152 = vpop.permute.xlu0 %2151
        %2153 = vrot.lane.b32.xlu0 %v180, 24
        %v2154 = vpop.permute.xlu0 %2153
        %2155 = vrot.lane.b32.xlu0 %v181, 24
        %v2156 = vpop.permute.xlu0 %2155
        %2157 = vrot.lane.b32.xlu0 %v182, 24
        %v2158 = vpop.permute.xlu0 %2157
        %2159 = vrot.lane.b32.xlu0 %v183, 24
        %v2160 = vpop.permute.xlu0 %2159
        %2161 = vrot.lane.b32.xlu0 %v184, 24
        %v2162 = vpop.permute.xlu0 %2161
        %2163 = vrot.lane.b32.xlu0 %v185, 24
        %v2164 = vpop.permute.xlu0 %2163
        %v2165 = vsel %vm1436, %v2026, %v2028
        %v2166 = vsel %vm1436, %v2028, %v2030
        %v2167 = vsel %vm1436, %v2030, %v2032
        %v2168 = vsel %vm1436, %v2032, %v2034
        %v2169 = vsel %vm1436, %v2034, %v2036
        %v2170 = vsel %vm1436, %v2036, %v2038
        %v2171 = vsel %vm1436, %v2038, %v2040
        %v2172 = vsel %vm1436, %v2040, %v2042
        %v2173 = vsel %vm1436, %v2042, %v2044
        %v2174 = vsel %vm1436, %v2046, %v2048
        %v2175 = vsel %vm1436, %v2048, %v2050
        %v2176 = vsel %vm1436, %v2050, %v2052
        %v2177 = vsel %vm1436, %v2052, %v2054
        %v2178 = vsel %vm1436, %v2054, %v2056
        %v2179 = vsel %vm1436, %v2056, %v2058
        %v2180 = vsel %vm1436, %v2058, %v2060
        %v2181 = vsel %vm1436, %v2060, %v2062
        %v2182 = vsel %vm1436, %v2062, %v2064
        %v2183 = vsel %vm1436, %v2066, %v2068
        %v2184 = vsel %vm1436, %v2068, %v2070
        %v2185 = vsel %vm1436, %v2070, %v2072
        %v2186 = vsel %vm1436, %v2072, %v2074
        %v2187 = vsel %vm1436, %v2074, %v2076
        %v2188 = vsel %vm1436, %v2076, %v2078
        %v2189 = vsel %vm1436, %v2078, %v2080
        %v2190 = vsel %vm1436, %v2080, %v2082
        %v2191 = vsel %vm1436, %v2082, %v2084
        %v2192 = vsel %vm1436, %v2086, %v2088
        %v2193 = vsel %vm1436, %v2088, %v2090
        %v2194 = vsel %vm1436, %v2090, %v2092
        %v2195 = vsel %vm1436, %v2092, %v2094
        %v2196 = vsel %vm1436, %v2094, %v2096
        %v2197 = vsel %vm1436, %v2096, %v2098
        %v2198 = vsel %vm1436, %v2098, %v2100
        %v2199 = vsel %vm1436, %v2100, %v2102
        %v2200 = vsel %vm1436, %v2102, %v2104
        %v2201 = vsel %vm1436, %v2106, %v2108
        %v2202 = vsel %vm1436, %v2108, %v2110
        %v2203 = vsel %vm1436, %v2110, %v2112
        %v2204 = vsel %vm1436, %v2112, %v2114
        %v2205 = vsel %vm1436, %v2114, %v2116
        %v2206 = vsel %vm1436, %v2116, %v2118
        %v2207 = vsel %vm1436, %v2118, %v2120
        %v2208 = vsel %vm1436, %v2120, %v2122
        %v2209 = vsel %vm1436, %v2122, %v2124
        %v2210 = vsel %vm1436, %v2126, %v2128
        %v2211 = vsel %vm1436, %v2128, %v2130
        %v2212 = vsel %vm1436, %v2130, %v2132
        %v2213 = vsel %vm1436, %v2132, %v2134
        %v2214 = vsel %vm1436, %v2134, %v2136
        %v2215 = vsel %vm1436, %v2136, %v2138
        %v2216 = vsel %vm1436, %v2138, %v2140
        %v2217 = vsel %vm1436, %v2140, %v2142
        %v2218 = vsel %vm1436, %v2142, %v2144
        %v2219 = vsel %vm1436, %v2146, %v2148
        %v2220 = vsel %vm1436, %v2148, %v2150
        %v2221 = vsel %vm1436, %v2150, %v2152
        %v2222 = vsel %vm1436, %v2152, %v2154
        %v2223 = vsel %vm1436, %v2154, %v2156
        %v2224 = vsel %vm1436, %v2156, %v2158
        %v2225 = vsel %vm1436, %v2158, %v2160
        %v2226 = vsel %vm1436, %v2160, %v2162
        %v2227 = vsel %vm1436, %v2162, %v2164
        %v2298 = vsub.f32 %v1955, %v2026
        %v2299 = vsub.f32 %v1956, %v2165
        %v2300 = vsub.f32 %v1957, %v2166
        %v2301 = vsub.f32 %v1958, %v2167
        %v2302 = vsub.f32 %v1959, %v2168
        %v2303 = vsub.f32 %v1960, %v2169
        %v2304 = vsub.f32 %v1961, %v2170
        %v2305 = vsub.f32 %v1962, %v2171
        %v2306 = vsub.f32 %v1963, %v2172
        %v2307 = vsub.f32 %v1964, %v2173
        %v2308 = vsub.f32 %v1965, %v2046
        %v2309 = vsub.f32 %v1966, %v2174
        %v2310 = vsub.f32 %v1967, %v2175
        %v2311 = vsub.f32 %v1968, %v2176
        %v2312 = vsub.f32 %v1969, %v2177
        %v2313 = vsub.f32 %v1970, %v2178
        %v2314 = vsub.f32 %v1971, %v2179
        %v2315 = vsub.f32 %v1972, %v2180
        %v2316 = vsub.f32 %v1973, %v2181
        %v2317 = vsub.f32 %v1974, %v2182
        %v2318 = vsub.f32 %v1975, %v2066
        %v2319 = vsub.f32 %v1976, %v2183
        %v2320 = vsub.f32 %v1977, %v2184
        %v2321 = vsub.f32 %v1978, %v2185
        %v2322 = vsub.f32 %v1979, %v2186
        %v2323 = vsub.f32 %v1980, %v2187
        %v2324 = vsub.f32 %v1981, %v2188
        %v2325 = vsub.f32 %v1982, %v2189
        %v2326 = vsub.f32 %v1983, %v2190
        %v2327 = vsub.f32 %v1984, %v2191
        %v2328 = vsub.f32 %v1985, %v2086
        %v2329 = vsub.f32 %v1986, %v2192
        %v2330 = vsub.f32 %v1987, %v2193
        %v2331 = vsub.f32 %v1988, %v2194
        %v2332 = vsub.f32 %v1989, %v2195
        %v2333 = vsub.f32 %v1990, %v2196
        %v2334 = vsub.f32 %v1991, %v2197
        %v2335 = vsub.f32 %v1992, %v2198
        %v2336 = vsub.f32 %v1993, %v2199
        %v2337 = vsub.f32 %v1994, %v2200
        %v2338 = vsub.f32 %v1995, %v2106
        %v2339 = vsub.f32 %v1996, %v2201
        %v2340 = vsub.f32 %v1997, %v2202
        %v2341 = vsub.f32 %v1998, %v2203
        %v2342 = vsub.f32 %v1999, %v2204
        %v2343 = vsub.f32 %v2000, %v2205
        %v2344 = vsub.f32 %v2001, %v2206
        %v2345 = vsub.f32 %v2002, %v2207
        %v2346 = vsub.f32 %v2003, %v2208
        %v2347 = vsub.f32 %v2004, %v2209
        %v2348 = vsub.f32 %v2005, %v2126
        %v2349 = vsub.f32 %v2006, %v2210
        %v2350 = vsub.f32 %v2007, %v2211
        %v2351 = vsub.f32 %v2008, %v2212
        %v2352 = vsub.f32 %v2009, %v2213
        %v2353 = vsub.f32 %v2010, %v2214
        %v2354 = vsub.f32 %v2011, %v2215
        %v2355 = vsub.f32 %v2012, %v2216
        %v2356 = vsub.f32 %v2013, %v2217
        %v2357 = vsub.f32 %v2014, %v2218
        %v2358 = vsub.f32 %v2015, %v2146
        %v2359 = vsub.f32 %v2016, %v2219
        %v2360 = vsub.f32 %v2017, %v2220
        %v2361 = vsub.f32 %v2018, %v2221
        %v2362 = vsub.f32 %v2019, %v2222
        %v2363 = vsub.f32 %v2020, %v2223
        %v2364 = vsub.f32 %v2021, %v2224
        %v2365 = vsub.f32 %v2022, %v2225
        %v2366 = vsub.f32 %v2023, %v2226
        %v2367 = vsub.f32 %v2024, %v2227
        %v2438 = vrot.slane %v2298, 1
        %v2439 = vrot.slane %v2308, 1
        %v2440 = vsel %vm265, %v2438, %v2439
        %v2441 = vrot.slane %v2299, 1
        %v2442 = vrot.slane %v2309, 1
        %v2443 = vsel %vm265, %v2441, %v2442
        %v2444 = vrot.slane %v2300, 1
        %v2445 = vrot.slane %v2310, 1
        %v2446 = vsel %vm265, %v2444, %v2445
        %v2447 = vrot.slane %v2301, 1
        %v2448 = vrot.slane %v2311, 1
        %v2449 = vsel %vm265, %v2447, %v2448
        %v2450 = vrot.slane %v2302, 1
        %v2451 = vrot.slane %v2312, 1
        %v2452 = vsel %vm265, %v2450, %v2451
        %v2453 = vrot.slane %v2303, 1
        %v2454 = vrot.slane %v2313, 1
        %v2455 = vsel %vm265, %v2453, %v2454
        %v2456 = vrot.slane %v2304, 1
        %v2457 = vrot.slane %v2314, 1
        %v2458 = vsel %vm265, %v2456, %v2457
        %v2459 = vrot.slane %v2305, 1
        %v2460 = vrot.slane %v2315, 1
        %v2461 = vsel %vm265, %v2459, %v2460
        %v2462 = vrot.slane %v2306, 1
        %v2463 = vrot.slane %v2316, 1
        %v2464 = vsel %vm265, %v2462, %v2463
        %v2465 = vrot.slane %v2307, 1
        %v2466 = vrot.slane %v2317, 1
        %v2467 = vsel %vm265, %v2465, %v2466
        %v2468 = vrot.slane %v2318, 1
        %v2469 = vsel %vm265, %v2439, %v2468
        %v2470 = vrot.slane %v2319, 1
        %v2471 = vsel %vm265, %v2442, %v2470
        %v2472 = vrot.slane %v2320, 1
        %v2473 = vsel %vm265, %v2445, %v2472
        %v2474 = vrot.slane %v2321, 1
        %v2475 = vsel %vm265, %v2448, %v2474
        %v2476 = vrot.slane %v2322, 1
        %v2477 = vsel %vm265, %v2451, %v2476
        %v2478 = vrot.slane %v2323, 1
        %v2479 = vsel %vm265, %v2454, %v2478
        %v2480 = vrot.slane %v2324, 1
        %v2481 = vsel %vm265, %v2457, %v2480
        %v2482 = vrot.slane %v2325, 1
        %v2483 = vsel %vm265, %v2460, %v2482
        %v2484 = vrot.slane %v2326, 1
        %v2485 = vsel %vm265, %v2463, %v2484
        %v2486 = vrot.slane %v2327, 1
        %v2487 = vsel %vm265, %v2466, %v2486
        %v2488 = vrot.slane %v2328, 1
        %v2489 = vsel %vm265, %v2468, %v2488
        %v2490 = vrot.slane %v2329, 1
        %v2491 = vsel %vm265, %v2470, %v2490
        %v2492 = vrot.slane %v2330, 1
        %v2493 = vsel %vm265, %v2472, %v2492
        %v2494 = vrot.slane %v2331, 1
        %v2495 = vsel %vm265, %v2474, %v2494
        %v2496 = vrot.slane %v2332, 1
        %v2497 = vsel %vm265, %v2476, %v2496
        %v2498 = vrot.slane %v2333, 1
        %v2499 = vsel %vm265, %v2478, %v2498
        %v2500 = vrot.slane %v2334, 1
        %v2501 = vsel %vm265, %v2480, %v2500
        %v2502 = vrot.slane %v2335, 1
        %v2503 = vsel %vm265, %v2482, %v2502
        %v2504 = vrot.slane %v2336, 1
        %v2505 = vsel %vm265, %v2484, %v2504
        %v2506 = vrot.slane %v2337, 1
        %v2507 = vsel %vm265, %v2486, %v2506
        %v2508 = vrot.slane %v2338, 1
        %v2509 = vsel %vm265, %v2488, %v2508
        %v2510 = vrot.slane %v2339, 1
        %v2511 = vsel %vm265, %v2490, %v2510
        %v2512 = vrot.slane %v2340, 1
        %v2513 = vsel %vm265, %v2492, %v2512
        %v2514 = vrot.slane %v2341, 1
        %v2515 = vsel %vm265, %v2494, %v2514
        %v2516 = vrot.slane %v2342, 1
        %v2517 = vsel %vm265, %v2496, %v2516
        %v2518 = vrot.slane %v2343, 1
        %v2519 = vsel %vm265, %v2498, %v2518
        %v2520 = vrot.slane %v2344, 1
        %v2521 = vsel %vm265, %v2500, %v2520
        %v2522 = vrot.slane %v2345, 1
        %v2523 = vsel %vm265, %v2502, %v2522
        %v2524 = vrot.slane %v2346, 1
        %v2525 = vsel %vm265, %v2504, %v2524
        %v2526 = vrot.slane %v2347, 1
        %v2527 = vsel %vm265, %v2506, %v2526
        %v2528 = vrot.slane %v2348, 1
        %v2529 = vsel %vm265, %v2508, %v2528
        %v2530 = vrot.slane %v2349, 1
        %v2531 = vsel %vm265, %v2510, %v2530
        %v2532 = vrot.slane %v2350, 1
        %v2533 = vsel %vm265, %v2512, %v2532
        %v2534 = vrot.slane %v2351, 1
        %v2535 = vsel %vm265, %v2514, %v2534
        %v2536 = vrot.slane %v2352, 1
        %v2537 = vsel %vm265, %v2516, %v2536
        %v2538 = vrot.slane %v2353, 1
        %v2539 = vsel %vm265, %v2518, %v2538
        %v2540 = vrot.slane %v2354, 1
        %v2541 = vsel %vm265, %v2520, %v2540
        %v2542 = vrot.slane %v2355, 1
        %v2543 = vsel %vm265, %v2522, %v2542
        %v2544 = vrot.slane %v2356, 1
        %v2545 = vsel %vm265, %v2524, %v2544
        %v2546 = vrot.slane %v2357, 1
        %v2547 = vsel %vm265, %v2526, %v2546
        %v2548 = vrot.slane %v2358, 1
        %v2549 = vsel %vm265, %v2528, %v2548
        %v2550 = vrot.slane %v2359, 1
        %v2551 = vsel %vm265, %v2530, %v2550
        %v2552 = vrot.slane %v2360, 1
        %v2553 = vsel %vm265, %v2532, %v2552
        %v2554 = vrot.slane %v2361, 1
        %v2555 = vsel %vm265, %v2534, %v2554
        %v2556 = vrot.slane %v2362, 1
        %v2557 = vsel %vm265, %v2536, %v2556
        %v2558 = vrot.slane %v2363, 1
        %v2559 = vsel %vm265, %v2538, %v2558
        %v2560 = vrot.slane %v2364, 1
        %v2561 = vsel %vm265, %v2540, %v2560
        %v2562 = vrot.slane %v2365, 1
        %v2563 = vsel %vm265, %v2542, %v2562
        %v2564 = vrot.slane %v2366, 1
        %v2565 = vsel %vm265, %v2544, %v2564
        %v2566 = vrot.slane %v2367, 1
        %v2567 = vsel %vm265, %v2546, %v2566
        %2568 = vrot.lane.b32.xlu0 %v2440, 80
        %v2569 = vpop.permute.xlu0 %2568
        %2570 = vrot.lane.b32.xlu0 %v2443, 80
        %v2571 = vpop.permute.xlu0 %2570
        %2572 = vrot.lane.b32.xlu0 %v2446, 80
        %v2573 = vpop.permute.xlu0 %2572
        %2574 = vrot.lane.b32.xlu0 %v2449, 80
        %v2575 = vpop.permute.xlu0 %2574
        %2576 = vrot.lane.b32.xlu0 %v2452, 80
        %v2577 = vpop.permute.xlu0 %2576
        %2578 = vrot.lane.b32.xlu0 %v2455, 80
        %v2579 = vpop.permute.xlu0 %2578
        %2580 = vrot.lane.b32.xlu0 %v2458, 80
        %v2581 = vpop.permute.xlu0 %2580
        %2582 = vrot.lane.b32.xlu0 %v2461, 80
        %v2583 = vpop.permute.xlu0 %2582
        %2584 = vrot.lane.b32.xlu0 %v2464, 80
        %v2585 = vpop.permute.xlu0 %2584
        %2586 = vrot.lane.b32.xlu0 %v2467, 80
        %v2587 = vpop.permute.xlu0 %2586
        %2588 = vrot.lane.b32.xlu0 %v2469, 80
        %v2589 = vpop.permute.xlu0 %2588
        %2590 = vrot.lane.b32.xlu0 %v2471, 80
        %v2591 = vpop.permute.xlu0 %2590
        %2592 = vrot.lane.b32.xlu0 %v2473, 80
        %v2593 = vpop.permute.xlu0 %2592
        %2594 = vrot.lane.b32.xlu0 %v2475, 80
        %v2595 = vpop.permute.xlu0 %2594
        %2596 = vrot.lane.b32.xlu0 %v2477, 80
        %v2597 = vpop.permute.xlu0 %2596
        %2598 = vrot.lane.b32.xlu0 %v2479, 80
        %v2599 = vpop.permute.xlu0 %2598
        %2600 = vrot.lane.b32.xlu0 %v2481, 80
        %v2601 = vpop.permute.xlu0 %2600
        %2602 = vrot.lane.b32.xlu0 %v2483, 80
        %v2603 = vpop.permute.xlu0 %2602
        %2604 = vrot.lane.b32.xlu0 %v2485, 80
        %v2605 = vpop.permute.xlu0 %2604
        %2606 = vrot.lane.b32.xlu0 %v2487, 80
        %v2607 = vpop.permute.xlu0 %2606
        %2608 = vrot.lane.b32.xlu0 %v2489, 80
        %v2609 = vpop.permute.xlu0 %2608
        %2610 = vrot.lane.b32.xlu0 %v2491, 80
        %v2611 = vpop.permute.xlu0 %2610
        %2612 = vrot.lane.b32.xlu0 %v2493, 80
        %v2613 = vpop.permute.xlu0 %2612
        %2614 = vrot.lane.b32.xlu0 %v2495, 80
        %v2615 = vpop.permute.xlu0 %2614
        %2616 = vrot.lane.b32.xlu0 %v2497, 80
        %v2617 = vpop.permute.xlu0 %2616
        %2618 = vrot.lane.b32.xlu0 %v2499, 80
        %v2619 = vpop.permute.xlu0 %2618
        %2620 = vrot.lane.b32.xlu0 %v2501, 80
        %v2621 = vpop.permute.xlu0 %2620
        %2622 = vrot.lane.b32.xlu0 %v2503, 80
        %v2623 = vpop.permute.xlu0 %2622
        %2624 = vrot.lane.b32.xlu0 %v2505, 80
        %v2625 = vpop.permute.xlu0 %2624
        %2626 = vrot.lane.b32.xlu0 %v2507, 80
        %v2627 = vpop.permute.xlu0 %2626
        %2628 = vrot.lane.b32.xlu0 %v2509, 80
        %v2629 = vpop.permute.xlu0 %2628
        %2630 = vrot.lane.b32.xlu0 %v2511, 80
        %v2631 = vpop.permute.xlu0 %2630
        %2632 = vrot.lane.b32.xlu0 %v2513, 80
        %v2633 = vpop.permute.xlu0 %2632
        %2634 = vrot.lane.b32.xlu0 %v2515, 80
        %v2635 = vpop.permute.xlu0 %2634
        %2636 = vrot.lane.b32.xlu0 %v2517, 80
        %v2637 = vpop.permute.xlu0 %2636
        %2638 = vrot.lane.b32.xlu0 %v2519, 80
        %v2639 = vpop.permute.xlu0 %2638
        %2640 = vrot.lane.b32.xlu0 %v2521, 80
        %v2641 = vpop.permute.xlu0 %2640
        %2642 = vrot.lane.b32.xlu0 %v2523, 80
        %v2643 = vpop.permute.xlu0 %2642
        %2644 = vrot.lane.b32.xlu0 %v2525, 80
        %v2645 = vpop.permute.xlu0 %2644
        %2646 = vrot.lane.b32.xlu0 %v2527, 80
        %v2647 = vpop.permute.xlu0 %2646
        %2648 = vrot.lane.b32.xlu0 %v2529, 80
        %v2649 = vpop.permute.xlu0 %2648
        %2650 = vrot.lane.b32.xlu0 %v2531, 80
        %v2651 = vpop.permute.xlu0 %2650
        %2652 = vrot.lane.b32.xlu0 %v2533, 80
        %v2653 = vpop.permute.xlu0 %2652
        %2654 = vrot.lane.b32.xlu0 %v2535, 80
        %v2655 = vpop.permute.xlu0 %2654
        %2656 = vrot.lane.b32.xlu0 %v2537, 80
        %v2657 = vpop.permute.xlu0 %2656
        %2658 = vrot.lane.b32.xlu0 %v2539, 80
        %v2659 = vpop.permute.xlu0 %2658
        %2660 = vrot.lane.b32.xlu0 %v2541, 80
        %v2661 = vpop.permute.xlu0 %2660
        %2662 = vrot.lane.b32.xlu0 %v2543, 80
        %v2663 = vpop.permute.xlu0 %2662
        %2664 = vrot.lane.b32.xlu0 %v2545, 80
        %v2665 = vpop.permute.xlu0 %2664
        %2666 = vrot.lane.b32.xlu0 %v2547, 80
        %v2667 = vpop.permute.xlu0 %2666
        %2668 = vrot.lane.b32.xlu0 %v2549, 80
        %v2669 = vpop.permute.xlu0 %2668
        %2670 = vrot.lane.b32.xlu0 %v2551, 80
        %v2671 = vpop.permute.xlu0 %2670
        %2672 = vrot.lane.b32.xlu0 %v2553, 80
        %v2673 = vpop.permute.xlu0 %2672
        %2674 = vrot.lane.b32.xlu0 %v2555, 80
        %v2675 = vpop.permute.xlu0 %2674
        %2676 = vrot.lane.b32.xlu0 %v2557, 80
        %v2677 = vpop.permute.xlu0 %2676
        %2678 = vrot.lane.b32.xlu0 %v2559, 80
        %v2679 = vpop.permute.xlu0 %2678
        %2680 = vrot.lane.b32.xlu0 %v2561, 80
        %v2681 = vpop.permute.xlu0 %2680
        %2682 = vrot.lane.b32.xlu0 %v2563, 80
        %v2683 = vpop.permute.xlu0 %2682
        %2684 = vrot.lane.b32.xlu0 %v2565, 80
        %v2685 = vpop.permute.xlu0 %2684
        %2686 = vrot.lane.b32.xlu0 %v2567, 80
        %v2687 = vpop.permute.xlu0 %2686
        %v2688 = vsel %vm1791, %v2569, %v2571
        %v2689 = vsel %vm1791, %v2571, %v2573
        %v2690 = vsel %vm1791, %v2573, %v2575
        %v2691 = vsel %vm1791, %v2575, %v2577
        %v2692 = vsel %vm1791, %v2577, %v2579
        %v2693 = vsel %vm1791, %v2579, %v2581
        %v2694 = vsel %vm1791, %v2581, %v2583
        %v2695 = vsel %vm1791, %v2583, %v2585
        %v2696 = vsel %vm1791, %v2585, %v2587
        %v2697 = vsel %vm1791, %v2589, %v2591
        %v2698 = vsel %vm1791, %v2591, %v2593
        %v2699 = vsel %vm1791, %v2593, %v2595
        %v2700 = vsel %vm1791, %v2595, %v2597
        %v2701 = vsel %vm1791, %v2597, %v2599
        %v2702 = vsel %vm1791, %v2599, %v2601
        %v2703 = vsel %vm1791, %v2601, %v2603
        %v2704 = vsel %vm1791, %v2603, %v2605
        %v2705 = vsel %vm1791, %v2605, %v2607
        %v2706 = vsel %vm1791, %v2609, %v2611
        %v2707 = vsel %vm1791, %v2611, %v2613
        %v2708 = vsel %vm1791, %v2613, %v2615
        %v2709 = vsel %vm1791, %v2615, %v2617
        %v2710 = vsel %vm1791, %v2617, %v2619
        %v2711 = vsel %vm1791, %v2619, %v2621
        %v2712 = vsel %vm1791, %v2621, %v2623
        %v2713 = vsel %vm1791, %v2623, %v2625
        %v2714 = vsel %vm1791, %v2625, %v2627
        %v2715 = vsel %vm1791, %v2629, %v2631
        %v2716 = vsel %vm1791, %v2631, %v2633
        %v2717 = vsel %vm1791, %v2633, %v2635
        %v2718 = vsel %vm1791, %v2635, %v2637
        %v2719 = vsel %vm1791, %v2637, %v2639
        %v2720 = vsel %vm1791, %v2639, %v2641
        %v2721 = vsel %vm1791, %v2641, %v2643
        %v2722 = vsel %vm1791, %v2643, %v2645
        %v2723 = vsel %vm1791, %v2645, %v2647
        %v2724 = vsel %vm1791, %v2649, %v2651
        %v2725 = vsel %vm1791, %v2651, %v2653
        %v2726 = vsel %vm1791, %v2653, %v2655
        %v2727 = vsel %vm1791, %v2655, %v2657
        %v2728 = vsel %vm1791, %v2657, %v2659
        %v2729 = vsel %vm1791, %v2659, %v2661
        %v2730 = vsel %vm1791, %v2661, %v2663
        %v2731 = vsel %vm1791, %v2663, %v2665
        %v2732 = vsel %vm1791, %v2665, %v2667
        %v2733 = vsel %vm1791, %v2669, %v2671
        %v2734 = vsel %vm1791, %v2671, %v2673
        %v2735 = vsel %vm1791, %v2673, %v2675
        %v2736 = vsel %vm1791, %v2675, %v2677
        %v2737 = vsel %vm1791, %v2677, %v2679
        %v2738 = vsel %vm1791, %v2679, %v2681
        %v2739 = vsel %vm1791, %v2681, %v2683
        %v2740 = vsel %vm1791, %v2683, %v2685
        %v2741 = vsel %vm1791, %v2685, %v2687
        %s2796 = scalar_lea.vmem %s109, 1296 [#allocation2]
        %2797 = vst [vmem:[%s2796] sm:$0xff] %v2688
        %2798 = vst [vmem:[%s2796 + $0x8] sm:$0xff] %v2689
        %2799 = vst [vmem:[%s2796 + $0x10] sm:$0xff] %v2690
        %2800 = vst [vmem:[%s2796 + $0x18] sm:$0xff] %v2691
        %2801 = vst [vmem:[%s2796 + $0x20] sm:$0xff] %v2692
        %2802 = vst [vmem:[%s2796 + $0x28] sm:$0xff] %v2693
        %2803 = vst [vmem:[%s2796 + $0x30] sm:$0xff] %v2694
        %2804 = vst [vmem:[%s2796 + $0x38] sm:$0xff] %v2695
        %2805 = vst [vmem:[%s2796 + $0x40] sm:$0xff] %v2696
        %2806 = vst [vmem:[%s2796 + $0x48] sm:$0xff] %v2697
        %2807 = vst [vmem:[%s2796 + $0x50] sm:$0xff] %v2698
        %2808 = vst [vmem:[%s2796 + $0x58] sm:$0xff] %v2699
        %2809 = vst [vmem:[%s2796 + $0x60] sm:$0xff] %v2700
        %2810 = vst [vmem:[%s2796 + $0x68] sm:$0xff] %v2701
        %2811 = vst [vmem:[%s2796 + $0x70] sm:$0xff] %v2702
        %2812 = vst [vmem:[%s2796 + $0x78] sm:$0xff] %v2703
        %2813 = vst [vmem:[%s2796 + $0x80] sm:$0xff] %v2704
        %2814 = vst [vmem:[%s2796 + $0x88] sm:$0xff] %v2705
        %2815 = vst [vmem:[%s2796 + $0x90] sm:$0xff] %v2706
        %2816 = vst [vmem:[%s2796 + $0x98] sm:$0xff] %v2707
        %2817 = vst [vmem:[%s2796 + $0xa0] sm:$0xff] %v2708
        %2818 = vst [vmem:[%s2796 + $0xa8] sm:$0xff] %v2709
        %2819 = vst [vmem:[%s2796 + $0xb0] sm:$0xff] %v2710
        %2820 = vst [vmem:[%s2796 + $0xb8] sm:$0xff] %v2711
        %2821 = vst [vmem:[%s2796 + $0xc0] sm:$0xff] %v2712
        %2822 = vst [vmem:[%s2796 + $0xc8] sm:$0xff] %v2713
        %2823 = vst [vmem:[%s2796 + $0xd0] sm:$0xff] %v2714
        %2824 = vst [vmem:[%s2796 + $0xd8] sm:$0xff] %v2715
        %2825 = vst [vmem:[%s2796 + $0xe0] sm:$0xff] %v2716
        %2826 = vst [vmem:[%s2796 + $0xe8] sm:$0xff] %v2717
        %2827 = vst [vmem:[%s2796 + $0xf0] sm:$0xff] %v2718
        %2828 = vst [vmem:[%s2796 + $0xf8] sm:$0xff] %v2719
        %2829 = vst [vmem:[%s2796 + $0x100] sm:$0xff] %v2720
        %2830 = vst [vmem:[%s2796 + $0x108] sm:$0xff] %v2721
        %2831 = vst [vmem:[%s2796 + $0x110] sm:$0xff] %v2722
        %2832 = vst [vmem:[%s2796 + $0x118] sm:$0xff] %v2723
        %2833 = vst [vmem:[%s2796 + $0x120] sm:$0xff] %v2724
        %2834 = vst [vmem:[%s2796 + $0x128] sm:$0xff] %v2725
        %2835 = vst [vmem:[%s2796 + $0x130] sm:$0xff] %v2726
        %2836 = vst [vmem:[%s2796 + $0x138] sm:$0xff] %v2727
        %2837 = vst [vmem:[%s2796 + $0x140] sm:$0xff] %v2728
        %2838 = vst [vmem:[%s2796 + $0x148] sm:$0xff] %v2729
        %2839 = vst [vmem:[%s2796 + $0x150] sm:$0xff] %v2730
        %2840 = vst [vmem:[%s2796 + $0x158] sm:$0xff] %v2731
        %2841 = vst [vmem:[%s2796 + $0x160] sm:$0xff] %v2732
        %2842 = vst [vmem:[%s2796 + $0x168] sm:$0xff] %v2733
        %2843 = vst [vmem:[%s2796 + $0x170] sm:$0xff] %v2734
        %2844 = vst [vmem:[%s2796 + $0x178] sm:$0xff] %v2735
        %2845 = vst [vmem:[%s2796 + $0x180] sm:$0xff] %v2736
        %2846 = vst [vmem:[%s2796 + $0x188] sm:$0xff] %v2737
        %2847 = vst [vmem:[%s2796 + $0x190] sm:$0xff] %v2738
        %2848 = vst [vmem:[%s2796 + $0x198] sm:$0xff] %v2739
        %2849 = vst [vmem:[%s2796 + $0x1a0] sm:$0xff] %v2740
        %2850 = vst [vmem:[%s2796 + $0x1a8] sm:$0xff] %v2741
        %v2851 = vld [vmem:[%s114] sm:$0xfc]
        %v2852 = vld [vmem:[%s114 + $0x8] sm:$0xfc]
        %v2853 = vld [vmem:[%s114 + $0x10] sm:$0xfc]
        %v2854 = vld [vmem:[%s114 + $0x18] sm:$0xfc]
        %v2855 = vld [vmem:[%s114 + $0x20] sm:$0xfc]
        %v2856 = vld [vmem:[%s114 + $0x28] sm:$0xfc]
        %v2857 = vld [vmem:[%s114 + $0x30] sm:$0xfc]
        %v2858 = vld [vmem:[%s114 + $0x38] sm:$0xfc]
        %v2859 = vld [vmem:[%s114 + $0x40] sm:$0xfc]
        %v2860 = vld [vmem:[%s114 + $0x48] sm:$0xfc]
        %v2861 = vld [vmem:[%s114 + $0x50] sm:$0xff]
        %v2862 = vld [vmem:[%s114 + $0x58] sm:$0xff]
        %v2863 = vld [vmem:[%s114 + $0x60] sm:$0xff]
        %v2864 = vld [vmem:[%s114 + $0x68] sm:$0xff]
        %v2865 = vld [vmem:[%s114 + $0x70] sm:$0xff]
        %v2866 = vld [vmem:[%s114 + $0x78] sm:$0xff]
        %v2867 = vld [vmem:[%s114 + $0x80] sm:$0xff]
        %v2868 = vld [vmem:[%s114 + $0x88] sm:$0xff]
        %v2869 = vld [vmem:[%s114 + $0x90] sm:$0xff]
        %v2870 = vld [vmem:[%s114 + $0x98] sm:$0xff]
        %v2871 = vld [vmem:[%s114 + $0xa0] sm:$0xff]
        %v2872 = vld [vmem:[%s114 + $0xa8] sm:$0xff]
        %v2873 = vld [vmem:[%s114 + $0xb0] sm:$0xff]
        %v2874 = vld [vmem:[%s114 + $0xb8] sm:$0xff]
        %v2875 = vld [vmem:[%s114 + $0xc0] sm:$0xff]
        %v2876 = vld [vmem:[%s114 + $0xc8] sm:$0xff]
        %v2877 = vld [vmem:[%s114 + $0xd0] sm:$0xff]
        %v2878 = vld [vmem:[%s114 + $0xd8] sm:$0xff]
        %v2879 = vld [vmem:[%s114 + $0xe0] sm:$0xff]
        %v2880 = vld [vmem:[%s114 + $0xe8] sm:$0xff]
        %v2881 = vld [vmem:[%s114 + $0xf0] sm:$0xff]
        %v2882 = vld [vmem:[%s114 + $0xf8] sm:$0xff]
        %v2883 = vld [vmem:[%s114 + $0x100] sm:$0xff]
        %v2884 = vld [vmem:[%s114 + $0x108] sm:$0xff]
        %v2885 = vld [vmem:[%s114 + $0x110] sm:$0xff]
        %v2886 = vld [vmem:[%s114 + $0x118] sm:$0xff]
        %v2887 = vld [vmem:[%s114 + $0x120] sm:$0xff]
        %v2888 = vld [vmem:[%s114 + $0x128] sm:$0xff]
        %v2889 = vld [vmem:[%s114 + $0x130] sm:$0xff]
        %v2890 = vld [vmem:[%s114 + $0x138] sm:$0xff]
        %v2891 = vld [vmem:[%s114 + $0x140] sm:$0xff]
        %v2892 = vld [vmem:[%s114 + $0x148] sm:$0xff]
        %v2893 = vld [vmem:[%s114 + $0x150] sm:$0xff]
        %v2894 = vld [vmem:[%s114 + $0x158] sm:$0xff]
        %v2895 = vld [vmem:[%s114 + $0x160] sm:$0xff]
        %v2896 = vld [vmem:[%s114 + $0x168] sm:$0xff]
        %v2897 = vld [vmem:[%s114 + $0x170] sm:$0xff]
        %v2898 = vld [vmem:[%s114 + $0x178] sm:$0xff]
        %v2899 = vld [vmem:[%s114 + $0x180] sm:$0xff]
        %v2900 = vld [vmem:[%s114 + $0x188] sm:$0xff]
        %v2901 = vld [vmem:[%s114 + $0x190] sm:$0xff]
        %v2902 = vld [vmem:[%s114 + $0x198] sm:$0xff]
        %v2903 = vld [vmem:[%s114 + $0x1a0] sm:$0xff]
        %v2904 = vld [vmem:[%s114 + $0x1a8] sm:$0xff]
        %v2905 = vld [vmem:[%s114 + $0x1b0] sm:$0xff]
        %v2906 = vld [vmem:[%s114 + $0x1b8] sm:$0xff]
        %v2907 = vld [vmem:[%s114 + $0x1c0] sm:$0xff]
        %v2908 = vld [vmem:[%s114 + $0x1c8] sm:$0xff]
        %v2909 = vld [vmem:[%s114 + $0x1d0] sm:$0xff]
        %v2910 = vld [vmem:[%s114 + $0x1d8] sm:$0xff]
        %v2911 = vld [vmem:[%s114 + $0x1e0] sm:$0x3]
        %v2912 = vld [vmem:[%s114 + $0x1e8] sm:$0x3]
        %v2913 = vld [vmem:[%s114 + $0x1f0] sm:$0x3]
        %v2914 = vld [vmem:[%s114 + $0x1f8] sm:$0x3]
        %v2915 = vld [vmem:[%s114 + $0x200] sm:$0x3]
        %v2916 = vld [vmem:[%s114 + $0x208] sm:$0x3]
        %v2917 = vld [vmem:[%s114 + $0x210] sm:$0x3]
        %v2918 = vld [vmem:[%s114 + $0x218] sm:$0x3]
        %v2919 = vld [vmem:[%s114 + $0x220] sm:$0x3]
        %v2920 = vld [vmem:[%s114 + $0x228] sm:$0x3]
        %vm2921 = vcmask 1040384
        %v2922 = vrot.slane %v116, 7
        %v2923 = vrot.slane %v117, 7
        %v2924 = vrot.slane %v118, 7
        %v2925 = vrot.slane %v119, 7
        %v2926 = vrot.slane %v120, 7
        %v2927 = vrot.slane %v121, 7
        %v2928 = vrot.slane %v122, 7
        %v2929 = vrot.slane %v123, 7
        %v2930 = vrot.slane %v124, 7
        %v2931 = vrot.slane %v125, 7
        %v2932 = vrot.slane %v126, 7
        %v2933 = vsel %vm2921, %v2922, %v2932
        %v2934 = vrot.slane %v127, 7
        %v2935 = vsel %vm2921, %v2923, %v2934
        %v2936 = vrot.slane %v128, 7
        %v2937 = vsel %vm2921, %v2924, %v2936
        %v2938 = vrot.slane %v129, 7
        %v2939 = vsel %vm2921, %v2925, %v2938
        %v2940 = vrot.slane %v130, 7
        %v2941 = vsel %vm2921, %v2926, %v2940
        %v2942 = vrot.slane %v131, 7
        %v2943 = vsel %vm2921, %v2927, %v2942
        %v2944 = vrot.slane %v132, 7
        %v2945 = vsel %vm2921, %v2928, %v2944
        %v2946 = vrot.slane %v133, 7
        %v2947 = vsel %vm2921, %v2929, %v2946
        %v2948 = vrot.slane %v134, 7
        %v2949 = vsel %vm2921, %v2930, %v2948
        %v2950 = vrot.slane %v135, 7
        %v2951 = vsel %vm2921, %v2931, %v2950
        %v2952 = vrot.slane %v136, 7
        %v2953 = vsel %vm2921, %v2932, %v2952
        %v2954 = vrot.slane %v137, 7
        %v2955 = vsel %vm2921, %v2934, %v2954
        %v2956 = vrot.slane %v138, 7
        %v2957 = vsel %vm2921, %v2936, %v2956
        %v2958 = vrot.slane %v139, 7
        %v2959 = vsel %vm2921, %v2938, %v2958
        %v2960 = vrot.slane %v140, 7
        %v2961 = vsel %vm2921, %v2940, %v2960
        %v2962 = vrot.slane %v141, 7
        %v2963 = vsel %vm2921, %v2942, %v2962
        %v2964 = vrot.slane %v142, 7
        %v2965 = vsel %vm2921, %v2944, %v2964
        %v2966 = vrot.slane %v143, 7
        %v2967 = vsel %vm2921, %v2946, %v2966
        %v2968 = vrot.slane %v144, 7
        %v2969 = vsel %vm2921, %v2948, %v2968
        %v2970 = vrot.slane %v145, 7
        %v2971 = vsel %vm2921, %v2950, %v2970
        %v2972 = vrot.slane %v146, 7
        %v2973 = vsel %vm2921, %v2952, %v2972
        %v2974 = vrot.slane %v147, 7
        %v2975 = vsel %vm2921, %v2954, %v2974
        %v2976 = vrot.slane %v148, 7
        %v2977 = vsel %vm2921, %v2956, %v2976
        %v2978 = vrot.slane %v149, 7
        %v2979 = vsel %vm2921, %v2958, %v2978
        %v2980 = vrot.slane %v150, 7
        %v2981 = vsel %vm2921, %v2960, %v2980
        %v2982 = vrot.slane %v151, 7
        %v2983 = vsel %vm2921, %v2962, %v2982
        %v2984 = vrot.slane %v152, 7
        %v2985 = vsel %vm2921, %v2964, %v2984
        %v2986 = vrot.slane %v153, 7
        %v2987 = vsel %vm2921, %v2966, %v2986
        %v2988 = vrot.slane %v154, 7
        %v2989 = vsel %vm2921, %v2968, %v2988
        %v2990 = vrot.slane %v155, 7
        %v2991 = vsel %vm2921, %v2970, %v2990
        %v2992 = vrot.slane %v156, 7
        %v2993 = vsel %vm2921, %v2972, %v2992
        %v2994 = vrot.slane %v157, 7
        %v2995 = vsel %vm2921, %v2974, %v2994
        %v2996 = vrot.slane %v158, 7
        %v2997 = vsel %vm2921, %v2976, %v2996
        %v2998 = vrot.slane %v159, 7
        %v2999 = vsel %vm2921, %v2978, %v2998
        %v3000 = vrot.slane %v160, 7
        %v3001 = vsel %vm2921, %v2980, %v3000
        %v3002 = vrot.slane %v161, 7
        %v3003 = vsel %vm2921, %v2982, %v3002
        %v3004 = vrot.slane %v162, 7
        %v3005 = vsel %vm2921, %v2984, %v3004
        %v3006 = vrot.slane %v163, 7
        %v3007 = vsel %vm2921, %v2986, %v3006
        %v3008 = vrot.slane %v164, 7
        %v3009 = vsel %vm2921, %v2988, %v3008
        %v3010 = vrot.slane %v165, 7
        %v3011 = vsel %vm2921, %v2990, %v3010
        %v3012 = vrot.slane %v166, 7
        %v3013 = vsel %vm2921, %v2992, %v3012
        %v3014 = vrot.slane %v167, 7
        %v3015 = vsel %vm2921, %v2994, %v3014
        %v3016 = vrot.slane %v168, 7
        %v3017 = vsel %vm2921, %v2996, %v3016
        %v3018 = vrot.slane %v169, 7
        %v3019 = vsel %vm2921, %v2998, %v3018
        %v3020 = vrot.slane %v170, 7
        %v3021 = vsel %vm2921, %v3000, %v3020
        %v3022 = vrot.slane %v171, 7
        %v3023 = vsel %vm2921, %v3002, %v3022
        %v3024 = vrot.slane %v172, 7
        %v3025 = vsel %vm2921, %v3004, %v3024
        %v3026 = vrot.slane %v173, 7
        %v3027 = vsel %vm2921, %v3006, %v3026
        %v3028 = vrot.slane %v174, 7
        %v3029 = vsel %vm2921, %v3008, %v3028
        %v3030 = vrot.slane %v175, 7
        %v3031 = vsel %vm2921, %v3010, %v3030
        %v3032 = vrot.slane %v176, 7
        %v3033 = vsel %vm2921, %v3012, %v3032
        %v3034 = vrot.slane %v177, 7
        %v3035 = vsel %vm2921, %v3014, %v3034
        %v3036 = vrot.slane %v178, 7
        %v3037 = vsel %vm2921, %v3016, %v3036
        %v3038 = vrot.slane %v179, 7
        %v3039 = vsel %vm2921, %v3018, %v3038
        %v3040 = vrot.slane %v180, 7
        %v3041 = vsel %vm2921, %v3020, %v3040
        %v3042 = vrot.slane %v181, 7
        %v3043 = vsel %vm2921, %v3022, %v3042
        %v3044 = vrot.slane %v182, 7
        %v3045 = vsel %vm2921, %v3024, %v3044
        %v3046 = vrot.slane %v183, 7
        %v3047 = vsel %vm2921, %v3026, %v3046
        %v3048 = vrot.slane %v184, 7
        %v3049 = vsel %vm2921, %v3028, %v3048
        %v3050 = vrot.slane %v185, 7
        %v3051 = vsel %vm2921, %v3030, %v3050
        %3052 = vrot.lane.b32.xlu0 %v2922, 24
        %v3053 = vpop.permute.xlu0 %3052
        %3054 = vrot.lane.b32.xlu0 %v2923, 24
        %v3055 = vpop.permute.xlu0 %3054
        %3056 = vrot.lane.b32.xlu0 %v2924, 24
        %v3057 = vpop.permute.xlu0 %3056
        %3058 = vrot.lane.b32.xlu0 %v2925, 24
        %v3059 = vpop.permute.xlu0 %3058
        %3060 = vrot.lane.b32.xlu0 %v2926, 24
        %v3061 = vpop.permute.xlu0 %3060
        %3062 = vrot.lane.b32.xlu0 %v2927, 24
        %v3063 = vpop.permute.xlu0 %3062
        %3064 = vrot.lane.b32.xlu0 %v2928, 24
        %v3065 = vpop.permute.xlu0 %3064
        %3066 = vrot.lane.b32.xlu0 %v2929, 24
        %v3067 = vpop.permute.xlu0 %3066
        %3068 = vrot.lane.b32.xlu0 %v2930, 24
        %v3069 = vpop.permute.xlu0 %3068
        %3070 = vrot.lane.b32.xlu0 %v2931, 24
        %v3071 = vpop.permute.xlu0 %3070
        %3072 = vrot.lane.b32.xlu0 %v2933, 24
        %v3073 = vpop.permute.xlu0 %3072
        %3074 = vrot.lane.b32.xlu0 %v2935, 24
        %v3075 = vpop.permute.xlu0 %3074
        %3076 = vrot.lane.b32.xlu0 %v2937, 24
        %v3077 = vpop.permute.xlu0 %3076
        %3078 = vrot.lane.b32.xlu0 %v2939, 24
        %v3079 = vpop.permute.xlu0 %3078
        %3080 = vrot.lane.b32.xlu0 %v2941, 24
        %v3081 = vpop.permute.xlu0 %3080
        %3082 = vrot.lane.b32.xlu0 %v2943, 24
        %v3083 = vpop.permute.xlu0 %3082
        %3084 = vrot.lane.b32.xlu0 %v2945, 24
        %v3085 = vpop.permute.xlu0 %3084
        %3086 = vrot.lane.b32.xlu0 %v2947, 24
        %v3087 = vpop.permute.xlu0 %3086
        %3088 = vrot.lane.b32.xlu0 %v2949, 24
        %v3089 = vpop.permute.xlu0 %3088
        %3090 = vrot.lane.b32.xlu0 %v2951, 24
        %v3091 = vpop.permute.xlu0 %3090
        %3092 = vrot.lane.b32.xlu0 %v2953, 24
        %v3093 = vpop.permute.xlu0 %3092
        %3094 = vrot.lane.b32.xlu0 %v2955, 24
        %v3095 = vpop.permute.xlu0 %3094
        %3096 = vrot.lane.b32.xlu0 %v2957, 24
        %v3097 = vpop.permute.xlu0 %3096
        %3098 = vrot.lane.b32.xlu0 %v2959, 24
        %v3099 = vpop.permute.xlu0 %3098
        %3100 = vrot.lane.b32.xlu0 %v2961, 24
        %v3101 = vpop.permute.xlu0 %3100
        %3102 = vrot.lane.b32.xlu0 %v2963, 24
        %v3103 = vpop.permute.xlu0 %3102
        %3104 = vrot.lane.b32.xlu0 %v2965, 24
        %v3105 = vpop.permute.xlu0 %3104
        %3106 = vrot.lane.b32.xlu0 %v2967, 24
        %v3107 = vpop.permute.xlu0 %3106
        %3108 = vrot.lane.b32.xlu0 %v2969, 24
        %v3109 = vpop.permute.xlu0 %3108
        %3110 = vrot.lane.b32.xlu0 %v2971, 24
        %v3111 = vpop.permute.xlu0 %3110
        %3112 = vrot.lane.b32.xlu0 %v2973, 24
        %v3113 = vpop.permute.xlu0 %3112
        %3114 = vrot.lane.b32.xlu0 %v2975, 24
        %v3115 = vpop.permute.xlu0 %3114
        %3116 = vrot.lane.b32.xlu0 %v2977, 24
        %v3117 = vpop.permute.xlu0 %3116
        %3118 = vrot.lane.b32.xlu0 %v2979, 24
        %v3119 = vpop.permute.xlu0 %3118
        %3120 = vrot.lane.b32.xlu0 %v2981, 24
        %v3121 = vpop.permute.xlu0 %3120
        %3122 = vrot.lane.b32.xlu0 %v2983, 24
        %v3123 = vpop.permute.xlu0 %3122
        %3124 = vrot.lane.b32.xlu0 %v2985, 24
        %v3125 = vpop.permute.xlu0 %3124
        %3126 = vrot.lane.b32.xlu0 %v2987, 24
        %v3127 = vpop.permute.xlu0 %3126
        %3128 = vrot.lane.b32.xlu0 %v2989, 24
        %v3129 = vpop.permute.xlu0 %3128
        %3130 = vrot.lane.b32.xlu0 %v2991, 24
        %v3131 = vpop.permute.xlu0 %3130
        %3132 = vrot.lane.b32.xlu0 %v2993, 24
        %v3133 = vpop.permute.xlu0 %3132
        %3134 = vrot.lane.b32.xlu0 %v2995, 24
        %v3135 = vpop.permute.xlu0 %3134
        %3136 = vrot.lane.b32.xlu0 %v2997, 24
        %v3137 = vpop.permute.xlu0 %3136
        %3138 = vrot.lane.b32.xlu0 %v2999, 24
        %v3139 = vpop.permute.xlu0 %3138
        %3140 = vrot.lane.b32.xlu0 %v3001, 24
        %v3141 = vpop.permute.xlu0 %3140
        %3142 = vrot.lane.b32.xlu0 %v3003, 24
        %v3143 = vpop.permute.xlu0 %3142
        %3144 = vrot.lane.b32.xlu0 %v3005, 24
        %v3145 = vpop.permute.xlu0 %3144
        %3146 = vrot.lane.b32.xlu0 %v3007, 24
        %v3147 = vpop.permute.xlu0 %3146
        %3148 = vrot.lane.b32.xlu0 %v3009, 24
        %v3149 = vpop.permute.xlu0 %3148
        %3150 = vrot.lane.b32.xlu0 %v3011, 24
        %v3151 = vpop.permute.xlu0 %3150
        %3152 = vrot.lane.b32.xlu0 %v3013, 24
        %v3153 = vpop.permute.xlu0 %3152
        %3154 = vrot.lane.b32.xlu0 %v3015, 24
        %v3155 = vpop.permute.xlu0 %3154
        %3156 = vrot.lane.b32.xlu0 %v3017, 24
        %v3157 = vpop.permute.xlu0 %3156
        %3158 = vrot.lane.b32.xlu0 %v3019, 24
        %v3159 = vpop.permute.xlu0 %3158
        %3160 = vrot.lane.b32.xlu0 %v3021, 24
        %v3161 = vpop.permute.xlu0 %3160
        %3162 = vrot.lane.b32.xlu0 %v3023, 24
        %v3163 = vpop.permute.xlu0 %3162
        %3164 = vrot.lane.b32.xlu0 %v3025, 24
        %v3165 = vpop.permute.xlu0 %3164
        %3166 = vrot.lane.b32.xlu0 %v3027, 24
        %v3167 = vpop.permute.xlu0 %3166
        %3168 = vrot.lane.b32.xlu0 %v3029, 24
        %v3169 = vpop.permute.xlu0 %3168
        %3170 = vrot.lane.b32.xlu0 %v3031, 24
        %v3171 = vpop.permute.xlu0 %3170
        %3172 = vrot.lane.b32.xlu0 %v3033, 24
        %v3173 = vpop.permute.xlu0 %3172
        %3174 = vrot.lane.b32.xlu0 %v3035, 24
        %v3175 = vpop.permute.xlu0 %3174
        %3176 = vrot.lane.b32.xlu0 %v3037, 24
        %v3177 = vpop.permute.xlu0 %3176
        %3178 = vrot.lane.b32.xlu0 %v3039, 24
        %v3179 = vpop.permute.xlu0 %3178
        %3180 = vrot.lane.b32.xlu0 %v3041, 24
        %v3181 = vpop.permute.xlu0 %3180
        %3182 = vrot.lane.b32.xlu0 %v3043, 24
        %v3183 = vpop.permute.xlu0 %3182
        %3184 = vrot.lane.b32.xlu0 %v3045, 24
        %v3185 = vpop.permute.xlu0 %3184
        %3186 = vrot.lane.b32.xlu0 %v3047, 24
        %v3187 = vpop.permute.xlu0 %3186
        %3188 = vrot.lane.b32.xlu0 %v3049, 24
        %v3189 = vpop.permute.xlu0 %3188
        %3190 = vrot.lane.b32.xlu0 %v3051, 24
        %v3191 = vpop.permute.xlu0 %3190
        %v3192 = vsel %vm1436, %v3053, %v3055
        %v3193 = vsel %vm1436, %v3055, %v3057
        %v3194 = vsel %vm1436, %v3057, %v3059
        %v3195 = vsel %vm1436, %v3059, %v3061
        %v3196 = vsel %vm1436, %v3061, %v3063
        %v3197 = vsel %vm1436, %v3063, %v3065
        %v3198 = vsel %vm1436, %v3065, %v3067
        %v3199 = vsel %vm1436, %v3067, %v3069
        %v3200 = vsel %vm1436, %v3069, %v3071
        %v3201 = vsel %vm1436, %v3073, %v3075
        %v3202 = vsel %vm1436, %v3075, %v3077
        %v3203 = vsel %vm1436, %v3077, %v3079
        %v3204 = vsel %vm1436, %v3079, %v3081
        %v3205 = vsel %vm1436, %v3081, %v3083
        %v3206 = vsel %vm1436, %v3083, %v3085
        %v3207 = vsel %vm1436, %v3085, %v3087
        %v3208 = vsel %vm1436, %v3087, %v3089
        %v3209 = vsel %vm1436, %v3089, %v3091
        %v3210 = vsel %vm1436, %v3093, %v3095
        %v3211 = vsel %vm1436, %v3095, %v3097
        %v3212 = vsel %vm1436, %v3097, %v3099
        %v3213 = vsel %vm1436, %v3099, %v3101
        %v3214 = vsel %vm1436, %v3101, %v3103
        %v3215 = vsel %vm1436, %v3103, %v3105
        %v3216 = vsel %vm1436, %v3105, %v3107
        %v3217 = vsel %vm1436, %v3107, %v3109
        %v3218 = vsel %vm1436, %v3109, %v3111
        %v3219 = vsel %vm1436, %v3113, %v3115
        %v3220 = vsel %vm1436, %v3115, %v3117
        %v3221 = vsel %vm1436, %v3117, %v3119
        %v3222 = vsel %vm1436, %v3119, %v3121
        %v3223 = vsel %vm1436, %v3121, %v3123
        %v3224 = vsel %vm1436, %v3123, %v3125
        %v3225 = vsel %vm1436, %v3125, %v3127
        %v3226 = vsel %vm1436, %v3127, %v3129
        %v3227 = vsel %vm1436, %v3129, %v3131
        %v3228 = vsel %vm1436, %v3133, %v3135
        %v3229 = vsel %vm1436, %v3135, %v3137
        %v3230 = vsel %vm1436, %v3137, %v3139
        %v3231 = vsel %vm1436, %v3139, %v3141
        %v3232 = vsel %vm1436, %v3141, %v3143
        %v3233 = vsel %vm1436, %v3143, %v3145
        %v3234 = vsel %vm1436, %v3145, %v3147
        %v3235 = vsel %vm1436, %v3147, %v3149
        %v3236 = vsel %vm1436, %v3149, %v3151
        %v3237 = vsel %vm1436, %v3153, %v3155
        %v3238 = vsel %vm1436, %v3155, %v3157
        %v3239 = vsel %vm1436, %v3157, %v3159
        %v3240 = vsel %vm1436, %v3159, %v3161
        %v3241 = vsel %vm1436, %v3161, %v3163
        %v3242 = vsel %vm1436, %v3163, %v3165
        %v3243 = vsel %vm1436, %v3165, %v3167
        %v3244 = vsel %vm1436, %v3167, %v3169
        %v3245 = vsel %vm1436, %v3169, %v3171
        %v3246 = vsel %vm1436, %v3173, %v3175
        %v3247 = vsel %vm1436, %v3175, %v3177
        %v3248 = vsel %vm1436, %v3177, %v3179
        %v3249 = vsel %vm1436, %v3179, %v3181
        %v3250 = vsel %vm1436, %v3181, %v3183
        %v3251 = vsel %vm1436, %v3183, %v3185
        %v3252 = vsel %vm1436, %v3185, %v3187
        %v3253 = vsel %vm1436, %v3187, %v3189
        %v3254 = vsel %vm1436, %v3189, %v3191
        %v3325 = vsub.f32 %v2851, %v3053
        %v3326 = vsub.f32 %v2852, %v3192
        %v3327 = vsub.f32 %v2853, %v3193
        %v3328 = vsub.f32 %v2854, %v3194
        %v3329 = vsub.f32 %v2855, %v3195
        %v3330 = vsub.f32 %v2856, %v3196
        %v3331 = vsub.f32 %v2857, %v3197
        %v3332 = vsub.f32 %v2858, %v3198
        %v3333 = vsub.f32 %v2859, %v3199
        %v3334 = vsub.f32 %v2860, %v3200
        %v3335 = vsub.f32 %v2861, %v3073
        %v3336 = vsub.f32 %v2862, %v3201
        %v3337 = vsub.f32 %v2863, %v3202
        %v3338 = vsub.f32 %v2864, %v3203
        %v3339 = vsub.f32 %v2865, %v3204
        %v3340 = vsub.f32 %v2866, %v3205
        %v3341 = vsub.f32 %v2867, %v3206
        %v3342 = vsub.f32 %v2868, %v3207
        %v3343 = vsub.f32 %v2869, %v3208
        %v3344 = vsub.f32 %v2870, %v3209
        %v3345 = vsub.f32 %v2871, %v3093
        %v3346 = vsub.f32 %v2872, %v3210
        %v3347 = vsub.f32 %v2873, %v3211
        %v3348 = vsub.f32 %v2874, %v3212
        %v3349 = vsub.f32 %v2875, %v3213
        %v3350 = vsub.f32 %v2876, %v3214
        %v3351 = vsub.f32 %v2877, %v3215
        %v3352 = vsub.f32 %v2878, %v3216
        %v3353 = vsub.f32 %v2879, %v3217
        %v3354 = vsub.f32 %v2880, %v3218
        %v3355 = vsub.f32 %v2881, %v3113
        %v3356 = vsub.f32 %v2882, %v3219
        %v3357 = vsub.f32 %v2883, %v3220
        %v3358 = vsub.f32 %v2884, %v3221
        %v3359 = vsub.f32 %v2885, %v3222
        %v3360 = vsub.f32 %v2886, %v3223
        %v3361 = vsub.f32 %v2887, %v3224
        %v3362 = vsub.f32 %v2888, %v3225
        %v3363 = vsub.f32 %v2889, %v3226
        %v3364 = vsub.f32 %v2890, %v3227
        %v3365 = vsub.f32 %v2891, %v3133
        %v3366 = vsub.f32 %v2892, %v3228
        %v3367 = vsub.f32 %v2893, %v3229
        %v3368 = vsub.f32 %v2894, %v3230
        %v3369 = vsub.f32 %v2895, %v3231
        %v3370 = vsub.f32 %v2896, %v3232
        %v3371 = vsub.f32 %v2897, %v3233
        %v3372 = vsub.f32 %v2898, %v3234
        %v3373 = vsub.f32 %v2899, %v3235
        %v3374 = vsub.f32 %v2900, %v3236
        %v3375 = vsub.f32 %v2901, %v3153
        %v3376 = vsub.f32 %v2902, %v3237
        %v3377 = vsub.f32 %v2903, %v3238
        %v3378 = vsub.f32 %v2904, %v3239
        %v3379 = vsub.f32 %v2905, %v3240
        %v3380 = vsub.f32 %v2906, %v3241
        %v3381 = vsub.f32 %v2907, %v3242
        %v3382 = vsub.f32 %v2908, %v3243
        %v3383 = vsub.f32 %v2909, %v3244
        %v3384 = vsub.f32 %v2910, %v3245
        %v3385 = vsub.f32 %v2911, %v3173
        %v3386 = vsub.f32 %v2912, %v3246
        %v3387 = vsub.f32 %v2913, %v3247
        %v3388 = vsub.f32 %v2914, %v3248
        %v3389 = vsub.f32 %v2915, %v3249
        %v3390 = vsub.f32 %v2916, %v3250
        %v3391 = vsub.f32 %v2917, %v3251
        %v3392 = vsub.f32 %v2918, %v3252
        %v3393 = vsub.f32 %v2919, %v3253
        %v3394 = vsub.f32 %v2920, %v3254
        %vm3465 = vcmask 1045504
        %v3466 = vrot.slane %v3325, 2
        %v3467 = vrot.slane %v3335, 2
        %v3468 = vsel %vm3465, %v3466, %v3467
        %v3469 = vrot.slane %v3326, 2
        %v3470 = vrot.slane %v3336, 2
        %v3471 = vsel %vm3465, %v3469, %v3470
        %v3472 = vrot.slane %v3327, 2
        %v3473 = vrot.slane %v3337, 2
        %v3474 = vsel %vm3465, %v3472, %v3473
        %v3475 = vrot.slane %v3328, 2
        %v3476 = vrot.slane %v3338, 2
        %v3477 = vsel %vm3465, %v3475, %v3476
        %v3478 = vrot.slane %v3329, 2
        %v3479 = vrot.slane %v3339, 2
        %v3480 = vsel %vm3465, %v3478, %v3479
        %v3481 = vrot.slane %v3330, 2
        %v3482 = vrot.slane %v3340, 2
        %v3483 = vsel %vm3465, %v3481, %v3482
        %v3484 = vrot.slane %v3331, 2
        %v3485 = vrot.slane %v3341, 2
        %v3486 = vsel %vm3465, %v3484, %v3485
        %v3487 = vrot.slane %v3332, 2
        %v3488 = vrot.slane %v3342, 2
        %v3489 = vsel %vm3465, %v3487, %v3488
        %v3490 = vrot.slane %v3333, 2
        %v3491 = vrot.slane %v3343, 2
        %v3492 = vsel %vm3465, %v3490, %v3491
        %v3493 = vrot.slane %v3334, 2
        %v3494 = vrot.slane %v3344, 2
        %v3495 = vsel %vm3465, %v3493, %v3494
        %v3496 = vrot.slane %v3345, 2
        %v3497 = vsel %vm3465, %v3467, %v3496
        %v3498 = vrot.slane %v3346, 2
        %v3499 = vsel %vm3465, %v3470, %v3498
        %v3500 = vrot.slane %v3347, 2
        %v3501 = vsel %vm3465, %v3473, %v3500
        %v3502 = vrot.slane %v3348, 2
        %v3503 = vsel %vm3465, %v3476, %v3502
        %v3504 = vrot.slane %v3349, 2
        %v3505 = vsel %vm3465, %v3479, %v3504
        %v3506 = vrot.slane %v3350, 2
        %v3507 = vsel %vm3465, %v3482, %v3506
        %v3508 = vrot.slane %v3351, 2
        %v3509 = vsel %vm3465, %v3485, %v3508
        %v3510 = vrot.slane %v3352, 2
        %v3511 = vsel %vm3465, %v3488, %v3510
        %v3512 = vrot.slane %v3353, 2
        %v3513 = vsel %vm3465, %v3491, %v3512
        %v3514 = vrot.slane %v3354, 2
        %v3515 = vsel %vm3465, %v3494, %v3514
        %v3516 = vrot.slane %v3355, 2
        %v3517 = vsel %vm3465, %v3496, %v3516
        %v3518 = vrot.slane %v3356, 2
        %v3519 = vsel %vm3465, %v3498, %v3518
        %v3520 = vrot.slane %v3357, 2
        %v3521 = vsel %vm3465, %v3500, %v3520
        %v3522 = vrot.slane %v3358, 2
        %v3523 = vsel %vm3465, %v3502, %v3522
        %v3524 = vrot.slane %v3359, 2
        %v3525 = vsel %vm3465, %v3504, %v3524
        %v3526 = vrot.slane %v3360, 2
        %v3527 = vsel %vm3465, %v3506, %v3526
        %v3528 = vrot.slane %v3361, 2
        %v3529 = vsel %vm3465, %v3508, %v3528
        %v3530 = vrot.slane %v3362, 2
        %v3531 = vsel %vm3465, %v3510, %v3530
        %v3532 = vrot.slane %v3363, 2
        %v3533 = vsel %vm3465, %v3512, %v3532
        %v3534 = vrot.slane %v3364, 2
        %v3535 = vsel %vm3465, %v3514, %v3534
        %v3536 = vrot.slane %v3365, 2
        %v3537 = vsel %vm3465, %v3516, %v3536
        %v3538 = vrot.slane %v3366, 2
        %v3539 = vsel %vm3465, %v3518, %v3538
        %v3540 = vrot.slane %v3367, 2
        %v3541 = vsel %vm3465, %v3520, %v3540
        %v3542 = vrot.slane %v3368, 2
        %v3543 = vsel %vm3465, %v3522, %v3542
        %v3544 = vrot.slane %v3369, 2
        %v3545 = vsel %vm3465, %v3524, %v3544
        %v3546 = vrot.slane %v3370, 2
        %v3547 = vsel %vm3465, %v3526, %v3546
        %v3548 = vrot.slane %v3371, 2
        %v3549 = vsel %vm3465, %v3528, %v3548
        %v3550 = vrot.slane %v3372, 2
        %v3551 = vsel %vm3465, %v3530, %v3550
        %v3552 = vrot.slane %v3373, 2
        %v3553 = vsel %vm3465, %v3532, %v3552
        %v3554 = vrot.slane %v3374, 2
        %v3555 = vsel %vm3465, %v3534, %v3554
        %v3556 = vrot.slane %v3375, 2
        %v3557 = vsel %vm3465, %v3536, %v3556
        %v3558 = vrot.slane %v3376, 2
        %v3559 = vsel %vm3465, %v3538, %v3558
        %v3560 = vrot.slane %v3377, 2
        %v3561 = vsel %vm3465, %v3540, %v3560
        %v3562 = vrot.slane %v3378, 2
        %v3563 = vsel %vm3465, %v3542, %v3562
        %v3564 = vrot.slane %v3379, 2
        %v3565 = vsel %vm3465, %v3544, %v3564
        %v3566 = vrot.slane %v3380, 2
        %v3567 = vsel %vm3465, %v3546, %v3566
        %v3568 = vrot.slane %v3381, 2
        %v3569 = vsel %vm3465, %v3548, %v3568
        %v3570 = vrot.slane %v3382, 2
        %v3571 = vsel %vm3465, %v3550, %v3570
        %v3572 = vrot.slane %v3383, 2
        %v3573 = vsel %vm3465, %v3552, %v3572
        %v3574 = vrot.slane %v3384, 2
        %v3575 = vsel %vm3465, %v3554, %v3574
        %v3576 = vrot.slane %v3385, 2
        %v3577 = vsel %vm3465, %v3556, %v3576
        %v3578 = vrot.slane %v3386, 2
        %v3579 = vsel %vm3465, %v3558, %v3578
        %v3580 = vrot.slane %v3387, 2
        %v3581 = vsel %vm3465, %v3560, %v3580
        %v3582 = vrot.slane %v3388, 2
        %v3583 = vsel %vm3465, %v3562, %v3582
        %v3584 = vrot.slane %v3389, 2
        %v3585 = vsel %vm3465, %v3564, %v3584
        %v3586 = vrot.slane %v3390, 2
        %v3587 = vsel %vm3465, %v3566, %v3586
        %v3588 = vrot.slane %v3391, 2
        %v3589 = vsel %vm3465, %v3568, %v3588
        %v3590 = vrot.slane %v3392, 2
        %v3591 = vsel %vm3465, %v3570, %v3590
        %v3592 = vrot.slane %v3393, 2
        %v3593 = vsel %vm3465, %v3572, %v3592
        %v3594 = vrot.slane %v3394, 2
        %v3595 = vsel %vm3465, %v3574, %v3594
        %3596 = vrot.lane.b32.xlu0 %v3468, 80
        %v3597 = vpop.permute.xlu0 %3596
        %3598 = vrot.lane.b32.xlu0 %v3471, 80
        %v3599 = vpop.permute.xlu0 %3598
        %3600 = vrot.lane.b32.xlu0 %v3474, 80
        %v3601 = vpop.permute.xlu0 %3600
        %3602 = vrot.lane.b32.xlu0 %v3477, 80
        %v3603 = vpop.permute.xlu0 %3602
        %3604 = vrot.lane.b32.xlu0 %v3480, 80
        %v3605 = vpop.permute.xlu0 %3604
        %3606 = vrot.lane.b32.xlu0 %v3483, 80
        %v3607 = vpop.permute.xlu0 %3606
        %3608 = vrot.lane.b32.xlu0 %v3486, 80
        %v3609 = vpop.permute.xlu0 %3608
        %3610 = vrot.lane.b32.xlu0 %v3489, 80
        %v3611 = vpop.permute.xlu0 %3610
        %3612 = vrot.lane.b32.xlu0 %v3492, 80
        %v3613 = vpop.permute.xlu0 %3612
        %3614 = vrot.lane.b32.xlu0 %v3495, 80
        %v3615 = vpop.permute.xlu0 %3614
        %3616 = vrot.lane.b32.xlu0 %v3497, 80
        %v3617 = vpop.permute.xlu0 %3616
        %3618 = vrot.lane.b32.xlu0 %v3499, 80
        %v3619 = vpop.permute.xlu0 %3618
        %3620 = vrot.lane.b32.xlu0 %v3501, 80
        %v3621 = vpop.permute.xlu0 %3620
        %3622 = vrot.lane.b32.xlu0 %v3503, 80
        %v3623 = vpop.permute.xlu0 %3622
        %3624 = vrot.lane.b32.xlu0 %v3505, 80
        %v3625 = vpop.permute.xlu0 %3624
        %3626 = vrot.lane.b32.xlu0 %v3507, 80
        %v3627 = vpop.permute.xlu0 %3626
        %3628 = vrot.lane.b32.xlu0 %v3509, 80
        %v3629 = vpop.permute.xlu0 %3628
        %3630 = vrot.lane.b32.xlu0 %v3511, 80
        %v3631 = vpop.permute.xlu0 %3630
        %3632 = vrot.lane.b32.xlu0 %v3513, 80
        %v3633 = vpop.permute.xlu0 %3632
        %3634 = vrot.lane.b32.xlu0 %v3515, 80
        %v3635 = vpop.permute.xlu0 %3634
        %3636 = vrot.lane.b32.xlu0 %v3517, 80
        %v3637 = vpop.permute.xlu0 %3636
        %3638 = vrot.lane.b32.xlu0 %v3519, 80
        %v3639 = vpop.permute.xlu0 %3638
        %3640 = vrot.lane.b32.xlu0 %v3521, 80
        %v3641 = vpop.permute.xlu0 %3640
        %3642 = vrot.lane.b32.xlu0 %v3523, 80
        %v3643 = vpop.permute.xlu0 %3642
        %3644 = vrot.lane.b32.xlu0 %v3525, 80
        %v3645 = vpop.permute.xlu0 %3644
        %3646 = vrot.lane.b32.xlu0 %v3527, 80
        %v3647 = vpop.permute.xlu0 %3646
        %3648 = vrot.lane.b32.xlu0 %v3529, 80
        %v3649 = vpop.permute.xlu0 %3648
        %3650 = vrot.lane.b32.xlu0 %v3531, 80
        %v3651 = vpop.permute.xlu0 %3650
        %3652 = vrot.lane.b32.xlu0 %v3533, 80
        %v3653 = vpop.permute.xlu0 %3652
        %3654 = vrot.lane.b32.xlu0 %v3535, 80
        %v3655 = vpop.permute.xlu0 %3654
        %3656 = vrot.lane.b32.xlu0 %v3537, 80
        %v3657 = vpop.permute.xlu0 %3656
        %3658 = vrot.lane.b32.xlu0 %v3539, 80
        %v3659 = vpop.permute.xlu0 %3658
        %3660 = vrot.lane.b32.xlu0 %v3541, 80
        %v3661 = vpop.permute.xlu0 %3660
        %3662 = vrot.lane.b32.xlu0 %v3543, 80
        %v3663 = vpop.permute.xlu0 %3662
        %3664 = vrot.lane.b32.xlu0 %v3545, 80
        %v3665 = vpop.permute.xlu0 %3664
        %3666 = vrot.lane.b32.xlu0 %v3547, 80
        %v3667 = vpop.permute.xlu0 %3666
        %3668 = vrot.lane.b32.xlu0 %v3549, 80
        %v3669 = vpop.permute.xlu0 %3668
        %3670 = vrot.lane.b32.xlu0 %v3551, 80
        %v3671 = vpop.permute.xlu0 %3670
        %3672 = vrot.lane.b32.xlu0 %v3553, 80
        %v3673 = vpop.permute.xlu0 %3672
        %3674 = vrot.lane.b32.xlu0 %v3555, 80
        %v3675 = vpop.permute.xlu0 %3674
        %3676 = vrot.lane.b32.xlu0 %v3557, 80
        %v3677 = vpop.permute.xlu0 %3676
        %3678 = vrot.lane.b32.xlu0 %v3559, 80
        %v3679 = vpop.permute.xlu0 %3678
        %3680 = vrot.lane.b32.xlu0 %v3561, 80
        %v3681 = vpop.permute.xlu0 %3680
        %3682 = vrot.lane.b32.xlu0 %v3563, 80
        %v3683 = vpop.permute.xlu0 %3682
        %3684 = vrot.lane.b32.xlu0 %v3565, 80
        %v3685 = vpop.permute.xlu0 %3684
        %3686 = vrot.lane.b32.xlu0 %v3567, 80
        %v3687 = vpop.permute.xlu0 %3686
        %3688 = vrot.lane.b32.xlu0 %v3569, 80
        %v3689 = vpop.permute.xlu0 %3688
        %3690 = vrot.lane.b32.xlu0 %v3571, 80
        %v3691 = vpop.permute.xlu0 %3690
        %3692 = vrot.lane.b32.xlu0 %v3573, 80
        %v3693 = vpop.permute.xlu0 %3692
        %3694 = vrot.lane.b32.xlu0 %v3575, 80
        %v3695 = vpop.permute.xlu0 %3694
        %3696 = vrot.lane.b32.xlu0 %v3577, 80
        %v3697 = vpop.permute.xlu0 %3696
        %3698 = vrot.lane.b32.xlu0 %v3579, 80
        %v3699 = vpop.permute.xlu0 %3698
        %3700 = vrot.lane.b32.xlu0 %v3581, 80
        %v3701 = vpop.permute.xlu0 %3700
        %3702 = vrot.lane.b32.xlu0 %v3583, 80
        %v3703 = vpop.permute.xlu0 %3702
        %3704 = vrot.lane.b32.xlu0 %v3585, 80
        %v3705 = vpop.permute.xlu0 %3704
        %3706 = vrot.lane.b32.xlu0 %v3587, 80
        %v3707 = vpop.permute.xlu0 %3706
        %3708 = vrot.lane.b32.xlu0 %v3589, 80
        %v3709 = vpop.permute.xlu0 %3708
        %3710 = vrot.lane.b32.xlu0 %v3591, 80
        %v3711 = vpop.permute.xlu0 %3710
        %3712 = vrot.lane.b32.xlu0 %v3593, 80
        %v3713 = vpop.permute.xlu0 %3712
        %3714 = vrot.lane.b32.xlu0 %v3595, 80
        %v3715 = vpop.permute.xlu0 %3714
        %v3716 = vsel %vm1791, %v3597, %v3599
        %v3717 = vsel %vm1791, %v3599, %v3601
        %v3718 = vsel %vm1791, %v3601, %v3603
        %v3719 = vsel %vm1791, %v3603, %v3605
        %v3720 = vsel %vm1791, %v3605, %v3607
        %v3721 = vsel %vm1791, %v3607, %v3609
        %v3722 = vsel %vm1791, %v3609, %v3611
        %v3723 = vsel %vm1791, %v3611, %v3613
        %v3724 = vsel %vm1791, %v3613, %v3615
        %v3725 = vsel %vm1791, %v3617, %v3619
        %v3726 = vsel %vm1791, %v3619, %v3621
        %v3727 = vsel %vm1791, %v3621, %v3623
        %v3728 = vsel %vm1791, %v3623, %v3625
        %v3729 = vsel %vm1791, %v3625, %v3627
        %v3730 = vsel %vm1791, %v3627, %v3629
        %v3731 = vsel %vm1791, %v3629, %v3631
        %v3732 = vsel %vm1791, %v3631, %v3633
        %v3733 = vsel %vm1791, %v3633, %v3635
        %v3734 = vsel %vm1791, %v3637, %v3639
        %v3735 = vsel %vm1791, %v3639, %v3641
        %v3736 = vsel %vm1791, %v3641, %v3643
        %v3737 = vsel %vm1791, %v3643, %v3645
        %v3738 = vsel %vm1791, %v3645, %v3647
        %v3739 = vsel %vm1791, %v3647, %v3649
        %v3740 = vsel %vm1791, %v3649, %v3651
        %v3741 = vsel %vm1791, %v3651, %v3653
        %v3742 = vsel %vm1791, %v3653, %v3655
        %v3743 = vsel %vm1791, %v3657, %v3659
        %v3744 = vsel %vm1791, %v3659, %v3661
        %v3745 = vsel %vm1791, %v3661, %v3663
        %v3746 = vsel %vm1791, %v3663, %v3665
        %v3747 = vsel %vm1791, %v3665, %v3667
        %v3748 = vsel %vm1791, %v3667, %v3669
        %v3749 = vsel %vm1791, %v3669, %v3671
        %v3750 = vsel %vm1791, %v3671, %v3673
        %v3751 = vsel %vm1791, %v3673, %v3675
        %v3752 = vsel %vm1791, %v3677, %v3679
        %v3753 = vsel %vm1791, %v3679, %v3681
        %v3754 = vsel %vm1791, %v3681, %v3683
        %v3755 = vsel %vm1791, %v3683, %v3685
        %v3756 = vsel %vm1791, %v3685, %v3687
        %v3757 = vsel %vm1791, %v3687, %v3689
        %v3758 = vsel %vm1791, %v3689, %v3691
        %v3759 = vsel %vm1791, %v3691, %v3693
        %v3760 = vsel %vm1791, %v3693, %v3695
        %v3761 = vsel %vm1791, %v3697, %v3699
        %v3762 = vsel %vm1791, %v3699, %v3701
        %v3763 = vsel %vm1791, %v3701, %v3703
        %v3764 = vsel %vm1791, %v3703, %v3705
        %v3765 = vsel %vm1791, %v3705, %v3707
        %v3766 = vsel %vm1791, %v3707, %v3709
        %v3767 = vsel %vm1791, %v3709, %v3711
        %v3768 = vsel %vm1791, %v3711, %v3713
        %v3769 = vsel %vm1791, %v3713, %v3715
        %s3824 = scalar_lea.vmem %s109, 1728 [#allocation2]
        %3825 = vst [vmem:[%s3824] sm:$0xff] %v3716
        %3826 = vst [vmem:[%s3824 + $0x8] sm:$0xff] %v3717
        %3827 = vst [vmem:[%s3824 + $0x10] sm:$0xff] %v3718
        %3828 = vst [vmem:[%s3824 + $0x18] sm:$0xff] %v3719
        %3829 = vst [vmem:[%s3824 + $0x20] sm:$0xff] %v3720
        %3830 = vst [vmem:[%s3824 + $0x28] sm:$0xff] %v3721
        %3831 = vst [vmem:[%s3824 + $0x30] sm:$0xff] %v3722
        %3832 = vst [vmem:[%s3824 + $0x38] sm:$0xff] %v3723
        %3833 = vst [vmem:[%s3824 + $0x40] sm:$0xff] %v3724
        %3834 = vst [vmem:[%s3824 + $0x48] sm:$0xff] %v3725
        %3835 = vst [vmem:[%s3824 + $0x50] sm:$0xff] %v3726
        %3836 = vst [vmem:[%s3824 + $0x58] sm:$0xff] %v3727
        %3837 = vst [vmem:[%s3824 + $0x60] sm:$0xff] %v3728
        %3838 = vst [vmem:[%s3824 + $0x68] sm:$0xff] %v3729
        %3839 = vst [vmem:[%s3824 + $0x70] sm:$0xff] %v3730
        %3840 = vst [vmem:[%s3824 + $0x78] sm:$0xff] %v3731
        %3841 = vst [vmem:[%s3824 + $0x80] sm:$0xff] %v3732
        %3842 = vst [vmem:[%s3824 + $0x88] sm:$0xff] %v3733
        %3843 = vst [vmem:[%s3824 + $0x90] sm:$0xff] %v3734
        %3844 = vst [vmem:[%s3824 + $0x98] sm:$0xff] %v3735
        %3845 = vst [vmem:[%s3824 + $0xa0] sm:$0xff] %v3736
        %3846 = vst [vmem:[%s3824 + $0xa8] sm:$0xff] %v3737
        %3847 = vst [vmem:[%s3824 + $0xb0] sm:$0xff] %v3738
        %3848 = vst [vmem:[%s3824 + $0xb8] sm:$0xff] %v3739
        %3849 = vst [vmem:[%s3824 + $0xc0] sm:$0xff] %v3740
        %3850 = vst [vmem:[%s3824 + $0xc8] sm:$0xff] %v3741
        %3851 = vst [vmem:[%s3824 + $0xd0] sm:$0xff] %v3742
        %3852 = vst [vmem:[%s3824 + $0xd8] sm:$0xff] %v3743
        %3853 = vst [vmem:[%s3824 + $0xe0] sm:$0xff] %v3744
        %3854 = vst [vmem:[%s3824 + $0xe8] sm:$0xff] %v3745
        %3855 = vst [vmem:[%s3824 + $0xf0] sm:$0xff] %v3746
        %3856 = vst [vmem:[%s3824 + $0xf8] sm:$0xff] %v3747
        %3857 = vst [vmem:[%s3824 + $0x100] sm:$0xff] %v3748
        %3858 = vst [vmem:[%s3824 + $0x108] sm:$0xff] %v3749
        %3859 = vst [vmem:[%s3824 + $0x110] sm:$0xff] %v3750
        %3860 = vst [vmem:[%s3824 + $0x118] sm:$0xff] %v3751
        %3861 = vst [vmem:[%s3824 + $0x120] sm:$0xff] %v3752
        %3862 = vst [vmem:[%s3824 + $0x128] sm:$0xff] %v3753
        %3863 = vst [vmem:[%s3824 + $0x130] sm:$0xff] %v3754
        %3864 = vst [vmem:[%s3824 + $0x138] sm:$0xff] %v3755
        %3865 = vst [vmem:[%s3824 + $0x140] sm:$0xff] %v3756
        %3866 = vst [vmem:[%s3824 + $0x148] sm:$0xff] %v3757
        %3867 = vst [vmem:[%s3824 + $0x150] sm:$0xff] %v3758
        %3868 = vst [vmem:[%s3824 + $0x158] sm:$0xff] %v3759
        %3869 = vst [vmem:[%s3824 + $0x160] sm:$0xff] %v3760
        %3870 = vst [vmem:[%s3824 + $0x168] sm:$0xff] %v3761
        %3871 = vst [vmem:[%s3824 + $0x170] sm:$0xff] %v3762
        %3872 = vst [vmem:[%s3824 + $0x178] sm:$0xff] %v3763
        %3873 = vst [vmem:[%s3824 + $0x180] sm:$0xff] %v3764
        %3874 = vst [vmem:[%s3824 + $0x188] sm:$0xff] %v3765
        %3875 = vst [vmem:[%s3824 + $0x190] sm:$0xff] %v3766
        %3876 = vst [vmem:[%s3824 + $0x198] sm:$0xff] %v3767
        %3877 = vst [vmem:[%s3824 + $0x1a0] sm:$0xff] %v3768
        %3878 = vst [vmem:[%s3824 + $0x1a8] sm:$0xff] %v3769
        %v3879 = vld [vmem:[%s114] sm:$0xfc]
        %v3880 = vld [vmem:[%s114 + $0x8] sm:$0xfc]
        %v3881 = vld [vmem:[%s114 + $0x10] sm:$0xfc]
        %v3882 = vld [vmem:[%s114 + $0x18] sm:$0xfc]
        %v3883 = vld [vmem:[%s114 + $0x20] sm:$0xfc]
        %v3884 = vld [vmem:[%s114 + $0x28] sm:$0xfc]
        %v3885 = vld [vmem:[%s114 + $0x30] sm:$0xfc]
        %v3886 = vld [vmem:[%s114 + $0x38] sm:$0xfc]
        %v3887 = vld [vmem:[%s114 + $0x40] sm:$0xfc]
        %v3888 = vld [vmem:[%s114 + $0x48] sm:$0xfc]
        %v3889 = vld [vmem:[%s114 + $0x50] sm:$0xff]
        %v3890 = vld [vmem:[%s114 + $0x58] sm:$0xff]
        %v3891 = vld [vmem:[%s114 + $0x60] sm:$0xff]
        %v3892 = vld [vmem:[%s114 + $0x68] sm:$0xff]
        %v3893 = vld [vmem:[%s114 + $0x70] sm:$0xff]
        %v3894 = vld [vmem:[%s114 + $0x78] sm:$0xff]
        %v3895 = vld [vmem:[%s114 + $0x80] sm:$0xff]
        %v3896 = vld [vmem:[%s114 + $0x88] sm:$0xff]
        %v3897 = vld [vmem:[%s114 + $0x90] sm:$0xff]
        %v3898 = vld [vmem:[%s114 + $0x98] sm:$0xff]
        %v3899 = vld [vmem:[%s114 + $0xa0] sm:$0xff]
        %v3900 = vld [vmem:[%s114 + $0xa8] sm:$0xff]
        %v3901 = vld [vmem:[%s114 + $0xb0] sm:$0xff]
        %v3902 = vld [vmem:[%s114 + $0xb8] sm:$0xff]
        %v3903 = vld [vmem:[%s114 + $0xc0] sm:$0xff]
        %v3904 = vld [vmem:[%s114 + $0xc8] sm:$0xff]
        %v3905 = vld [vmem:[%s114 + $0xd0] sm:$0xff]
        %v3906 = vld [vmem:[%s114 + $0xd8] sm:$0xff]
        %v3907 = vld [vmem:[%s114 + $0xe0] sm:$0xff]
        %v3908 = vld [vmem:[%s114 + $0xe8] sm:$0xff]
        %v3909 = vld [vmem:[%s114 + $0xf0] sm:$0xff]
        %v3910 = vld [vmem:[%s114 + $0xf8] sm:$0xff]
        %v3911 = vld [vmem:[%s114 + $0x100] sm:$0xff]
        %v3912 = vld [vmem:[%s114 + $0x108] sm:$0xff]
        %v3913 = vld [vmem:[%s114 + $0x110] sm:$0xff]
        %v3914 = vld [vmem:[%s114 + $0x118] sm:$0xff]
        %v3915 = vld [vmem:[%s114 + $0x120] sm:$0xff]
        %v3916 = vld [vmem:[%s114 + $0x128] sm:$0xff]
        %v3917 = vld [vmem:[%s114 + $0x130] sm:$0xff]
        %v3918 = vld [vmem:[%s114 + $0x138] sm:$0xff]
        %v3919 = vld [vmem:[%s114 + $0x140] sm:$0xff]
        %v3920 = vld [vmem:[%s114 + $0x148] sm:$0xff]
        %v3921 = vld [vmem:[%s114 + $0x150] sm:$0xff]
        %v3922 = vld [vmem:[%s114 + $0x158] sm:$0xff]
        %v3923 = vld [vmem:[%s114 + $0x160] sm:$0xff]
        %v3924 = vld [vmem:[%s114 + $0x168] sm:$0xff]
        %v3925 = vld [vmem:[%s114 + $0x170] sm:$0xff]
        %v3926 = vld [vmem:[%s114 + $0x178] sm:$0xff]
        %v3927 = vld [vmem:[%s114 + $0x180] sm:$0xff]
        %v3928 = vld [vmem:[%s114 + $0x188] sm:$0xff]
        %v3929 = vld [vmem:[%s114 + $0x190] sm:$0xff]
        %v3930 = vld [vmem:[%s114 + $0x198] sm:$0xff]
        %v3931 = vld [vmem:[%s114 + $0x1a0] sm:$0xff]
        %v3932 = vld [vmem:[%s114 + $0x1a8] sm:$0xff]
        %v3933 = vld [vmem:[%s114 + $0x1b0] sm:$0xff]
        %v3934 = vld [vmem:[%s114 + $0x1b8] sm:$0xff]
        %v3935 = vld [vmem:[%s114 + $0x1c0] sm:$0xff]
        %v3936 = vld [vmem:[%s114 + $0x1c8] sm:$0xff]
        %v3937 = vld [vmem:[%s114 + $0x1d0] sm:$0xff]
        %v3938 = vld [vmem:[%s114 + $0x1d8] sm:$0xff]
        %v3939 = vld [vmem:[%s114 + $0x1e0] sm:$0x3]
        %v3940 = vld [vmem:[%s114 + $0x1e8] sm:$0x3]
        %v3941 = vld [vmem:[%s114 + $0x1f0] sm:$0x3]
        %v3942 = vld [vmem:[%s114 + $0x1f8] sm:$0x3]
        %v3943 = vld [vmem:[%s114 + $0x200] sm:$0x3]
        %v3944 = vld [vmem:[%s114 + $0x208] sm:$0x3]
        %v3945 = vld [vmem:[%s114 + $0x210] sm:$0x3]
        %v3946 = vld [vmem:[%s114 + $0x218] sm:$0x3]
        %v3947 = vld [vmem:[%s114 + $0x220] sm:$0x3]
        %v3948 = vld [vmem:[%s114 + $0x228] sm:$0x3]
        %v4019 = vsub.f32 %v3879, %v2922
        %v4020 = vsub.f32 %v3880, %v2923
        %v4021 = vsub.f32 %v3881, %v2924
        %v4022 = vsub.f32 %v3882, %v2925
        %v4023 = vsub.f32 %v3883, %v2926
        %v4024 = vsub.f32 %v3884, %v2927
        %v4025 = vsub.f32 %v3885, %v2928
        %v4026 = vsub.f32 %v3886, %v2929
        %v4027 = vsub.f32 %v3887, %v2930
        %v4028 = vsub.f32 %v3888, %v2931
        %v4029 = vsub.f32 %v3889, %v2933
        %v4030 = vsub.f32 %v3890, %v2935
        %v4031 = vsub.f32 %v3891, %v2937
        %v4032 = vsub.f32 %v3892, %v2939
        %v4033 = vsub.f32 %v3893, %v2941
        %v4034 = vsub.f32 %v3894, %v2943
        %v4035 = vsub.f32 %v3895, %v2945
        %v4036 = vsub.f32 %v3896, %v2947
        %v4037 = vsub.f32 %v3897, %v2949
        %v4038 = vsub.f32 %v3898, %v2951
        %v4039 = vsub.f32 %v3899, %v2953
        %v4040 = vsub.f32 %v3900, %v2955
        %v4041 = vsub.f32 %v3901, %v2957
        %v4042 = vsub.f32 %v3902, %v2959
        %v4043 = vsub.f32 %v3903, %v2961
        %v4044 = vsub.f32 %v3904, %v2963
        %v4045 = vsub.f32 %v3905, %v2965
        %v4046 = vsub.f32 %v3906, %v2967
        %v4047 = vsub.f32 %v3907, %v2969
        %v4048 = vsub.f32 %v3908, %v2971
        %v4049 = vsub.f32 %v3909, %v2973
        %v4050 = vsub.f32 %v3910, %v2975
        %v4051 = vsub.f32 %v3911, %v2977
        %v4052 = vsub.f32 %v3912, %v2979
        %v4053 = vsub.f32 %v3913, %v2981
        %v4054 = vsub.f32 %v3914, %v2983
        %v4055 = vsub.f32 %v3915, %v2985
        %v4056 = vsub.f32 %v3916, %v2987
        %v4057 = vsub.f32 %v3917, %v2989
        %v4058 = vsub.f32 %v3918, %v2991
        %v4059 = vsub.f32 %v3919, %v2993
        %v4060 = vsub.f32 %v3920, %v2995
        %v4061 = vsub.f32 %v3921, %v2997
        %v4062 = vsub.f32 %v3922, %v2999
        %v4063 = vsub.f32 %v3923, %v3001
        %v4064 = vsub.f32 %v3924, %v3003
        %v4065 = vsub.f32 %v3925, %v3005
        %v4066 = vsub.f32 %v3926, %v3007
        %v4067 = vsub.f32 %v3927, %v3009
        %v4068 = vsub.f32 %v3928, %v3011
        %v4069 = vsub.f32 %v3929, %v3013
        %v4070 = vsub.f32 %v3930, %v3015
        %v4071 = vsub.f32 %v3931, %v3017
        %v4072 = vsub.f32 %v3932, %v3019
        %v4073 = vsub.f32 %v3933, %v3021
        %v4074 = vsub.f32 %v3934, %v3023
        %v4075 = vsub.f32 %v3935, %v3025
        %v4076 = vsub.f32 %v3936, %v3027
        %v4077 = vsub.f32 %v3937, %v3029
        %v4078 = vsub.f32 %v3938, %v3031
        %v4079 = vsub.f32 %v3939, %v3033
        %v4080 = vsub.f32 %v3940, %v3035
        %v4081 = vsub.f32 %v3941, %v3037
        %v4082 = vsub.f32 %v3942, %v3039
        %v4083 = vsub.f32 %v3943, %v3041
        %v4084 = vsub.f32 %v3944, %v3043
        %v4085 = vsub.f32 %v3945, %v3045
        %v4086 = vsub.f32 %v3946, %v3047
        %v4087 = vsub.f32 %v3947, %v3049
        %v4088 = vsub.f32 %v3948, %v3051
        %v4159 = vrot.slane %v4019, 2
        %v4160 = vrot.slane %v4029, 2
        %v4161 = vsel %vm3465, %v4159, %v4160
        %v4162 = vrot.slane %v4020, 2
        %v4163 = vrot.slane %v4030, 2
        %v4164 = vsel %vm3465, %v4162, %v4163
        %v4165 = vrot.slane %v4021, 2
        %v4166 = vrot.slane %v4031, 2
        %v4167 = vsel %vm3465, %v4165, %v4166
        %v4168 = vrot.slane %v4022, 2
        %v4169 = vrot.slane %v4032, 2
        %v4170 = vsel %vm3465, %v4168, %v4169
        %v4171 = vrot.slane %v4023, 2
        %v4172 = vrot.slane %v4033, 2
        %v4173 = vsel %vm3465, %v4171, %v4172
        %v4174 = vrot.slane %v4024, 2
        %v4175 = vrot.slane %v4034, 2
        %v4176 = vsel %vm3465, %v4174, %v4175
        %v4177 = vrot.slane %v4025, 2
        %v4178 = vrot.slane %v4035, 2
        %v4179 = vsel %vm3465, %v4177, %v4178
        %v4180 = vrot.slane %v4026, 2
        %v4181 = vrot.slane %v4036, 2
        %v4182 = vsel %vm3465, %v4180, %v4181
        %v4183 = vrot.slane %v4027, 2
        %v4184 = vrot.slane %v4037, 2
        %v4185 = vsel %vm3465, %v4183, %v4184
        %v4186 = vrot.slane %v4028, 2
        %v4187 = vrot.slane %v4038, 2
        %v4188 = vsel %vm3465, %v4186, %v4187
        %v4189 = vrot.slane %v4039, 2
        %v4190 = vsel %vm3465, %v4160, %v4189
        %v4191 = vrot.slane %v4040, 2
        %v4192 = vsel %vm3465, %v4163, %v4191
        %v4193 = vrot.slane %v4041, 2
        %v4194 = vsel %vm3465, %v4166, %v4193
        %v4195 = vrot.slane %v4042, 2
        %v4196 = vsel %vm3465, %v4169, %v4195
        %v4197 = vrot.slane %v4043, 2
        %v4198 = vsel %vm3465, %v4172, %v4197
        %v4199 = vrot.slane %v4044, 2
        %v4200 = vsel %vm3465, %v4175, %v4199
        %v4201 = vrot.slane %v4045, 2
        %v4202 = vsel %vm3465, %v4178, %v4201
        %v4203 = vrot.slane %v4046, 2
        %v4204 = vsel %vm3465, %v4181, %v4203
        %v4205 = vrot.slane %v4047, 2
        %v4206 = vsel %vm3465, %v4184, %v4205
        %v4207 = vrot.slane %v4048, 2
        %v4208 = vsel %vm3465, %v4187, %v4207
        %v4209 = vrot.slane %v4049, 2
        %v4210 = vsel %vm3465, %v4189, %v4209
        %v4211 = vrot.slane %v4050, 2
        %v4212 = vsel %vm3465, %v4191, %v4211
        %v4213 = vrot.slane %v4051, 2
        %v4214 = vsel %vm3465, %v4193, %v4213
        %v4215 = vrot.slane %v4052, 2
        %v4216 = vsel %vm3465, %v4195, %v4215
        %v4217 = vrot.slane %v4053, 2
        %v4218 = vsel %vm3465, %v4197, %v4217
        %v4219 = vrot.slane %v4054, 2
        %v4220 = vsel %vm3465, %v4199, %v4219
        %v4221 = vrot.slane %v4055, 2
        %v4222 = vsel %vm3465, %v4201, %v4221
        %v4223 = vrot.slane %v4056, 2
        %v4224 = vsel %vm3465, %v4203, %v4223
        %v4225 = vrot.slane %v4057, 2
        %v4226 = vsel %vm3465, %v4205, %v4225
        %v4227 = vrot.slane %v4058, 2
        %v4228 = vsel %vm3465, %v4207, %v4227
        %v4229 = vrot.slane %v4059, 2
        %v4230 = vsel %vm3465, %v4209, %v4229
        %v4231 = vrot.slane %v4060, 2
        %v4232 = vsel %vm3465, %v4211, %v4231
        %v4233 = vrot.slane %v4061, 2
        %v4234 = vsel %vm3465, %v4213, %v4233
        %v4235 = vrot.slane %v4062, 2
        %v4236 = vsel %vm3465, %v4215, %v4235
        %v4237 = vrot.slane %v4063, 2
        %v4238 = vsel %vm3465, %v4217, %v4237
        %v4239 = vrot.slane %v4064, 2
        %v4240 = vsel %vm3465, %v4219, %v4239
        %v4241 = vrot.slane %v4065, 2
        %v4242 = vsel %vm3465, %v4221, %v4241
        %v4243 = vrot.slane %v4066, 2
        %v4244 = vsel %vm3465, %v4223, %v4243
        %v4245 = vrot.slane %v4067, 2
        %v4246 = vsel %vm3465, %v4225, %v4245
        %v4247 = vrot.slane %v4068, 2
        %v4248 = vsel %vm3465, %v4227, %v4247
        %v4249 = vrot.slane %v4069, 2
        %v4250 = vsel %vm3465, %v4229, %v4249
        %v4251 = vrot.slane %v4070, 2
        %v4252 = vsel %vm3465, %v4231, %v4251
        %v4253 = vrot.slane %v4071, 2
        %v4254 = vsel %vm3465, %v4233, %v4253
        %v4255 = vrot.slane %v4072, 2
        %v4256 = vsel %vm3465, %v4235, %v4255
        %v4257 = vrot.slane %v4073, 2
        %v4258 = vsel %vm3465, %v4237, %v4257
        %v4259 = vrot.slane %v4074, 2
        %v4260 = vsel %vm3465, %v4239, %v4259
        %v4261 = vrot.slane %v4075, 2
        %v4262 = vsel %vm3465, %v4241, %v4261
        %v4263 = vrot.slane %v4076, 2
        %v4264 = vsel %vm3465, %v4243, %v4263
        %v4265 = vrot.slane %v4077, 2
        %v4266 = vsel %vm3465, %v4245, %v4265
        %v4267 = vrot.slane %v4078, 2
        %v4268 = vsel %vm3465, %v4247, %v4267
        %v4269 = vrot.slane %v4079, 2
        %v4270 = vsel %vm3465, %v4249, %v4269
        %v4271 = vrot.slane %v4080, 2
        %v4272 = vsel %vm3465, %v4251, %v4271
        %v4273 = vrot.slane %v4081, 2
        %v4274 = vsel %vm3465, %v4253, %v4273
        %v4275 = vrot.slane %v4082, 2
        %v4276 = vsel %vm3465, %v4255, %v4275
        %v4277 = vrot.slane %v4083, 2
        %v4278 = vsel %vm3465, %v4257, %v4277
        %v4279 = vrot.slane %v4084, 2
        %v4280 = vsel %vm3465, %v4259, %v4279
        %v4281 = vrot.slane %v4085, 2
        %v4282 = vsel %vm3465, %v4261, %v4281
        %v4283 = vrot.slane %v4086, 2
        %v4284 = vsel %vm3465, %v4263, %v4283
        %v4285 = vrot.slane %v4087, 2
        %v4286 = vsel %vm3465, %v4265, %v4285
        %v4287 = vrot.slane %v4088, 2
        %v4288 = vsel %vm3465, %v4267, %v4287
        %4289 = vrot.lane.b32.xlu0 %v4161, 104
        %v4290 = vpop.permute.xlu0 %4289
        %4291 = vrot.lane.b32.xlu0 %v4164, 104
        %v4292 = vpop.permute.xlu0 %4291
        %4293 = vrot.lane.b32.xlu0 %v4167, 104
        %v4294 = vpop.permute.xlu0 %4293
        %4295 = vrot.lane.b32.xlu0 %v4170, 104
        %v4296 = vpop.permute.xlu0 %4295
        %4297 = vrot.lane.b32.xlu0 %v4173, 104
        %v4298 = vpop.permute.xlu0 %4297
        %4299 = vrot.lane.b32.xlu0 %v4176, 104
        %v4300 = vpop.permute.xlu0 %4299
        %4301 = vrot.lane.b32.xlu0 %v4179, 104
        %v4302 = vpop.permute.xlu0 %4301
        %4303 = vrot.lane.b32.xlu0 %v4182, 104
        %v4304 = vpop.permute.xlu0 %4303
        %4305 = vrot.lane.b32.xlu0 %v4185, 104
        %v4306 = vpop.permute.xlu0 %4305
        %4307 = vrot.lane.b32.xlu0 %v4188, 104
        %v4308 = vpop.permute.xlu0 %4307
        %4309 = vrot.lane.b32.xlu0 %v4190, 104
        %v4310 = vpop.permute.xlu0 %4309
        %4311 = vrot.lane.b32.xlu0 %v4192, 104
        %v4312 = vpop.permute.xlu0 %4311
        %4313 = vrot.lane.b32.xlu0 %v4194, 104
        %v4314 = vpop.permute.xlu0 %4313
        %4315 = vrot.lane.b32.xlu0 %v4196, 104
        %v4316 = vpop.permute.xlu0 %4315
        %4317 = vrot.lane.b32.xlu0 %v4198, 104
        %v4318 = vpop.permute.xlu0 %4317
        %4319 = vrot.lane.b32.xlu0 %v4200, 104
        %v4320 = vpop.permute.xlu0 %4319
        %4321 = vrot.lane.b32.xlu0 %v4202, 104
        %v4322 = vpop.permute.xlu0 %4321
        %4323 = vrot.lane.b32.xlu0 %v4204, 104
        %v4324 = vpop.permute.xlu0 %4323
        %4325 = vrot.lane.b32.xlu0 %v4206, 104
        %v4326 = vpop.permute.xlu0 %4325
        %4327 = vrot.lane.b32.xlu0 %v4208, 104
        %v4328 = vpop.permute.xlu0 %4327
        %4329 = vrot.lane.b32.xlu0 %v4210, 104
        %v4330 = vpop.permute.xlu0 %4329
        %4331 = vrot.lane.b32.xlu0 %v4212, 104
        %v4332 = vpop.permute.xlu0 %4331
        %4333 = vrot.lane.b32.xlu0 %v4214, 104
        %v4334 = vpop.permute.xlu0 %4333
        %4335 = vrot.lane.b32.xlu0 %v4216, 104
        %v4336 = vpop.permute.xlu0 %4335
        %4337 = vrot.lane.b32.xlu0 %v4218, 104
        %v4338 = vpop.permute.xlu0 %4337
        %4339 = vrot.lane.b32.xlu0 %v4220, 104
        %v4340 = vpop.permute.xlu0 %4339
        %4341 = vrot.lane.b32.xlu0 %v4222, 104
        %v4342 = vpop.permute.xlu0 %4341
        %4343 = vrot.lane.b32.xlu0 %v4224, 104
        %v4344 = vpop.permute.xlu0 %4343
        %4345 = vrot.lane.b32.xlu0 %v4226, 104
        %v4346 = vpop.permute.xlu0 %4345
        %4347 = vrot.lane.b32.xlu0 %v4228, 104
        %v4348 = vpop.permute.xlu0 %4347
        %4349 = vrot.lane.b32.xlu0 %v4230, 104
        %v4350 = vpop.permute.xlu0 %4349
        %4351 = vrot.lane.b32.xlu0 %v4232, 104
        %v4352 = vpop.permute.xlu0 %4351
        %4353 = vrot.lane.b32.xlu0 %v4234, 104
        %v4354 = vpop.permute.xlu0 %4353
        %4355 = vrot.lane.b32.xlu0 %v4236, 104
        %v4356 = vpop.permute.xlu0 %4355
        %4357 = vrot.lane.b32.xlu0 %v4238, 104
        %v4358 = vpop.permute.xlu0 %4357
        %4359 = vrot.lane.b32.xlu0 %v4240, 104
        %v4360 = vpop.permute.xlu0 %4359
        %4361 = vrot.lane.b32.xlu0 %v4242, 104
        %v4362 = vpop.permute.xlu0 %4361
        %4363 = vrot.lane.b32.xlu0 %v4244, 104
        %v4364 = vpop.permute.xlu0 %4363
        %4365 = vrot.lane.b32.xlu0 %v4246, 104
        %v4366 = vpop.permute.xlu0 %4365
        %4367 = vrot.lane.b32.xlu0 %v4248, 104
        %v4368 = vpop.permute.xlu0 %4367
        %4369 = vrot.lane.b32.xlu0 %v4250, 104
        %v4370 = vpop.permute.xlu0 %4369
        %4371 = vrot.lane.b32.xlu0 %v4252, 104
        %v4372 = vpop.permute.xlu0 %4371
        %4373 = vrot.lane.b32.xlu0 %v4254, 104
        %v4374 = vpop.permute.xlu0 %4373
        %4375 = vrot.lane.b32.xlu0 %v4256, 104
        %v4376 = vpop.permute.xlu0 %4375
        %4377 = vrot.lane.b32.xlu0 %v4258, 104
        %v4378 = vpop.permute.xlu0 %4377
        %4379 = vrot.lane.b32.xlu0 %v4260, 104
        %v4380 = vpop.permute.xlu0 %4379
        %4381 = vrot.lane.b32.xlu0 %v4262, 104
        %v4382 = vpop.permute.xlu0 %4381
        %4383 = vrot.lane.b32.xlu0 %v4264, 104
        %v4384 = vpop.permute.xlu0 %4383
        %4385 = vrot.lane.b32.xlu0 %v4266, 104
        %v4386 = vpop.permute.xlu0 %4385
        %4387 = vrot.lane.b32.xlu0 %v4268, 104
        %v4388 = vpop.permute.xlu0 %4387
        %4389 = vrot.lane.b32.xlu0 %v4270, 104
        %v4390 = vpop.permute.xlu0 %4389
        %4391 = vrot.lane.b32.xlu0 %v4272, 104
        %v4392 = vpop.permute.xlu0 %4391
        %4393 = vrot.lane.b32.xlu0 %v4274, 104
        %v4394 = vpop.permute.xlu0 %4393
        %4395 = vrot.lane.b32.xlu0 %v4276, 104
        %v4396 = vpop.permute.xlu0 %4395
        %4397 = vrot.lane.b32.xlu0 %v4278, 104
        %v4398 = vpop.permute.xlu0 %4397
        %4399 = vrot.lane.b32.xlu0 %v4280, 104
        %v4400 = vpop.permute.xlu0 %4399
        %4401 = vrot.lane.b32.xlu0 %v4282, 104
        %v4402 = vpop.permute.xlu0 %4401
        %4403 = vrot.lane.b32.xlu0 %v4284, 104
        %v4404 = vpop.permute.xlu0 %4403
        %4405 = vrot.lane.b32.xlu0 %v4286, 104
        %v4406 = vpop.permute.xlu0 %4405
        %4407 = vrot.lane.b32.xlu0 %v4288, 104
        %v4408 = vpop.permute.xlu0 %4407
        %v4409 = vsel %vm516, %v4290, %v4292
        %v4410 = vsel %vm516, %v4292, %v4294
        %v4411 = vsel %vm516, %v4294, %v4296
        %v4412 = vsel %vm516, %v4296, %v4298
        %v4413 = vsel %vm516, %v4298, %v4300
        %v4414 = vsel %vm516, %v4300, %v4302
        %v4415 = vsel %vm516, %v4302, %v4304
        %v4416 = vsel %vm516, %v4304, %v4306
        %v4417 = vsel %vm516, %v4306, %v4308
        %v4418 = vsel %vm516, %v4310, %v4312
        %v4419 = vsel %vm516, %v4312, %v4314
        %v4420 = vsel %vm516, %v4314, %v4316
        %v4421 = vsel %vm516, %v4316, %v4318
        %v4422 = vsel %vm516, %v4318, %v4320
        %v4423 = vsel %vm516, %v4320, %v4322
        %v4424 = vsel %vm516, %v4322, %v4324
        %v4425 = vsel %vm516, %v4324, %v4326
        %v4426 = vsel %vm516, %v4326, %v4328
        %v4427 = vsel %vm516, %v4330, %v4332
        %v4428 = vsel %vm516, %v4332, %v4334
        %v4429 = vsel %vm516, %v4334, %v4336
        %v4430 = vsel %vm516, %v4336, %v4338
        %v4431 = vsel %vm516, %v4338, %v4340
        %v4432 = vsel %vm516, %v4340, %v4342
        %v4433 = vsel %vm516, %v4342, %v4344
        %v4434 = vsel %vm516, %v4344, %v4346
        %v4435 = vsel %vm516, %v4346, %v4348
        %v4436 = vsel %vm516, %v4350, %v4352
        %v4437 = vsel %vm516, %v4352, %v4354
        %v4438 = vsel %vm516, %v4354, %v4356
        %v4439 = vsel %vm516, %v4356, %v4358
        %v4440 = vsel %vm516, %v4358, %v4360
        %v4441 = vsel %vm516, %v4360, %v4362
        %v4442 = vsel %vm516, %v4362, %v4364
        %v4443 = vsel %vm516, %v4364, %v4366
        %v4444 = vsel %vm516, %v4366, %v4368
        %v4445 = vsel %vm516, %v4370, %v4372
        %v4446 = vsel %vm516, %v4372, %v4374
        %v4447 = vsel %vm516, %v4374, %v4376
        %v4448 = vsel %vm516, %v4376, %v4378
        %v4449 = vsel %vm516, %v4378, %v4380
        %v4450 = vsel %vm516, %v4380, %v4382
        %v4451 = vsel %vm516, %v4382, %v4384
        %v4452 = vsel %vm516, %v4384, %v4386
        %v4453 = vsel %vm516, %v4386, %v4388
        %v4454 = vsel %vm516, %v4390, %v4392
        %v4455 = vsel %vm516, %v4392, %v4394
        %v4456 = vsel %vm516, %v4394, %v4396
        %v4457 = vsel %vm516, %v4396, %v4398
        %v4458 = vsel %vm516, %v4398, %v4400
        %v4459 = vsel %vm516, %v4400, %v4402
        %v4460 = vsel %vm516, %v4402, %v4404
        %v4461 = vsel %vm516, %v4404, %v4406
        %v4462 = vsel %vm516, %v4406, %v4408
        %s4517 = scalar_lea.vmem %s109, 2160 [#allocation2]
        %4518 = vst [vmem:[%s4517] sm:$0xff] %v4409
        %4519 = vst [vmem:[%s4517 + $0x8] sm:$0xff] %v4410
        %4520 = vst [vmem:[%s4517 + $0x10] sm:$0xff] %v4411
        %4521 = vst [vmem:[%s4517 + $0x18] sm:$0xff] %v4412
        %4522 = vst [vmem:[%s4517 + $0x20] sm:$0xff] %v4413
        %4523 = vst [vmem:[%s4517 + $0x28] sm:$0xff] %v4414
        %4524 = vst [vmem:[%s4517 + $0x30] sm:$0xff] %v4415
        %4525 = vst [vmem:[%s4517 + $0x38] sm:$0xff] %v4416
        %4526 = vst [vmem:[%s4517 + $0x40] sm:$0xff] %v4417
        %4527 = vst [vmem:[%s4517 + $0x48] sm:$0xff] %v4418
        %4528 = vst [vmem:[%s4517 + $0x50] sm:$0xff] %v4419
        %4529 = vst [vmem:[%s4517 + $0x58] sm:$0xff] %v4420
        %4530 = vst [vmem:[%s4517 + $0x60] sm:$0xff] %v4421
        %4531 = vst [vmem:[%s4517 + $0x68] sm:$0xff] %v4422
        %4532 = vst [vmem:[%s4517 + $0x70] sm:$0xff] %v4423
        %4533 = vst [vmem:[%s4517 + $0x78] sm:$0xff] %v4424
        %4534 = vst [vmem:[%s4517 + $0x80] sm:$0xff] %v4425
        %4535 = vst [vmem:[%s4517 + $0x88] sm:$0xff] %v4426
        %4536 = vst [vmem:[%s4517 + $0x90] sm:$0xff] %v4427
        %4537 = vst [vmem:[%s4517 + $0x98] sm:$0xff] %v4428
        %4538 = vst [vmem:[%s4517 + $0xa0] sm:$0xff] %v4429
        %4539 = vst [vmem:[%s4517 + $0xa8] sm:$0xff] %v4430
        %4540 = vst [vmem:[%s4517 + $0xb0] sm:$0xff] %v4431
        %4541 = vst [vmem:[%s4517 + $0xb8] sm:$0xff] %v4432
        %4542 = vst [vmem:[%s4517 + $0xc0] sm:$0xff] %v4433
        %4543 = vst [vmem:[%s4517 + $0xc8] sm:$0xff] %v4434
        %4544 = vst [vmem:[%s4517 + $0xd0] sm:$0xff] %v4435
        %4545 = vst [vmem:[%s4517 + $0xd8] sm:$0xff] %v4436
        %4546 = vst [vmem:[%s4517 + $0xe0] sm:$0xff] %v4437
        %4547 = vst [vmem:[%s4517 + $0xe8] sm:$0xff] %v4438
        %4548 = vst [vmem:[%s4517 + $0xf0] sm:$0xff] %v4439
        %4549 = vst [vmem:[%s4517 + $0xf8] sm:$0xff] %v4440
        %4550 = vst [vmem:[%s4517 + $0x100] sm:$0xff] %v4441
        %4551 = vst [vmem:[%s4517 + $0x108] sm:$0xff] %v4442
        %4552 = vst [vmem:[%s4517 + $0x110] sm:$0xff] %v4443
        %4553 = vst [vmem:[%s4517 + $0x118] sm:$0xff] %v4444
        %4554 = vst [vmem:[%s4517 + $0x120] sm:$0xff] %v4445
        %4555 = vst [vmem:[%s4517 + $0x128] sm:$0xff] %v4446
        %4556 = vst [vmem:[%s4517 + $0x130] sm:$0xff] %v4447
        %4557 = vst [vmem:[%s4517 + $0x138] sm:$0xff] %v4448
        %4558 = vst [vmem:[%s4517 + $0x140] sm:$0xff] %v4449
        %4559 = vst [vmem:[%s4517 + $0x148] sm:$0xff] %v4450
        %4560 = vst [vmem:[%s4517 + $0x150] sm:$0xff] %v4451
        %4561 = vst [vmem:[%s4517 + $0x158] sm:$0xff] %v4452
        %4562 = vst [vmem:[%s4517 + $0x160] sm:$0xff] %v4453
        %4563 = vst [vmem:[%s4517 + $0x168] sm:$0xff] %v4454
        %4564 = vst [vmem:[%s4517 + $0x170] sm:$0xff] %v4455
        %4565 = vst [vmem:[%s4517 + $0x178] sm:$0xff] %v4456
        %4566 = vst [vmem:[%s4517 + $0x180] sm:$0xff] %v4457
        %4567 = vst [vmem:[%s4517 + $0x188] sm:$0xff] %v4458
        %4568 = vst [vmem:[%s4517 + $0x190] sm:$0xff] %v4459
        %4569 = vst [vmem:[%s4517 + $0x198] sm:$0xff] %v4460
        %4570 = vst [vmem:[%s4517 + $0x1a0] sm:$0xff] %v4461
        %4571 = vst [vmem:[%s4517 + $0x1a8] sm:$0xff] %v4462
        %v4572 = vld [vmem:[%s114] sm:$0xfc]
        %v4573 = vld [vmem:[%s114 + $0x8] sm:$0xfc]
        %v4574 = vld [vmem:[%s114 + $0x10] sm:$0xfc]
        %v4575 = vld [vmem:[%s114 + $0x18] sm:$0xfc]
        %v4576 = vld [vmem:[%s114 + $0x20] sm:$0xfc]
        %v4577 = vld [vmem:[%s114 + $0x28] sm:$0xfc]
        %v4578 = vld [vmem:[%s114 + $0x30] sm:$0xfc]
        %v4579 = vld [vmem:[%s114 + $0x38] sm:$0xfc]
        %v4580 = vld [vmem:[%s114 + $0x40] sm:$0xfc]
        %v4581 = vld [vmem:[%s114 + $0x50] sm:$0xff]
        %v4582 = vld [vmem:[%s114 + $0x58] sm:$0xff]
        %v4583 = vld [vmem:[%s114 + $0x60] sm:$0xff]
        %v4584 = vld [vmem:[%s114 + $0x68] sm:$0xff]
        %v4585 = vld [vmem:[%s114 + $0x70] sm:$0xff]
        %v4586 = vld [vmem:[%s114 + $0x78] sm:$0xff]
        %v4587 = vld [vmem:[%s114 + $0x80] sm:$0xff]
        %v4588 = vld [vmem:[%s114 + $0x88] sm:$0xff]
        %v4589 = vld [vmem:[%s114 + $0x90] sm:$0xff]
        %v4590 = vld [vmem:[%s114 + $0xa0] sm:$0xff]
        %v4591 = vld [vmem:[%s114 + $0xa8] sm:$0xff]
        %v4592 = vld [vmem:[%s114 + $0xb0] sm:$0xff]
        %v4593 = vld [vmem:[%s114 + $0xb8] sm:$0xff]
        %v4594 = vld [vmem:[%s114 + $0xc0] sm:$0xff]
        %v4595 = vld [vmem:[%s114 + $0xc8] sm:$0xff]
        %v4596 = vld [vmem:[%s114 + $0xd0] sm:$0xff]
        %v4597 = vld [vmem:[%s114 + $0xd8] sm:$0xff]
        %v4598 = vld [vmem:[%s114 + $0xe0] sm:$0xff]
        %v4599 = vld [vmem:[%s114 + $0xf0] sm:$0xff]
        %v4600 = vld [vmem:[%s114 + $0xf8] sm:$0xff]
        %v4601 = vld [vmem:[%s114 + $0x100] sm:$0xff]
        %v4602 = vld [vmem:[%s114 + $0x108] sm:$0xff]
        %v4603 = vld [vmem:[%s114 + $0x110] sm:$0xff]
        %v4604 = vld [vmem:[%s114 + $0x118] sm:$0xff]
        %v4605 = vld [vmem:[%s114 + $0x120] sm:$0xff]
        %v4606 = vld [vmem:[%s114 + $0x128] sm:$0xff]
        %v4607 = vld [vmem:[%s114 + $0x130] sm:$0xff]
        %v4608 = vld [vmem:[%s114 + $0x140] sm:$0xff]
        %v4609 = vld [vmem:[%s114 + $0x148] sm:$0xff]
        %v4610 = vld [vmem:[%s114 + $0x150] sm:$0xff]
        %v4611 = vld [vmem:[%s114 + $0x158] sm:$0xff]
        %v4612 = vld [vmem:[%s114 + $0x160] sm:$0xff]
        %v4613 = vld [vmem:[%s114 + $0x168] sm:$0xff]
        %v4614 = vld [vmem:[%s114 + $0x170] sm:$0xff]
        %v4615 = vld [vmem:[%s114 + $0x178] sm:$0xff]
        %v4616 = vld [vmem:[%s114 + $0x180] sm:$0xff]
        %v4617 = vld [vmem:[%s114 + $0x190] sm:$0xff]
        %v4618 = vld [vmem:[%s114 + $0x198] sm:$0xff]
        %v4619 = vld [vmem:[%s114 + $0x1a0] sm:$0xff]
        %v4620 = vld [vmem:[%s114 + $0x1a8] sm:$0xff]
        %v4621 = vld [vmem:[%s114 + $0x1b0] sm:$0xff]
        %v4622 = vld [vmem:[%s114 + $0x1b8] sm:$0xff]
        %v4623 = vld [vmem:[%s114 + $0x1c0] sm:$0xff]
        %v4624 = vld [vmem:[%s114 + $0x1c8] sm:$0xff]
        %v4625 = vld [vmem:[%s114 + $0x1d0] sm:$0xff]
        %v4626 = vld [vmem:[%s114 + $0x1e0] sm:$0x3]
        %v4627 = vld [vmem:[%s114 + $0x1e8] sm:$0x3]
        %v4628 = vld [vmem:[%s114 + $0x1f0] sm:$0x3]
        %v4629 = vld [vmem:[%s114 + $0x1f8] sm:$0x3]
        %v4630 = vld [vmem:[%s114 + $0x200] sm:$0x3]
        %v4631 = vld [vmem:[%s114 + $0x208] sm:$0x3]
        %v4632 = vld [vmem:[%s114 + $0x210] sm:$0x3]
        %v4633 = vld [vmem:[%s114 + $0x218] sm:$0x3]
        %v4634 = vld [vmem:[%s114 + $0x220] sm:$0x3]
        %4635 = vrot.lane.b32.xlu0 %v2922, 104
        %v4636 = vpop.permute.xlu0 %4635
        %4637 = vrot.lane.b32.xlu0 %v2923, 104
        %v4638 = vpop.permute.xlu0 %4637
        %4639 = vrot.lane.b32.xlu0 %v2924, 104
        %v4640 = vpop.permute.xlu0 %4639
        %4641 = vrot.lane.b32.xlu0 %v2925, 104
        %v4642 = vpop.permute.xlu0 %4641
        %4643 = vrot.lane.b32.xlu0 %v2926, 104
        %v4644 = vpop.permute.xlu0 %4643
        %4645 = vrot.lane.b32.xlu0 %v2927, 104
        %v4646 = vpop.permute.xlu0 %4645
        %4647 = vrot.lane.b32.xlu0 %v2928, 104
        %v4648 = vpop.permute.xlu0 %4647
        %4649 = vrot.lane.b32.xlu0 %v2929, 104
        %v4650 = vpop.permute.xlu0 %4649
        %4651 = vrot.lane.b32.xlu0 %v2930, 104
        %v4652 = vpop.permute.xlu0 %4651
        %4653 = vrot.lane.b32.xlu0 %v2931, 104
        %v4654 = vpop.permute.xlu0 %4653
        %4655 = vrot.lane.b32.xlu0 %v2933, 104
        %v4656 = vpop.permute.xlu0 %4655
        %4657 = vrot.lane.b32.xlu0 %v2935, 104
        %v4658 = vpop.permute.xlu0 %4657
        %4659 = vrot.lane.b32.xlu0 %v2937, 104
        %v4660 = vpop.permute.xlu0 %4659
        %4661 = vrot.lane.b32.xlu0 %v2939, 104
        %v4662 = vpop.permute.xlu0 %4661
        %4663 = vrot.lane.b32.xlu0 %v2941, 104
        %v4664 = vpop.permute.xlu0 %4663
        %4665 = vrot.lane.b32.xlu0 %v2943, 104
        %v4666 = vpop.permute.xlu0 %4665
        %4667 = vrot.lane.b32.xlu0 %v2945, 104
        %v4668 = vpop.permute.xlu0 %4667
        %4669 = vrot.lane.b32.xlu0 %v2947, 104
        %v4670 = vpop.permute.xlu0 %4669
        %4671 = vrot.lane.b32.xlu0 %v2949, 104
        %v4672 = vpop.permute.xlu0 %4671
        %4673 = vrot.lane.b32.xlu0 %v2951, 104
        %v4674 = vpop.permute.xlu0 %4673
        %4675 = vrot.lane.b32.xlu0 %v2953, 104
        %v4676 = vpop.permute.xlu0 %4675
        %4677 = vrot.lane.b32.xlu0 %v2955, 104
        %v4678 = vpop.permute.xlu0 %4677
        %4679 = vrot.lane.b32.xlu0 %v2957, 104
        %v4680 = vpop.permute.xlu0 %4679
        %4681 = vrot.lane.b32.xlu0 %v2959, 104
        %v4682 = vpop.permute.xlu0 %4681
        %4683 = vrot.lane.b32.xlu0 %v2961, 104
        %v4684 = vpop.permute.xlu0 %4683
        %4685 = vrot.lane.b32.xlu0 %v2963, 104
        %v4686 = vpop.permute.xlu0 %4685
        %4687 = vrot.lane.b32.xlu0 %v2965, 104
        %v4688 = vpop.permute.xlu0 %4687
        %4689 = vrot.lane.b32.xlu0 %v2967, 104
        %v4690 = vpop.permute.xlu0 %4689
        %4691 = vrot.lane.b32.xlu0 %v2969, 104
        %v4692 = vpop.permute.xlu0 %4691
        %4693 = vrot.lane.b32.xlu0 %v2971, 104
        %v4694 = vpop.permute.xlu0 %4693
        %4695 = vrot.lane.b32.xlu0 %v2973, 104
        %v4696 = vpop.permute.xlu0 %4695
        %4697 = vrot.lane.b32.xlu0 %v2975, 104
        %v4698 = vpop.permute.xlu0 %4697
        %4699 = vrot.lane.b32.xlu0 %v2977, 104
        %v4700 = vpop.permute.xlu0 %4699
        %4701 = vrot.lane.b32.xlu0 %v2979, 104
        %v4702 = vpop.permute.xlu0 %4701
        %4703 = vrot.lane.b32.xlu0 %v2981, 104
        %v4704 = vpop.permute.xlu0 %4703
        %4705 = vrot.lane.b32.xlu0 %v2983, 104
        %v4706 = vpop.permute.xlu0 %4705
        %4707 = vrot.lane.b32.xlu0 %v2985, 104
        %v4708 = vpop.permute.xlu0 %4707
        %4709 = vrot.lane.b32.xlu0 %v2987, 104
        %v4710 = vpop.permute.xlu0 %4709
        %4711 = vrot.lane.b32.xlu0 %v2989, 104
        %v4712 = vpop.permute.xlu0 %4711
        %4713 = vrot.lane.b32.xlu0 %v2991, 104
        %v4714 = vpop.permute.xlu0 %4713
        %4715 = vrot.lane.b32.xlu0 %v2993, 104
        %v4716 = vpop.permute.xlu0 %4715
        %4717 = vrot.lane.b32.xlu0 %v2995, 104
        %v4718 = vpop.permute.xlu0 %4717
        %4719 = vrot.lane.b32.xlu0 %v2997, 104
        %v4720 = vpop.permute.xlu0 %4719
        %4721 = vrot.lane.b32.xlu0 %v2999, 104
        %v4722 = vpop.permute.xlu0 %4721
        %4723 = vrot.lane.b32.xlu0 %v3001, 104
        %v4724 = vpop.permute.xlu0 %4723
        %4725 = vrot.lane.b32.xlu0 %v3003, 104
        %v4726 = vpop.permute.xlu0 %4725
        %4727 = vrot.lane.b32.xlu0 %v3005, 104
        %v4728 = vpop.permute.xlu0 %4727
        %4729 = vrot.lane.b32.xlu0 %v3007, 104
        %v4730 = vpop.permute.xlu0 %4729
        %4731 = vrot.lane.b32.xlu0 %v3009, 104
        %v4732 = vpop.permute.xlu0 %4731
        %4733 = vrot.lane.b32.xlu0 %v3011, 104
        %v4734 = vpop.permute.xlu0 %4733
        %4735 = vrot.lane.b32.xlu0 %v3013, 104
        %v4736 = vpop.permute.xlu0 %4735
        %4737 = vrot.lane.b32.xlu0 %v3015, 104
        %v4738 = vpop.permute.xlu0 %4737
        %4739 = vrot.lane.b32.xlu0 %v3017, 104
        %v4740 = vpop.permute.xlu0 %4739
        %4741 = vrot.lane.b32.xlu0 %v3019, 104
        %v4742 = vpop.permute.xlu0 %4741
        %4743 = vrot.lane.b32.xlu0 %v3021, 104
        %v4744 = vpop.permute.xlu0 %4743
        %4745 = vrot.lane.b32.xlu0 %v3023, 104
        %v4746 = vpop.permute.xlu0 %4745
        %4747 = vrot.lane.b32.xlu0 %v3025, 104
        %v4748 = vpop.permute.xlu0 %4747
        %4749 = vrot.lane.b32.xlu0 %v3027, 104
        %v4750 = vpop.permute.xlu0 %4749
        %4751 = vrot.lane.b32.xlu0 %v3029, 104
        %v4752 = vpop.permute.xlu0 %4751
        %4753 = vrot.lane.b32.xlu0 %v3031, 104
        %v4754 = vpop.permute.xlu0 %4753
        %4755 = vrot.lane.b32.xlu0 %v3033, 104
        %v4756 = vpop.permute.xlu0 %4755
        %4757 = vrot.lane.b32.xlu0 %v3035, 104
        %v4758 = vpop.permute.xlu0 %4757
        %4759 = vrot.lane.b32.xlu0 %v3037, 104
        %v4760 = vpop.permute.xlu0 %4759
        %4761 = vrot.lane.b32.xlu0 %v3039, 104
        %v4762 = vpop.permute.xlu0 %4761
        %4763 = vrot.lane.b32.xlu0 %v3041, 104
        %v4764 = vpop.permute.xlu0 %4763
        %4765 = vrot.lane.b32.xlu0 %v3043, 104
        %v4766 = vpop.permute.xlu0 %4765
        %4767 = vrot.lane.b32.xlu0 %v3045, 104
        %v4768 = vpop.permute.xlu0 %4767
        %4769 = vrot.lane.b32.xlu0 %v3047, 104
        %v4770 = vpop.permute.xlu0 %4769
        %4771 = vrot.lane.b32.xlu0 %v3049, 104
        %v4772 = vpop.permute.xlu0 %4771
        %4773 = vrot.lane.b32.xlu0 %v3051, 104
        %v4774 = vpop.permute.xlu0 %4773
        %v4775 = vsel %vm516, %v4636, %v4638
        %v4776 = vsel %vm516, %v4638, %v4640
        %v4777 = vsel %vm516, %v4640, %v4642
        %v4778 = vsel %vm516, %v4642, %v4644
        %v4779 = vsel %vm516, %v4644, %v4646
        %v4780 = vsel %vm516, %v4646, %v4648
        %v4781 = vsel %vm516, %v4648, %v4650
        %v4782 = vsel %vm516, %v4650, %v4652
        %v4783 = vsel %vm516, %v4652, %v4654
        %v4784 = vsel %vm516, %v4656, %v4658
        %v4785 = vsel %vm516, %v4658, %v4660
        %v4786 = vsel %vm516, %v4660, %v4662
        %v4787 = vsel %vm516, %v4662, %v4664
        %v4788 = vsel %vm516, %v4664, %v4666
        %v4789 = vsel %vm516, %v4666, %v4668
        %v4790 = vsel %vm516, %v4668, %v4670
        %v4791 = vsel %vm516, %v4670, %v4672
        %v4792 = vsel %vm516, %v4672, %v4674
        %v4793 = vsel %vm516, %v4676, %v4678
        %v4794 = vsel %vm516, %v4678, %v4680
        %v4795 = vsel %vm516, %v4680, %v4682
        %v4796 = vsel %vm516, %v4682, %v4684
        %v4797 = vsel %vm516, %v4684, %v4686
        %v4798 = vsel %vm516, %v4686, %v4688
        %v4799 = vsel %vm516, %v4688, %v4690
        %v4800 = vsel %vm516, %v4690, %v4692
        %v4801 = vsel %vm516, %v4692, %v4694
        %v4802 = vsel %vm516, %v4696, %v4698
        %v4803 = vsel %vm516, %v4698, %v4700
        %v4804 = vsel %vm516, %v4700, %v4702
        %v4805 = vsel %vm516, %v4702, %v4704
        %v4806 = vsel %vm516, %v4704, %v4706
        %v4807 = vsel %vm516, %v4706, %v4708
        %v4808 = vsel %vm516, %v4708, %v4710
        %v4809 = vsel %vm516, %v4710, %v4712
        %v4810 = vsel %vm516, %v4712, %v4714
        %v4811 = vsel %vm516, %v4716, %v4718
        %v4812 = vsel %vm516, %v4718, %v4720
        %v4813 = vsel %vm516, %v4720, %v4722
        %v4814 = vsel %vm516, %v4722, %v4724
        %v4815 = vsel %vm516, %v4724, %v4726
        %v4816 = vsel %vm516, %v4726, %v4728
        %v4817 = vsel %vm516, %v4728, %v4730
        %v4818 = vsel %vm516, %v4730, %v4732
        %v4819 = vsel %vm516, %v4732, %v4734
        %v4820 = vsel %vm516, %v4736, %v4738
        %v4821 = vsel %vm516, %v4738, %v4740
        %v4822 = vsel %vm516, %v4740, %v4742
        %v4823 = vsel %vm516, %v4742, %v4744
        %v4824 = vsel %vm516, %v4744, %v4746
        %v4825 = vsel %vm516, %v4746, %v4748
        %v4826 = vsel %vm516, %v4748, %v4750
        %v4827 = vsel %vm516, %v4750, %v4752
        %v4828 = vsel %vm516, %v4752, %v4754
        %v4829 = vsel %vm516, %v4756, %v4758
        %v4830 = vsel %vm516, %v4758, %v4760
        %v4831 = vsel %vm516, %v4760, %v4762
        %v4832 = vsel %vm516, %v4762, %v4764
        %v4833 = vsel %vm516, %v4764, %v4766
        %v4834 = vsel %vm516, %v4766, %v4768
        %v4835 = vsel %vm516, %v4768, %v4770
        %v4836 = vsel %vm516, %v4770, %v4772
        %v4837 = vsel %vm516, %v4772, %v4774
        %v4901 = vsub.f32 %v4572, %v4775
        %v4902 = vsub.f32 %v4573, %v4776
        %v4903 = vsub.f32 %v4574, %v4777
        %v4904 = vsub.f32 %v4575, %v4778
        %v4905 = vsub.f32 %v4576, %v4779
        %v4906 = vsub.f32 %v4577, %v4780
        %v4907 = vsub.f32 %v4578, %v4781
        %v4908 = vsub.f32 %v4579, %v4782
        %v4909 = vsub.f32 %v4580, %v4783
        %v4910 = vsub.f32 %v4581, %v4784
        %v4911 = vsub.f32 %v4582, %v4785
        %v4912 = vsub.f32 %v4583, %v4786
        %v4913 = vsub.f32 %v4584, %v4787
        %v4914 = vsub.f32 %v4585, %v4788
        %v4915 = vsub.f32 %v4586, %v4789
        %v4916 = vsub.f32 %v4587, %v4790
        %v4917 = vsub.f32 %v4588, %v4791
        %v4918 = vsub.f32 %v4589, %v4792
        %v4919 = vsub.f32 %v4590, %v4793
        %v4920 = vsub.f32 %v4591, %v4794
        %v4921 = vsub.f32 %v4592, %v4795
        %v4922 = vsub.f32 %v4593, %v4796
        %v4923 = vsub.f32 %v4594, %v4797
        %v4924 = vsub.f32 %v4595, %v4798
        %v4925 = vsub.f32 %v4596, %v4799
        %v4926 = vsub.f32 %v4597, %v4800
        %v4927 = vsub.f32 %v4598, %v4801
        %v4928 = vsub.f32 %v4599, %v4802
        %v4929 = vsub.f32 %v4600, %v4803
        %v4930 = vsub.f32 %v4601, %v4804
        %v4931 = vsub.f32 %v4602, %v4805
        %v4932 = vsub.f32 %v4603, %v4806
        %v4933 = vsub.f32 %v4604, %v4807
        %v4934 = vsub.f32 %v4605, %v4808
        %v4935 = vsub.f32 %v4606, %v4809
        %v4936 = vsub.f32 %v4607, %v4810
        %v4937 = vsub.f32 %v4608, %v4811
        %v4938 = vsub.f32 %v4609, %v4812
        %v4939 = vsub.f32 %v4610, %v4813
        %v4940 = vsub.f32 %v4611, %v4814
        %v4941 = vsub.f32 %v4612, %v4815
        %v4942 = vsub.f32 %v4613, %v4816
        %v4943 = vsub.f32 %v4614, %v4817
        %v4944 = vsub.f32 %v4615, %v4818
        %v4945 = vsub.f32 %v4616, %v4819
        %v4946 = vsub.f32 %v4617, %v4820
        %v4947 = vsub.f32 %v4618, %v4821
        %v4948 = vsub.f32 %v4619, %v4822
        %v4949 = vsub.f32 %v4620, %v4823
        %v4950 = vsub.f32 %v4621, %v4824
        %v4951 = vsub.f32 %v4622, %v4825
        %v4952 = vsub.f32 %v4623, %v4826
        %v4953 = vsub.f32 %v4624, %v4827
        %v4954 = vsub.f32 %v4625, %v4828
        %v4955 = vsub.f32 %v4626, %v4829
        %v4956 = vsub.f32 %v4627, %v4830
        %v4957 = vsub.f32 %v4628, %v4831
        %v4958 = vsub.f32 %v4629, %v4832
        %v4959 = vsub.f32 %v4630, %v4833
        %v4960 = vsub.f32 %v4631, %v4834
        %v4961 = vsub.f32 %v4632, %v4835
        %v4962 = vsub.f32 %v4633, %v4836
        %v4963 = vsub.f32 %v4634, %v4837
        %v5027 = vrot.slane %v4901, 2
        %v5028 = vrot.slane %v4910, 2
        %v5029 = vsel %vm3465, %v5027, %v5028
        %v5030 = vrot.slane %v4902, 2
        %v5031 = vrot.slane %v4911, 2
        %v5032 = vsel %vm3465, %v5030, %v5031
        %v5033 = vrot.slane %v4903, 2
        %v5034 = vrot.slane %v4912, 2
        %v5035 = vsel %vm3465, %v5033, %v5034
        %v5036 = vrot.slane %v4904, 2
        %v5037 = vrot.slane %v4913, 2
        %v5038 = vsel %vm3465, %v5036, %v5037
        %v5039 = vrot.slane %v4905, 2
        %v5040 = vrot.slane %v4914, 2
        %v5041 = vsel %vm3465, %v5039, %v5040
        %v5042 = vrot.slane %v4906, 2
        %v5043 = vrot.slane %v4915, 2
        %v5044 = vsel %vm3465, %v5042, %v5043
        %v5045 = vrot.slane %v4907, 2
        %v5046 = vrot.slane %v4916, 2
        %v5047 = vsel %vm3465, %v5045, %v5046
        %v5048 = vrot.slane %v4908, 2
        %v5049 = vrot.slane %v4917, 2
        %v5050 = vsel %vm3465, %v5048, %v5049
        %v5051 = vrot.slane %v4909, 2
        %v5052 = vrot.slane %v4918, 2
        %v5053 = vsel %vm3465, %v5051, %v5052
        %v5054 = vrot.slane %v4919, 2
        %v5055 = vsel %vm3465, %v5028, %v5054
        %v5056 = vrot.slane %v4920, 2
        %v5057 = vsel %vm3465, %v5031, %v5056
        %v5058 = vrot.slane %v4921, 2
        %v5059 = vsel %vm3465, %v5034, %v5058
        %v5060 = vrot.slane %v4922, 2
        %v5061 = vsel %vm3465, %v5037, %v5060
        %v5062 = vrot.slane %v4923, 2
        %v5063 = vsel %vm3465, %v5040, %v5062
        %v5064 = vrot.slane %v4924, 2
        %v5065 = vsel %vm3465, %v5043, %v5064
        %v5066 = vrot.slane %v4925, 2
        %v5067 = vsel %vm3465, %v5046, %v5066
        %v5068 = vrot.slane %v4926, 2
        %v5069 = vsel %vm3465, %v5049, %v5068
        %v5070 = vrot.slane %v4927, 2
        %v5071 = vsel %vm3465, %v5052, %v5070
        %v5072 = vrot.slane %v4928, 2
        %v5073 = vsel %vm3465, %v5054, %v5072
        %v5074 = vrot.slane %v4929, 2
        %v5075 = vsel %vm3465, %v5056, %v5074
        %v5076 = vrot.slane %v4930, 2
        %v5077 = vsel %vm3465, %v5058, %v5076
        %v5078 = vrot.slane %v4931, 2
        %v5079 = vsel %vm3465, %v5060, %v5078
        %v5080 = vrot.slane %v4932, 2
        %v5081 = vsel %vm3465, %v5062, %v5080
        %v5082 = vrot.slane %v4933, 2
        %v5083 = vsel %vm3465, %v5064, %v5082
        %v5084 = vrot.slane %v4934, 2
        %v5085 = vsel %vm3465, %v5066, %v5084
        %v5086 = vrot.slane %v4935, 2
        %v5087 = vsel %vm3465, %v5068, %v5086
        %v5088 = vrot.slane %v4936, 2
        %v5089 = vsel %vm3465, %v5070, %v5088
        %v5090 = vrot.slane %v4937, 2
        %v5091 = vsel %vm3465, %v5072, %v5090
        %v5092 = vrot.slane %v4938, 2
        %v5093 = vsel %vm3465, %v5074, %v5092
        %v5094 = vrot.slane %v4939, 2
        %v5095 = vsel %vm3465, %v5076, %v5094
        %v5096 = vrot.slane %v4940, 2
        %v5097 = vsel %vm3465, %v5078, %v5096
        %v5098 = vrot.slane %v4941, 2
        %v5099 = vsel %vm3465, %v5080, %v5098
        %v5100 = vrot.slane %v4942, 2
        %v5101 = vsel %vm3465, %v5082, %v5100
        %v5102 = vrot.slane %v4943, 2
        %v5103 = vsel %vm3465, %v5084, %v5102
        %v5104 = vrot.slane %v4944, 2
        %v5105 = vsel %vm3465, %v5086, %v5104
        %v5106 = vrot.slane %v4945, 2
        %v5107 = vsel %vm3465, %v5088, %v5106
        %v5108 = vrot.slane %v4946, 2
        %v5109 = vsel %vm3465, %v5090, %v5108
        %v5110 = vrot.slane %v4947, 2
        %v5111 = vsel %vm3465, %v5092, %v5110
        %v5112 = vrot.slane %v4948, 2
        %v5113 = vsel %vm3465, %v5094, %v5112
        %v5114 = vrot.slane %v4949, 2
        %v5115 = vsel %vm3465, %v5096, %v5114
        %v5116 = vrot.slane %v4950, 2
        %v5117 = vsel %vm3465, %v5098, %v5116
        %v5118 = vrot.slane %v4951, 2
        %v5119 = vsel %vm3465, %v5100, %v5118
        %v5120 = vrot.slane %v4952, 2
        %v5121 = vsel %vm3465, %v5102, %v5120
        %v5122 = vrot.slane %v4953, 2
        %v5123 = vsel %vm3465, %v5104, %v5122
        %v5124 = vrot.slane %v4954, 2
        %v5125 = vsel %vm3465, %v5106, %v5124
        %v5126 = vrot.slane %v4955, 2
        %v5127 = vsel %vm3465, %v5108, %v5126
        %v5128 = vrot.slane %v4956, 2
        %v5129 = vsel %vm3465, %v5110, %v5128
        %v5130 = vrot.slane %v4957, 2
        %v5131 = vsel %vm3465, %v5112, %v5130
        %v5132 = vrot.slane %v4958, 2
        %v5133 = vsel %vm3465, %v5114, %v5132
        %v5134 = vrot.slane %v4959, 2
        %v5135 = vsel %vm3465, %v5116, %v5134
        %v5136 = vrot.slane %v4960, 2
        %v5137 = vsel %vm3465, %v5118, %v5136
        %v5138 = vrot.slane %v4961, 2
        %v5139 = vsel %vm3465, %v5120, %v5138
        %v5140 = vrot.slane %v4962, 2
        %v5141 = vsel %vm3465, %v5122, %v5140
        %v5142 = vrot.slane %v4963, 2
        %v5143 = vsel %vm3465, %v5124, %v5142
        %s5198 = scalar_lea.vmem %s109, 2592 [#allocation2]
        %5199 = vst [vmem:[%s5198] sm:$0xff] %v5029
        %5200 = vst [vmem:[%s5198 + $0x8] sm:$0xff] %v5032
        %5201 = vst [vmem:[%s5198 + $0x10] sm:$0xff] %v5035
        %5202 = vst [vmem:[%s5198 + $0x18] sm:$0xff] %v5038
        %5203 = vst [vmem:[%s5198 + $0x20] sm:$0xff] %v5041
        %5204 = vst [vmem:[%s5198 + $0x28] sm:$0xff] %v5044
        %5205 = vst [vmem:[%s5198 + $0x30] sm:$0xff] %v5047
        %5206 = vst [vmem:[%s5198 + $0x38] sm:$0xff] %v5050
        %5207 = vst [vmem:[%s5198 + $0x40] sm:$0xff] %v5053
        %5208 = vst [vmem:[%s5198 + $0x48] sm:$0xff] %v5055
        %5209 = vst [vmem:[%s5198 + $0x50] sm:$0xff] %v5057
        %5210 = vst [vmem:[%s5198 + $0x58] sm:$0xff] %v5059
        %5211 = vst [vmem:[%s5198 + $0x60] sm:$0xff] %v5061
        %5212 = vst [vmem:[%s5198 + $0x68] sm:$0xff] %v5063
        %5213 = vst [vmem:[%s5198 + $0x70] sm:$0xff] %v5065
        %5214 = vst [vmem:[%s5198 + $0x78] sm:$0xff] %v5067
        %5215 = vst [vmem:[%s5198 + $0x80] sm:$0xff] %v5069
        %5216 = vst [vmem:[%s5198 + $0x88] sm:$0xff] %v5071
        %5217 = vst [vmem:[%s5198 + $0x90] sm:$0xff] %v5073
        %5218 = vst [vmem:[%s5198 + $0x98] sm:$0xff] %v5075
        %5219 = vst [vmem:[%s5198 + $0xa0] sm:$0xff] %v5077
        %5220 = vst [vmem:[%s5198 + $0xa8] sm:$0xff] %v5079
        %5221 = vst [vmem:[%s5198 + $0xb0] sm:$0xff] %v5081
        %5222 = vst [vmem:[%s5198 + $0xb8] sm:$0xff] %v5083
        %5223 = vst [vmem:[%s5198 + $0xc0] sm:$0xff] %v5085
        %5224 = vst [vmem:[%s5198 + $0xc8] sm:$0xff] %v5087
        %5225 = vst [vmem:[%s5198 + $0xd0] sm:$0xff] %v5089
        %5226 = vst [vmem:[%s5198 + $0xd8] sm:$0xff] %v5091
        %5227 = vst [vmem:[%s5198 + $0xe0] sm:$0xff] %v5093
        %5228 = vst [vmem:[%s5198 + $0xe8] sm:$0xff] %v5095
        %5229 = vst [vmem:[%s5198 + $0xf0] sm:$0xff] %v5097
        %5230 = vst [vmem:[%s5198 + $0xf8] sm:$0xff] %v5099
        %5231 = vst [vmem:[%s5198 + $0x100] sm:$0xff] %v5101
        %5232 = vst [vmem:[%s5198 + $0x108] sm:$0xff] %v5103
        %5233 = vst [vmem:[%s5198 + $0x110] sm:$0xff] %v5105
        %5234 = vst [vmem:[%s5198 + $0x118] sm:$0xff] %v5107
        %5235 = vst [vmem:[%s5198 + $0x120] sm:$0xff] %v5109
        %5236 = vst [vmem:[%s5198 + $0x128] sm:$0xff] %v5111
        %5237 = vst [vmem:[%s5198 + $0x130] sm:$0xff] %v5113
        %5238 = vst [vmem:[%s5198 + $0x138] sm:$0xff] %v5115
        %5239 = vst [vmem:[%s5198 + $0x140] sm:$0xff] %v5117
        %5240 = vst [vmem:[%s5198 + $0x148] sm:$0xff] %v5119
        %5241 = vst [vmem:[%s5198 + $0x150] sm:$0xff] %v5121
        %5242 = vst [vmem:[%s5198 + $0x158] sm:$0xff] %v5123
        %5243 = vst [vmem:[%s5198 + $0x160] sm:$0xff] %v5125
        %5244 = vst [vmem:[%s5198 + $0x168] sm:$0xff] %v5127
        %5245 = vst [vmem:[%s5198 + $0x170] sm:$0xff] %v5129
        %5246 = vst [vmem:[%s5198 + $0x178] sm:$0xff] %v5131
        %5247 = vst [vmem:[%s5198 + $0x180] sm:$0xff] %v5133
        %5248 = vst [vmem:[%s5198 + $0x188] sm:$0xff] %v5135
        %5249 = vst [vmem:[%s5198 + $0x190] sm:$0xff] %v5137
        %5250 = vst [vmem:[%s5198 + $0x198] sm:$0xff] %v5139
        %5251 = vst [vmem:[%s5198 + $0x1a0] sm:$0xff] %v5141
        %5252 = vst [vmem:[%s5198 + $0x1a8] sm:$0xff] %v5143
        %v5253 = vld [vmem:[%s114] sm:$0xfe]
        %v5254 = vld [vmem:[%s114 + $0x8] sm:$0xfe]
        %v5255 = vld [vmem:[%s114 + $0x10] sm:$0xfe]
        %v5256 = vld [vmem:[%s114 + $0x18] sm:$0xfe]
        %v5257 = vld [vmem:[%s114 + $0x20] sm:$0xfe]
        %v5258 = vld [vmem:[%s114 + $0x28] sm:$0xfe]
        %v5259 = vld [vmem:[%s114 + $0x30] sm:$0xfe]
        %v5260 = vld [vmem:[%s114 + $0x38] sm:$0xfe]
        %v5261 = vld [vmem:[%s114 + $0x40] sm:$0xfe]
        %v5262 = vld [vmem:[%s114 + $0x50] sm:$0xff]
        %v5263 = vld [vmem:[%s114 + $0x58] sm:$0xff]
        %v5264 = vld [vmem:[%s114 + $0x60] sm:$0xff]
        %v5265 = vld [vmem:[%s114 + $0x68] sm:$0xff]
        %v5266 = vld [vmem:[%s114 + $0x70] sm:$0xff]
        %v5267 = vld [vmem:[%s114 + $0x78] sm:$0xff]
        %v5268 = vld [vmem:[%s114 + $0x80] sm:$0xff]
        %v5269 = vld [vmem:[%s114 + $0x88] sm:$0xff]
        %v5270 = vld [vmem:[%s114 + $0x90] sm:$0xff]
        %v5271 = vld [vmem:[%s114 + $0xa0] sm:$0xff]
        %v5272 = vld [vmem:[%s114 + $0xa8] sm:$0xff]
        %v5273 = vld [vmem:[%s114 + $0xb0] sm:$0xff]
        %v5274 = vld [vmem:[%s114 + $0xb8] sm:$0xff]
        %v5275 = vld [vmem:[%s114 + $0xc0] sm:$0xff]
        %v5276 = vld [vmem:[%s114 + $0xc8] sm:$0xff]
        %v5277 = vld [vmem:[%s114 + $0xd0] sm:$0xff]
        %v5278 = vld [vmem:[%s114 + $0xd8] sm:$0xff]
        %v5279 = vld [vmem:[%s114 + $0xe0] sm:$0xff]
        %v5280 = vld [vmem:[%s114 + $0xf0] sm:$0xff]
        %v5281 = vld [vmem:[%s114 + $0xf8] sm:$0xff]
        %v5282 = vld [vmem:[%s114 + $0x100] sm:$0xff]
        %v5283 = vld [vmem:[%s114 + $0x108] sm:$0xff]
        %v5284 = vld [vmem:[%s114 + $0x110] sm:$0xff]
        %v5285 = vld [vmem:[%s114 + $0x118] sm:$0xff]
        %v5286 = vld [vmem:[%s114 + $0x120] sm:$0xff]
        %v5287 = vld [vmem:[%s114 + $0x128] sm:$0xff]
        %v5288 = vld [vmem:[%s114 + $0x130] sm:$0xff]
        %v5289 = vld [vmem:[%s114 + $0x140] sm:$0xff]
        %v5290 = vld [vmem:[%s114 + $0x148] sm:$0xff]
        %v5291 = vld [vmem:[%s114 + $0x150] sm:$0xff]
        %v5292 = vld [vmem:[%s114 + $0x158] sm:$0xff]
        %v5293 = vld [vmem:[%s114 + $0x160] sm:$0xff]
        %v5294 = vld [vmem:[%s114 + $0x168] sm:$0xff]
        %v5295 = vld [vmem:[%s114 + $0x170] sm:$0xff]
        %v5296 = vld [vmem:[%s114 + $0x178] sm:$0xff]
        %v5297 = vld [vmem:[%s114 + $0x180] sm:$0xff]
        %v5298 = vld [vmem:[%s114 + $0x190] sm:$0xff]
        %v5299 = vld [vmem:[%s114 + $0x198] sm:$0xff]
        %v5300 = vld [vmem:[%s114 + $0x1a0] sm:$0xff]
        %v5301 = vld [vmem:[%s114 + $0x1a8] sm:$0xff]
        %v5302 = vld [vmem:[%s114 + $0x1b0] sm:$0xff]
        %v5303 = vld [vmem:[%s114 + $0x1b8] sm:$0xff]
        %v5304 = vld [vmem:[%s114 + $0x1c0] sm:$0xff]
        %v5305 = vld [vmem:[%s114 + $0x1c8] sm:$0xff]
        %v5306 = vld [vmem:[%s114 + $0x1d0] sm:$0xff]
        %v5307 = vld [vmem:[%s114 + $0x1e0] sm:$0x1]
        %v5308 = vld [vmem:[%s114 + $0x1e8] sm:$0x1]
        %v5309 = vld [vmem:[%s114 + $0x1f0] sm:$0x1]
        %v5310 = vld [vmem:[%s114 + $0x1f8] sm:$0x1]
        %v5311 = vld [vmem:[%s114 + $0x200] sm:$0x1]
        %v5312 = vld [vmem:[%s114 + $0x208] sm:$0x1]
        %v5313 = vld [vmem:[%s114 + $0x210] sm:$0x1]
        %v5314 = vld [vmem:[%s114 + $0x218] sm:$0x1]
        %v5315 = vld [vmem:[%s114 + $0x220] sm:$0x1]
        %5316 = vrot.lane.b32.xlu0 %v116, 104
        %v5317 = vpop.permute.xlu0 %5316
        %5318 = vrot.lane.b32.xlu0 %v117, 104
        %v5319 = vpop.permute.xlu0 %5318
        %5320 = vrot.lane.b32.xlu0 %v118, 104
        %v5321 = vpop.permute.xlu0 %5320
        %5322 = vrot.lane.b32.xlu0 %v119, 104
        %v5323 = vpop.permute.xlu0 %5322
        %5324 = vrot.lane.b32.xlu0 %v120, 104
        %v5325 = vpop.permute.xlu0 %5324
        %5326 = vrot.lane.b32.xlu0 %v121, 104
        %v5327 = vpop.permute.xlu0 %5326
        %5328 = vrot.lane.b32.xlu0 %v122, 104
        %v5329 = vpop.permute.xlu0 %5328
        %5330 = vrot.lane.b32.xlu0 %v123, 104
        %v5331 = vpop.permute.xlu0 %5330
        %5332 = vrot.lane.b32.xlu0 %v124, 104
        %v5333 = vpop.permute.xlu0 %5332
        %5334 = vrot.lane.b32.xlu0 %v125, 104
        %v5335 = vpop.permute.xlu0 %5334
        %5336 = vrot.lane.b32.xlu0 %v126, 104
        %v5337 = vpop.permute.xlu0 %5336
        %5338 = vrot.lane.b32.xlu0 %v127, 104
        %v5339 = vpop.permute.xlu0 %5338
        %5340 = vrot.lane.b32.xlu0 %v128, 104
        %v5341 = vpop.permute.xlu0 %5340
        %5342 = vrot.lane.b32.xlu0 %v129, 104
        %v5343 = vpop.permute.xlu0 %5342
        %5344 = vrot.lane.b32.xlu0 %v130, 104
        %v5345 = vpop.permute.xlu0 %5344
        %5346 = vrot.lane.b32.xlu0 %v131, 104
        %v5347 = vpop.permute.xlu0 %5346
        %5348 = vrot.lane.b32.xlu0 %v132, 104
        %v5349 = vpop.permute.xlu0 %5348
        %5350 = vrot.lane.b32.xlu0 %v133, 104
        %v5351 = vpop.permute.xlu0 %5350
        %5352 = vrot.lane.b32.xlu0 %v134, 104
        %v5353 = vpop.permute.xlu0 %5352
        %5354 = vrot.lane.b32.xlu0 %v135, 104
        %v5355 = vpop.permute.xlu0 %5354
        %5356 = vrot.lane.b32.xlu0 %v136, 104
        %v5357 = vpop.permute.xlu0 %5356
        %5358 = vrot.lane.b32.xlu0 %v137, 104
        %v5359 = vpop.permute.xlu0 %5358
        %5360 = vrot.lane.b32.xlu0 %v138, 104
        %v5361 = vpop.permute.xlu0 %5360
        %5362 = vrot.lane.b32.xlu0 %v139, 104
        %v5363 = vpop.permute.xlu0 %5362
        %5364 = vrot.lane.b32.xlu0 %v140, 104
        %v5365 = vpop.permute.xlu0 %5364
        %5366 = vrot.lane.b32.xlu0 %v141, 104
        %v5367 = vpop.permute.xlu0 %5366
        %5368 = vrot.lane.b32.xlu0 %v142, 104
        %v5369 = vpop.permute.xlu0 %5368
        %5370 = vrot.lane.b32.xlu0 %v143, 104
        %v5371 = vpop.permute.xlu0 %5370
        %5372 = vrot.lane.b32.xlu0 %v144, 104
        %v5373 = vpop.permute.xlu0 %5372
        %5374 = vrot.lane.b32.xlu0 %v145, 104
        %v5375 = vpop.permute.xlu0 %5374
        %5376 = vrot.lane.b32.xlu0 %v146, 104
        %v5377 = vpop.permute.xlu0 %5376
        %5378 = vrot.lane.b32.xlu0 %v147, 104
        %v5379 = vpop.permute.xlu0 %5378
        %5380 = vrot.lane.b32.xlu0 %v148, 104
        %v5381 = vpop.permute.xlu0 %5380
        %5382 = vrot.lane.b32.xlu0 %v149, 104
        %v5383 = vpop.permute.xlu0 %5382
        %5384 = vrot.lane.b32.xlu0 %v150, 104
        %v5385 = vpop.permute.xlu0 %5384
        %5386 = vrot.lane.b32.xlu0 %v151, 104
        %v5387 = vpop.permute.xlu0 %5386
        %5388 = vrot.lane.b32.xlu0 %v152, 104
        %v5389 = vpop.permute.xlu0 %5388
        %5390 = vrot.lane.b32.xlu0 %v153, 104
        %v5391 = vpop.permute.xlu0 %5390
        %5392 = vrot.lane.b32.xlu0 %v154, 104
        %v5393 = vpop.permute.xlu0 %5392
        %5394 = vrot.lane.b32.xlu0 %v155, 104
        %v5395 = vpop.permute.xlu0 %5394
        %5396 = vrot.lane.b32.xlu0 %v156, 104
        %v5397 = vpop.permute.xlu0 %5396
        %5398 = vrot.lane.b32.xlu0 %v157, 104
        %v5399 = vpop.permute.xlu0 %5398
        %5400 = vrot.lane.b32.xlu0 %v158, 104
        %v5401 = vpop.permute.xlu0 %5400
        %5402 = vrot.lane.b32.xlu0 %v159, 104
        %v5403 = vpop.permute.xlu0 %5402
        %5404 = vrot.lane.b32.xlu0 %v160, 104
        %v5405 = vpop.permute.xlu0 %5404
        %5406 = vrot.lane.b32.xlu0 %v161, 104
        %v5407 = vpop.permute.xlu0 %5406
        %5408 = vrot.lane.b32.xlu0 %v162, 104
        %v5409 = vpop.permute.xlu0 %5408
        %5410 = vrot.lane.b32.xlu0 %v163, 104
        %v5411 = vpop.permute.xlu0 %5410
        %5412 = vrot.lane.b32.xlu0 %v164, 104
        %v5413 = vpop.permute.xlu0 %5412
        %5414 = vrot.lane.b32.xlu0 %v165, 104
        %v5415 = vpop.permute.xlu0 %5414
        %5416 = vrot.lane.b32.xlu0 %v166, 104
        %v5417 = vpop.permute.xlu0 %5416
        %5418 = vrot.lane.b32.xlu0 %v167, 104
        %v5419 = vpop.permute.xlu0 %5418
        %5420 = vrot.lane.b32.xlu0 %v168, 104
        %v5421 = vpop.permute.xlu0 %5420
        %5422 = vrot.lane.b32.xlu0 %v169, 104
        %v5423 = vpop.permute.xlu0 %5422
        %5424 = vrot.lane.b32.xlu0 %v170, 104
        %v5425 = vpop.permute.xlu0 %5424
        %5426 = vrot.lane.b32.xlu0 %v171, 104
        %v5427 = vpop.permute.xlu0 %5426
        %5428 = vrot.lane.b32.xlu0 %v172, 104
        %v5429 = vpop.permute.xlu0 %5428
        %5430 = vrot.lane.b32.xlu0 %v173, 104
        %v5431 = vpop.permute.xlu0 %5430
        %5432 = vrot.lane.b32.xlu0 %v174, 104
        %v5433 = vpop.permute.xlu0 %5432
        %5434 = vrot.lane.b32.xlu0 %v175, 104
        %v5435 = vpop.permute.xlu0 %5434
        %5436 = vrot.lane.b32.xlu0 %v176, 104
        %v5437 = vpop.permute.xlu0 %5436
        %5438 = vrot.lane.b32.xlu0 %v177, 104
        %v5439 = vpop.permute.xlu0 %5438
        %5440 = vrot.lane.b32.xlu0 %v178, 104
        %v5441 = vpop.permute.xlu0 %5440
        %5442 = vrot.lane.b32.xlu0 %v179, 104
        %v5443 = vpop.permute.xlu0 %5442
        %5444 = vrot.lane.b32.xlu0 %v180, 104
        %v5445 = vpop.permute.xlu0 %5444
        %5446 = vrot.lane.b32.xlu0 %v181, 104
        %v5447 = vpop.permute.xlu0 %5446
        %5448 = vrot.lane.b32.xlu0 %v182, 104
        %v5449 = vpop.permute.xlu0 %5448
        %5450 = vrot.lane.b32.xlu0 %v183, 104
        %v5451 = vpop.permute.xlu0 %5450
        %5452 = vrot.lane.b32.xlu0 %v184, 104
        %v5453 = vpop.permute.xlu0 %5452
        %5454 = vrot.lane.b32.xlu0 %v185, 104
        %v5455 = vpop.permute.xlu0 %5454
        %v5456 = vsel %vm516, %v5317, %v5319
        %v5457 = vsel %vm516, %v5319, %v5321
        %v5458 = vsel %vm516, %v5321, %v5323
        %v5459 = vsel %vm516, %v5323, %v5325
        %v5460 = vsel %vm516, %v5325, %v5327
        %v5461 = vsel %vm516, %v5327, %v5329
        %v5462 = vsel %vm516, %v5329, %v5331
        %v5463 = vsel %vm516, %v5331, %v5333
        %v5464 = vsel %vm516, %v5333, %v5335
        %v5465 = vsel %vm516, %v5337, %v5339
        %v5466 = vsel %vm516, %v5339, %v5341
        %v5467 = vsel %vm516, %v5341, %v5343
        %v5468 = vsel %vm516, %v5343, %v5345
        %v5469 = vsel %vm516, %v5345, %v5347
        %v5470 = vsel %vm516, %v5347, %v5349
        %v5471 = vsel %vm516, %v5349, %v5351
        %v5472 = vsel %vm516, %v5351, %v5353
        %v5473 = vsel %vm516, %v5353, %v5355
        %v5474 = vsel %vm516, %v5357, %v5359
        %v5475 = vsel %vm516, %v5359, %v5361
        %v5476 = vsel %vm516, %v5361, %v5363
        %v5477 = vsel %vm516, %v5363, %v5365
        %v5478 = vsel %vm516, %v5365, %v5367
        %v5479 = vsel %vm516, %v5367, %v5369
        %v5480 = vsel %vm516, %v5369, %v5371
        %v5481 = vsel %vm516, %v5371, %v5373
        %v5482 = vsel %vm516, %v5373, %v5375
        %v5483 = vsel %vm516, %v5377, %v5379
        %v5484 = vsel %vm516, %v5379, %v5381
        %v5485 = vsel %vm516, %v5381, %v5383
        %v5486 = vsel %vm516, %v5383, %v5385
        %v5487 = vsel %vm516, %v5385, %v5387
        %v5488 = vsel %vm516, %v5387, %v5389
        %v5489 = vsel %vm516, %v5389, %v5391
        %v5490 = vsel %vm516, %v5391, %v5393
        %v5491 = vsel %vm516, %v5393, %v5395
        %v5492 = vsel %vm516, %v5397, %v5399
        %v5493 = vsel %vm516, %v5399, %v5401
        %v5494 = vsel %vm516, %v5401, %v5403
        %v5495 = vsel %vm516, %v5403, %v5405
        %v5496 = vsel %vm516, %v5405, %v5407
        %v5497 = vsel %vm516, %v5407, %v5409
        %v5498 = vsel %vm516, %v5409, %v5411
        %v5499 = vsel %vm516, %v5411, %v5413
        %v5500 = vsel %vm516, %v5413, %v5415
        %v5501 = vsel %vm516, %v5417, %v5419
        %v5502 = vsel %vm516, %v5419, %v5421
        %v5503 = vsel %vm516, %v5421, %v5423
        %v5504 = vsel %vm516, %v5423, %v5425
        %v5505 = vsel %vm516, %v5425, %v5427
        %v5506 = vsel %vm516, %v5427, %v5429
        %v5507 = vsel %vm516, %v5429, %v5431
        %v5508 = vsel %vm516, %v5431, %v5433
        %v5509 = vsel %vm516, %v5433, %v5435
        %v5510 = vsel %vm516, %v5437, %v5439
        %v5511 = vsel %vm516, %v5439, %v5441
        %v5512 = vsel %vm516, %v5441, %v5443
        %v5513 = vsel %vm516, %v5443, %v5445
        %v5514 = vsel %vm516, %v5445, %v5447
        %v5515 = vsel %vm516, %v5447, %v5449
        %v5516 = vsel %vm516, %v5449, %v5451
        %v5517 = vsel %vm516, %v5451, %v5453
        %v5518 = vsel %vm516, %v5453, %v5455
        %v5582 = vsub.f32 %v5253, %v5456
        %v5583 = vsub.f32 %v5254, %v5457
        %v5584 = vsub.f32 %v5255, %v5458
        %v5585 = vsub.f32 %v5256, %v5459
        %v5586 = vsub.f32 %v5257, %v5460
        %v5587 = vsub.f32 %v5258, %v5461
        %v5588 = vsub.f32 %v5259, %v5462
        %v5589 = vsub.f32 %v5260, %v5463
        %v5590 = vsub.f32 %v5261, %v5464
        %v5591 = vsub.f32 %v5262, %v5465
        %v5592 = vsub.f32 %v5263, %v5466
        %v5593 = vsub.f32 %v5264, %v5467
        %v5594 = vsub.f32 %v5265, %v5468
        %v5595 = vsub.f32 %v5266, %v5469
        %v5596 = vsub.f32 %v5267, %v5470
        %v5597 = vsub.f32 %v5268, %v5471
        %v5598 = vsub.f32 %v5269, %v5472
        %v5599 = vsub.f32 %v5270, %v5473
        %v5600 = vsub.f32 %v5271, %v5474
        %v5601 = vsub.f32 %v5272, %v5475
        %v5602 = vsub.f32 %v5273, %v5476
        %v5603 = vsub.f32 %v5274, %v5477
        %v5604 = vsub.f32 %v5275, %v5478
        %v5605 = vsub.f32 %v5276, %v5479
        %v5606 = vsub.f32 %v5277, %v5480
        %v5607 = vsub.f32 %v5278, %v5481
        %v5608 = vsub.f32 %v5279, %v5482
        %v5609 = vsub.f32 %v5280, %v5483
        %v5610 = vsub.f32 %v5281, %v5484
        %v5611 = vsub.f32 %v5282, %v5485
        %v5612 = vsub.f32 %v5283, %v5486
        %v5613 = vsub.f32 %v5284, %v5487
        %v5614 = vsub.f32 %v5285, %v5488
        %v5615 = vsub.f32 %v5286, %v5489
        %v5616 = vsub.f32 %v5287, %v5490
        %v5617 = vsub.f32 %v5288, %v5491
        %v5618 = vsub.f32 %v5289, %v5492
        %v5619 = vsub.f32 %v5290, %v5493
        %v5620 = vsub.f32 %v5291, %v5494
        %v5621 = vsub.f32 %v5292, %v5495
        %v5622 = vsub.f32 %v5293, %v5496
        %v5623 = vsub.f32 %v5294, %v5497
        %v5624 = vsub.f32 %v5295, %v5498
        %v5625 = vsub.f32 %v5296, %v5499
        %v5626 = vsub.f32 %v5297, %v5500
        %v5627 = vsub.f32 %v5298, %v5501
        %v5628 = vsub.f32 %v5299, %v5502
        %v5629 = vsub.f32 %v5300, %v5503
        %v5630 = vsub.f32 %v5301, %v5504
        %v5631 = vsub.f32 %v5302, %v5505
        %v5632 = vsub.f32 %v5303, %v5506
        %v5633 = vsub.f32 %v5304, %v5507
        %v5634 = vsub.f32 %v5305, %v5508
        %v5635 = vsub.f32 %v5306, %v5509
        %v5636 = vsub.f32 %v5307, %v5510
        %v5637 = vsub.f32 %v5308, %v5511
        %v5638 = vsub.f32 %v5309, %v5512
        %v5639 = vsub.f32 %v5310, %v5513
        %v5640 = vsub.f32 %v5311, %v5514
        %v5641 = vsub.f32 %v5312, %v5515
        %v5642 = vsub.f32 %v5313, %v5516
        %v5643 = vsub.f32 %v5314, %v5517
        %v5644 = vsub.f32 %v5315, %v5518
        %v5708 = vrot.slane %v5582, 1
        %v5709 = vrot.slane %v5591, 1
        %v5710 = vsel %vm265, %v5708, %v5709
        %v5711 = vrot.slane %v5583, 1
        %v5712 = vrot.slane %v5592, 1
        %v5713 = vsel %vm265, %v5711, %v5712
        %v5714 = vrot.slane %v5584, 1
        %v5715 = vrot.slane %v5593, 1
        %v5716 = vsel %vm265, %v5714, %v5715
        %v5717 = vrot.slane %v5585, 1
        %v5718 = vrot.slane %v5594, 1
        %v5719 = vsel %vm265, %v5717, %v5718
        %v5720 = vrot.slane %v5586, 1
        %v5721 = vrot.slane %v5595, 1
        %v5722 = vsel %vm265, %v5720, %v5721
        %v5723 = vrot.slane %v5587, 1
        %v5724 = vrot.slane %v5596, 1
        %v5725 = vsel %vm265, %v5723, %v5724
        %v5726 = vrot.slane %v5588, 1
        %v5727 = vrot.slane %v5597, 1
        %v5728 = vsel %vm265, %v5726, %v5727
        %v5729 = vrot.slane %v5589, 1
        %v5730 = vrot.slane %v5598, 1
        %v5731 = vsel %vm265, %v5729, %v5730
        %v5732 = vrot.slane %v5590, 1
        %v5733 = vrot.slane %v5599, 1
        %v5734 = vsel %vm265, %v5732, %v5733
        %v5735 = vrot.slane %v5600, 1
        %v5736 = vsel %vm265, %v5709, %v5735
        %v5737 = vrot.slane %v5601, 1
        %v5738 = vsel %vm265, %v5712, %v5737
        %v5739 = vrot.slane %v5602, 1
        %v5740 = vsel %vm265, %v5715, %v5739
        %v5741 = vrot.slane %v5603, 1
        %v5742 = vsel %vm265, %v5718, %v5741
        %v5743 = vrot.slane %v5604, 1
        %v5744 = vsel %vm265, %v5721, %v5743
        %v5745 = vrot.slane %v5605, 1
        %v5746 = vsel %vm265, %v5724, %v5745
        %v5747 = vrot.slane %v5606, 1
        %v5748 = vsel %vm265, %v5727, %v5747
        %v5749 = vrot.slane %v5607, 1
        %v5750 = vsel %vm265, %v5730, %v5749
        %v5751 = vrot.slane %v5608, 1
        %v5752 = vsel %vm265, %v5733, %v5751
        %v5753 = vrot.slane %v5609, 1
        %v5754 = vsel %vm265, %v5735, %v5753
        %v5755 = vrot.slane %v5610, 1
        %v5756 = vsel %vm265, %v5737, %v5755
        %v5757 = vrot.slane %v5611, 1
        %v5758 = vsel %vm265, %v5739, %v5757
        %v5759 = vrot.slane %v5612, 1
        %v5760 = vsel %vm265, %v5741, %v5759
        %v5761 = vrot.slane %v5613, 1
        %v5762 = vsel %vm265, %v5743, %v5761
        %v5763 = vrot.slane %v5614, 1
        %v5764 = vsel %vm265, %v5745, %v5763
        %v5765 = vrot.slane %v5615, 1
        %v5766 = vsel %vm265, %v5747, %v5765
        %v5767 = vrot.slane %v5616, 1
        %v5768 = vsel %vm265, %v5749, %v5767
        %v5769 = vrot.slane %v5617, 1
        %v5770 = vsel %vm265, %v5751, %v5769
        %v5771 = vrot.slane %v5618, 1
        %v5772 = vsel %vm265, %v5753, %v5771
        %v5773 = vrot.slane %v5619, 1
        %v5774 = vsel %vm265, %v5755, %v5773
        %v5775 = vrot.slane %v5620, 1
        %v5776 = vsel %vm265, %v5757, %v5775
        %v5777 = vrot.slane %v5621, 1
        %v5778 = vsel %vm265, %v5759, %v5777
        %v5779 = vrot.slane %v5622, 1
        %v5780 = vsel %vm265, %v5761, %v5779
        %v5781 = vrot.slane %v5623, 1
        %v5782 = vsel %vm265, %v5763, %v5781
        %v5783 = vrot.slane %v5624, 1
        %v5784 = vsel %vm265, %v5765, %v5783
        %v5785 = vrot.slane %v5625, 1
        %v5786 = vsel %vm265, %v5767, %v5785
        %v5787 = vrot.slane %v5626, 1
        %v5788 = vsel %vm265, %v5769, %v5787
        %v5789 = vrot.slane %v5627, 1
        %v5790 = vsel %vm265, %v5771, %v5789
        %v5791 = vrot.slane %v5628, 1
        %v5792 = vsel %vm265, %v5773, %v5791
        %v5793 = vrot.slane %v5629, 1
        %v5794 = vsel %vm265, %v5775, %v5793
        %v5795 = vrot.slane %v5630, 1
        %v5796 = vsel %vm265, %v5777, %v5795
        %v5797 = vrot.slane %v5631, 1
        %v5798 = vsel %vm265, %v5779, %v5797
        %v5799 = vrot.slane %v5632, 1
        %v5800 = vsel %vm265, %v5781, %v5799
        %v5801 = vrot.slane %v5633, 1
        %v5802 = vsel %vm265, %v5783, %v5801
        %v5803 = vrot.slane %v5634, 1
        %v5804 = vsel %vm265, %v5785, %v5803
        %v5805 = vrot.slane %v5635, 1
        %v5806 = vsel %vm265, %v5787, %v5805
        %v5807 = vrot.slane %v5636, 1
        %v5808 = vsel %vm265, %v5789, %v5807
        %v5809 = vrot.slane %v5637, 1
        %v5810 = vsel %vm265, %v5791, %v5809
        %v5811 = vrot.slane %v5638, 1
        %v5812 = vsel %vm265, %v5793, %v5811
        %v5813 = vrot.slane %v5639, 1
        %v5814 = vsel %vm265, %v5795, %v5813
        %v5815 = vrot.slane %v5640, 1
        %v5816 = vsel %vm265, %v5797, %v5815
        %v5817 = vrot.slane %v5641, 1
        %v5818 = vsel %vm265, %v5799, %v5817
        %v5819 = vrot.slane %v5642, 1
        %v5820 = vsel %vm265, %v5801, %v5819
        %v5821 = vrot.slane %v5643, 1
        %v5822 = vsel %vm265, %v5803, %v5821
        %v5823 = vrot.slane %v5644, 1
        %v5824 = vsel %vm265, %v5805, %v5823
        %s5879 = scalar_lea.vmem %s109, 3024 [#allocation2]
        %5880 = vst [vmem:[%s5879] sm:$0xff] %v5710
        %5881 = vst [vmem:[%s5879 + $0x8] sm:$0xff] %v5713
        %5882 = vst [vmem:[%s5879 + $0x10] sm:$0xff] %v5716
        %5883 = vst [vmem:[%s5879 + $0x18] sm:$0xff] %v5719
        %5884 = vst [vmem:[%s5879 + $0x20] sm:$0xff] %v5722
        %5885 = vst [vmem:[%s5879 + $0x28] sm:$0xff] %v5725
        %5886 = vst [vmem:[%s5879 + $0x30] sm:$0xff] %v5728
        %5887 = vst [vmem:[%s5879 + $0x38] sm:$0xff] %v5731
        %5888 = vst [vmem:[%s5879 + $0x40] sm:$0xff] %v5734
        %5889 = vst [vmem:[%s5879 + $0x48] sm:$0xff] %v5736
        %5890 = vst [vmem:[%s5879 + $0x50] sm:$0xff] %v5738
        %5891 = vst [vmem:[%s5879 + $0x58] sm:$0xff] %v5740
        %5892 = vst [vmem:[%s5879 + $0x60] sm:$0xff] %v5742
        %5893 = vst [vmem:[%s5879 + $0x68] sm:$0xff] %v5744
        %5894 = vst [vmem:[%s5879 + $0x70] sm:$0xff] %v5746
        %5895 = vst [vmem:[%s5879 + $0x78] sm:$0xff] %v5748
        %5896 = vst [vmem:[%s5879 + $0x80] sm:$0xff] %v5750
        %5897 = vst [vmem:[%s5879 + $0x88] sm:$0xff] %v5752
        %5898 = vst [vmem:[%s5879 + $0x90] sm:$0xff] %v5754
        %5899 = vst [vmem:[%s5879 + $0x98] sm:$0xff] %v5756
        %5900 = vst [vmem:[%s5879 + $0xa0] sm:$0xff] %v5758
        %5901 = vst [vmem:[%s5879 + $0xa8] sm:$0xff] %v5760
        %5902 = vst [vmem:[%s5879 + $0xb0] sm:$0xff] %v5762
        %5903 = vst [vmem:[%s5879 + $0xb8] sm:$0xff] %v5764
        %5904 = vst [vmem:[%s5879 + $0xc0] sm:$0xff] %v5766
        %5905 = vst [vmem:[%s5879 + $0xc8] sm:$0xff] %v5768
        %5906 = vst [vmem:[%s5879 + $0xd0] sm:$0xff] %v5770
        %5907 = vst [vmem:[%s5879 + $0xd8] sm:$0xff] %v5772
        %5908 = vst [vmem:[%s5879 + $0xe0] sm:$0xff] %v5774
        %5909 = vst [vmem:[%s5879 + $0xe8] sm:$0xff] %v5776
        %5910 = vst [vmem:[%s5879 + $0xf0] sm:$0xff] %v5778
        %5911 = vst [vmem:[%s5879 + $0xf8] sm:$0xff] %v5780
        %5912 = vst [vmem:[%s5879 + $0x100] sm:$0xff] %v5782
        %5913 = vst [vmem:[%s5879 + $0x108] sm:$0xff] %v5784
        %5914 = vst [vmem:[%s5879 + $0x110] sm:$0xff] %v5786
        %5915 = vst [vmem:[%s5879 + $0x118] sm:$0xff] %v5788
        %5916 = vst [vmem:[%s5879 + $0x120] sm:$0xff] %v5790
        %5917 = vst [vmem:[%s5879 + $0x128] sm:$0xff] %v5792
        %5918 = vst [vmem:[%s5879 + $0x130] sm:$0xff] %v5794
        %5919 = vst [vmem:[%s5879 + $0x138] sm:$0xff] %v5796
        %5920 = vst [vmem:[%s5879 + $0x140] sm:$0xff] %v5798
        %5921 = vst [vmem:[%s5879 + $0x148] sm:$0xff] %v5800
        %5922 = vst [vmem:[%s5879 + $0x150] sm:$0xff] %v5802
        %5923 = vst [vmem:[%s5879 + $0x158] sm:$0xff] %v5804
        %5924 = vst [vmem:[%s5879 + $0x160] sm:$0xff] %v5806
        %5925 = vst [vmem:[%s5879 + $0x168] sm:$0xff] %v5808
        %5926 = vst [vmem:[%s5879 + $0x170] sm:$0xff] %v5810
        %5927 = vst [vmem:[%s5879 + $0x178] sm:$0xff] %v5812
        %5928 = vst [vmem:[%s5879 + $0x180] sm:$0xff] %v5814
        %5929 = vst [vmem:[%s5879 + $0x188] sm:$0xff] %v5816
        %5930 = vst [vmem:[%s5879 + $0x190] sm:$0xff] %v5818
        %5931 = vst [vmem:[%s5879 + $0x198] sm:$0xff] %v5820
        %5932 = vst [vmem:[%s5879 + $0x1a0] sm:$0xff] %v5822
        %5933 = vst [vmem:[%s5879 + $0x1a8] sm:$0xff] %v5824
        %s5934 = sand.u32 %s49, 1
        %s5935 = scalar_lea.sflag [#allocation3], %s5934
        %s5936 = sand.u32 %s49, 1
        %s5937 = smul.addr %s5936, 3456
        %s5938 = scalar_lea.vmem [#allocation2], %s5937
        // Predicated region
        $region25: #{tpu_custom_call.1} parent=23 // pred_check
          %p5939 = pneg %p59
        $region26: #{tpu_custom_call.1} parent=23 // pred_check_branch
          %5941 = sbr.rel (%p5939) target = $region28
        $region27: #{tpu_custom_call.1} parent=23 // pred_region
          %s5942 = smul.u32 8, %s15
          %5944 = vsyncadd %s5935, 0
          %s5945 = smul.addr %s5942, 54
          %s5946 = smul.addr %s5945, 8
          %s5947 = scalar_lea.hbm %s1, %s5946
          %s5948 = sshll.u32 %s5938, 4
          %s5949 = int_to_ptr.vmem [resolvable:$true] %s5948
          %s5950 = sshll.u32 %s5947, 4
          %s5951 = int_to_ptr.hbm [resolvable:$true] %s5950
          %5956 = dma.vmem_to_hbm [thread:$0]  %s5949, 55296, %s5951, %s5935, 1152, 1152, 72
        $region28: #{tpu_custom_call.1} parent=23 // pred_fallthru
          _
      $region24: #{tpu_custom_call.1} parent=5 // pred_fallthru
        _
      %p5957 = scmp.le.s32.totalorder 2, %s10
      // Predicated region
      $region29: #{tpu_custom_call.1} parent=5 // pred_check
        %p5958 = pneg %p5957
      $region30: #{tpu_custom_call.1} parent=5 // pred_check_branch
        %5960 = sbr.rel (%p5958) target = $region32
      $region31: #{tpu_custom_call.1} parent=5 // pred_region
        %s5961 = ssub.s32 %s10, 2
        // Predicated region
        $region33: #{tpu_custom_call.1} parent=31 // pred_check
          %p5962 = pneg %p65
        $region34: #{tpu_custom_call.1} parent=31 // pred_check_branch
          %5964 = sbr.rel (%p5962) target = $region36
        $region35: #{tpu_custom_call.1} parent=31 // pred_region
          %s5965 = sand.u32 %s50, 1
          %s5966 = scalar_lea.sflag [#allocation3], %s5965
          %s5967 = sand.u32 %s50, 1
          %s5968 = smul.addr %s5967, 3456
          %s5969 = scalar_lea.vmem [#allocation2], %s5968
          %5971 = dma.done %s5966, 55296
        $region36: #{tpu_custom_call.1} parent=31 // pred_fallthru
          _
      $region32: #{tpu_custom_call.1} parent=5 // pred_fallthru
        _
    $region6: #{tpu_custom_call.1} parent=1 // loop_footer
      %s14 = sadd.s32 1, %s10
    $region7: #{tpu_custom_call.1} parent=1 // loop_footer_branch
      %9 = sbr.rel target = $region3
    $region8: #{tpu_custom_call.1} parent=1 // loop_exit
      _
    %5972 = vsyncpa [#allocation3], 1
    %s5973 = scalar_lea.sflag [#allocation3], 1
    %5974 = vsyncpa %s5973, 1

</llo_original>
